<compile_context>
chip_gen: v5e
topology: v5e:2x2
jax: 0.10.0
libtpu: 0.0.40
codegen_flags: <defaults>
</compile_context>

<pallas_src>
import functools

import jax
import jax.numpy as jnp
from jax import lax
from jax.experimental import pallas as pl
from jax.experimental.pallas import tpu as pltpu


# ---------------------------------------------------------------------------
# Fully fused forward kernel (one image per grid step)
# ---------------------------------------------------------------------------
def _fused_cnn_kernel(x_ref, w1, b1, w2, b2, w3, b3, wf1, bf1, wf2, bf2,
                      o_ref, slab2, slab3, ps1, ps2, *, H, W):
    """Ref shapes (H=W=16 example):
      x_ref : (1, H*W, 27)  bf16   host 3x3 im2col of the RGB image
      w1    : (27, 32)      b1 (1,32)    BN-folded conv1
      w2    : (288, 64)     b2 (1,64)    conv2 (rows ordered dy,dx,cin)
      w3    : (576, 64)     b3 (1,64)    conv3
      wf1   : (256, 1024)   bf1 (1,1024) fc1, rows pre-permuted to HWC flatten order
      wf2   : (1024, 256)   bf2 (1,256)  fc2, zero-padded to 256 lane-dense cols
      o_ref : (1, 1, 256)   f32          final logits (padding sliced off outside)
      slab2/slab3 : zero-padded next-stage input slabs (VMEM scratch, f32)
      ps1/ps2     : pooling scratch (post-max slabs, f32)
    """
    Hp1, Wp1 = H // 2, W // 2
    Hp2, Wp2 = Hp1 // 2, Wp1 // 2
    Hp3, Wp3 = Hp2 // 2, Wp2 // 2
    PW2, PW3 = Wp1 + 2, Wp2 + 2
    M1, M2, M3 = H * W, Hp1 * PW2, Hp2 * PW3

    # ---- stage 1: conv1 as ONE K=27 matmul on the host im2col ---------------
    a = jnp.dot(x_ref[0], w1[...], preferred_element_type=jnp.float32)   # (M1, 32)
    a = jnp.maximum(a + b1[...], 0.0)                                    # bias + ReLU
    # 2x2 max-pool: two full-slab VPU maxima, then one stride-2 gather per pooled row
    vm = jnp.maximum(a[:-W, :], a[W:, :])
    ps1[0:M1 - W - 1, :] = jnp.maximum(vm[:-1, :], vm[1:, :])
    slab2[...] = jnp.zeros_like(slab2)            # zero padding ring for stage 2
    for yp in range(Hp1):
        r = (yp + 1) * PW2 + 1
        slab2[r:r + Wp1, :] = ps1[pl.ds(2 * yp * W, Wp1, stride=2), :]

    # ---- stage 2: conv2 as ONE K=9*32 matmul (tap concat along K) -----------
    taps = jnp.concatenate(
        [slab2[(t // 3) * PW2 + t % 3:(t // 3) * PW2 + t % 3 + M2, :]
         .astype(jnp.bfloat16) for t in range(9)], axis=1)               # (M2, 288)
    a = jnp.dot(taps, w2[...], preferred_element_type=jnp.float32)       # (M2, 64)
    a = jnp.maximum(a + b2[...], 0.0)
    vm = jnp.maximum(a[:-PW2, :], a[PW2:, :])
    ps2[0:M2 - PW2 - 1, :] = jnp.maximum(vm[:-1, :], vm[1:, :])
    slab3[...] = jnp.zeros_like(slab3)
    for yp in range(Hp2):
        r = (yp + 1) * PW3 + 1
        slab3[r:r + Wp2, :] = ps2[pl.ds(2 * yp * PW2, Wp2, stride=2), :]

    # ---- stage 3: conv3 as ONE K=9*64 matmul ---------------------------------
    taps = jnp.concatenate(
        [slab3[(t // 3) * PW3 + t % 3:(t // 3) * PW3 + t % 3 + M3, :]
         .astype(jnp.bfloat16) for t in range(9)], axis=1)               # (M3, 576)
    a = jnp.dot(taps, w3[...], preferred_element_type=jnp.float32)       # (M3, 64)
    a = jnp.maximum(a + b3[...], 0.0)
    vm = jnp.maximum(a[:-PW3, :], a[PW3:, :])
    hm = jnp.maximum(vm[:-1, :], vm[1:, :])

    # ---- flatten (HWC order via lane-concat of pooled rows) + FC1 + FC2 ------
    flat = jnp.concatenate(
        [hm[2 * yp * PW3 + 2 * xp:2 * yp * PW3 + 2 * xp + 1, :]
         for yp in range(Hp3) for xp in range(Wp3)], axis=1)             # (1, S3*64)
    h = jnp.dot(flat.astype(jnp.bfloat16), wf1[...],
                preferred_element_type=jnp.float32)
    h = jnp.maximum(h + bf1[...], 0.0)
    o = jnp.dot(h.astype(jnp.bfloat16), wf2[...],
                preferred_element_type=jnp.float32)
    o_ref[0] = o + bf2[...]


def fused_cnn(cols, prep, *, H, W):
    """cols: (N, H*W, 27) bf16 im2col of the input image.  Returns (N, fc_out_pad) f32."""
    N, M1, K1 = cols.shape
    C1 = prep["w1c"].shape[1]
    C2 = prep["w2c"].shape[1]
    C3 = prep["w3c"].shape[1]
    FC1 = prep["wf1"].shape[1]
    fcp = prep["wf2"].shape[1]
    Hp1, Wp1 = H // 2, W // 2
    Hp2, Wp2 = Hp1 // 2, Wp1 // 2
    Hp3, Wp3 = Hp2 // 2, Wp2 // 2
    PW2, PW3 = Wp1 + 2, Wp2 + 2
    S3 = Hp3 * Wp3

    weights = (prep["w1c"], prep["b1c"], prep["w2c"], prep["b2c"],
               prep["w3c"], prep["b3c"], prep["wf1"], prep["bf1"],
               prep["wf2"], prep["bf2"])

    def resident(a):                      # weights: constant index_map -> VMEM-resident
        zeros = (0,) * a.ndim
        return pl.BlockSpec(a.shape, lambda n, _z=zeros: _z)

    flops = 2 * N * (M1 * K1 * C1 + Hp1 * PW2 * 9 * C1 * C2
                     + Hp2 * PW3 * 9 * C2 * C3 + S3 * C3 * FC1 + FC1 * fcp)
    bytes_accessed = int(cols.size * 2 + sum(int(w.size) * w.dtype.itemsize
                                             for w in weights) + N * fcp * 4)

    out = pl.pallas_call(
        functools.partial(_fused_cnn_kernel, H=H, W=W),
        out_shape=jax.ShapeDtypeStruct((N, 1, fcp), jnp.float32),
        grid=(N,),
        in_specs=[pl.BlockSpec((1, M1, K1), lambda n: (n, 0, 0))]
                 + [resident(w) for w in weights],
        out_specs=pl.BlockSpec((1, 1, fcp), lambda n: (n, 0, 0)),
        scratch_shapes=[
            pltpu.VMEM(((Hp1 + 3) * PW2, C1), jnp.float32),     # slab2 (padded)
            pltpu.VMEM(((Hp2 + 3) * PW3, C2), jnp.float32),     # slab3 (padded)
            pltpu.VMEM((M1 - W, C1), jnp.float32),              # ps1 (pool scratch)
            pltpu.VMEM((Hp1 * PW2 - PW2, C2), jnp.float32),     # ps2 (pool scratch)
        ],
        compiler_params=pltpu.CompilerParams(
            dimension_semantics=("parallel",)),                  # megacore over batch
        cost_estimate=pl.CostEstimate(flops=flops, transcendentals=0,
                                      bytes_accessed=bytes_accessed),
    )(cols, *weights)
    return out.reshape(N, fcp)


# ---------------------------------------------------------------------------
# Host-side prep: im2col for conv1, BN folding, weight layout
# ---------------------------------------------------------------------------
def _im2col3x3(x_nhwc):
    N, H, W, C = x_nhwc.shape
    xp = jnp.pad(x_nhwc, ((0, 0), (1, 1), (1, 1), (0, 0)))
    cols = jnp.concatenate(
        [xp[:, dy:dy + H, dx:dx + W, :] for dy in range(3) for dx in range(3)],
        axis=-1)                                    # taps ordered (dy, dx, cin)
    return cols.reshape(N, H * W, 9 * C)


def init_params(key, width, height, captcha_len):
    keys = jax.random.split(key, 5)

    def conv_p(k, cin, cout):
        k1, k2, k3, k4, k5, k6 = jax.random.split(k, 6)
        return dict(
            w=0.1 * jax.random.normal(k1, (cout, cin, 3, 3), jnp.float32),
            b=0.1 * jax.random.normal(k2, (cout,), jnp.float32),
            gamma=1.0 + 0.1 * jax.random.normal(k3, (cout,), jnp.float32),
            beta=0.1 * jax.random.normal(k4, (cout,), jnp.float32),
            mean=0.1 * jax.random.normal(k5, (cout,), jnp.float32),
            var=1.0 + 0.1 * jnp.abs(jax.random.normal(k6, (cout,), jnp.float32)),
        )

    def fc_p(k, fin, fout):
        k1, k2 = jax.random.split(k)
        return dict(w=0.05 * jax.random.normal(k1, (fin, fout), jnp.float32),
                    b=0.05 * jax.random.normal(k2, (fout,), jnp.float32))

    feat_dim = (width // 8) * (height // 8) * 64
    return dict(conv1=conv_p(keys[0], 3, 32),
                conv2=conv_p(keys[1], 32, 64),
                conv3=conv_p(keys[2], 64, 64),
                fc1=fc_p(keys[3], feat_dim, 1024),
                fc2=fc_p(keys[4], 1024, captcha_len * (10 + 26 + 26)))


def prepare_params(params, width, height, eps=1e-5):
    """Fold BN into conv weights, cast MXU operands to bf16, pre-permute fc1 rows
    (CHW -> HWC flatten order), pad fc2 to a 128-lane multiple."""
    prep = {}
    for i, name in enumerate(("conv1", "conv2", "conv3"), start=1):
        p = params[name]
        cout = p["w"].shape[0]
        scale = p["gamma"] / jnp.sqrt(p["var"] + eps)                   # (Cout,)
        w_mat = jnp.transpose(p["w"], (2, 3, 1, 0)).reshape(-1, cout)    # (9*Cin, Cout)
        prep[f"w{i}c"] = (w_mat * scale[None, :]).astype(jnp.bfloat16)
        prep[f"b{i}c"] = (((p["b"] - p["mean"]) * scale + p["beta"])
                          .reshape(1, cout).astype(jnp.float32))

    Hp, Wp, C = height // 8, width // 8, 64
    S = Hp * Wp
    w1 = params["fc1"]["w"].reshape(C, S, -1).transpose(1, 0, 2).reshape(S * C, -1)
    prep["wf1"] = w1.astype(jnp.bfloat16)
    prep["bf1"] = params["fc1"]["b"].reshape(1, -1).astype(jnp.float32)

    w2, b2 = params["fc2"]["w"], params["fc2"]["b"]
    n_pad = (-w2.shape[1]) % 128                   # lane-dense FC2 output
    prep["wf2"] = jnp.pad(w2, ((0, 0), (0, n_pad))).astype(jnp.bfloat16)
    prep["bf2"] = jnp.pad(b2, (0, n_pad)).reshape(1, -1).astype(jnp.float32)
    return prep


def cnn_forward(prep, x_nchw, *, n_out):
    # Dropout layers are identity at inference time; BN folded into conv weights.
    x = jnp.transpose(x_nchw, (0, 2, 3, 1))                  # NCHW -> NHWC
    N, H, W, _ = x.shape
    cols = _im2col3x3(x).astype(jnp.bfloat16)                # (N, H*W, 27)
    out = fused_cnn(cols, prep, H=H, W=W)
    return out[:, :n_out]                                    # drop lane padding


# ---------------------------------------------------------------------------
# Pure-JAX fp32 reference (for a loose numerical sanity check)
# ---------------------------------------------------------------------------
def reference_forward(params, x_nchw, eps=1e-5):
    x = x_nchw
    for name in ("conv1", "conv2", "conv3"):
        p = params[name]
        x = lax.conv_general_dilated(x, p["w"], (1, 1), ((1, 1), (1, 1)),
                                     dimension_numbers=("NCHW", "OIHW", "NCHW"))
        x = x + p["b"][None, :, None, None]
        scale = (p["gamma"] / jnp.sqrt(p["var"] + eps))[None, :, None, None]
        x = (x - p["mean"][None, :, None, None]) * scale + p["beta"][None, :, None, None]
        x = jnp.maximum(x, 0.0)
        N, C, H, W = x.shape
        x = x.reshape(N, C, H // 2, 2, W // 2, 2).max(axis=(3, 5))
    flat = x.reshape(x.shape[0], -1)                         # CHW flatten (PyTorch order)
    h = jnp.maximum(flat @ params["fc1"]["w"] + params["fc1"]["b"], 0.0)
    return h @ params["fc2"]["w"] + params["fc2"]["b"]


if __name__ == "__main__":
    width = height = 16
    captcha_len = 4
    batch = 2
    n_out = captcha_len * (10 + 26 + 26)          # 248

    key = jax.random.PRNGKey(0)
    kp, kx = jax.random.split(key)
    params = init_params(kp, width, height, captcha_len)
    prep = prepare_params(params, width, height)
    x = jax.random.normal(kx, (batch, 3, height, width), jnp.float32)

    fwd = jax.jit(cnn_forward, static_argnames=("n_out",))
    out = fwd(prep, x, n_out=n_out)
    jax.block_until_ready(out)

    assert out.shape == (batch, n_out) and out.dtype == jnp.float32

    # bf16 MXU operands inside the kernel => loose tolerance vs. fp32 reference.
    ref = reference_forward(params, x)
    err = float(jnp.max(jnp.abs(out - ref)))
    assert err < 0.3, f"max abs err {err}"

    print("KERNEL_OK")
</pallas_src>

<mosaic_0001>
module attributes {stable_mosaic.version = 11 : i64} {
  func.func @_fused_cnn_kernel(%arg0: i32, %arg1: memref<1x256x27xbf16, #tpu.memory_space<vmem>>, %arg2: memref<27x32xbf16, #tpu.memory_space<vmem>>, %arg3: memref<1x32xf32, #tpu.memory_space<vmem>>, %arg4: memref<288x64xbf16, #tpu.memory_space<vmem>>, %arg5: memref<1x64xf32, #tpu.memory_space<vmem>>, %arg6: memref<576x64xbf16, #tpu.memory_space<vmem>>, %arg7: memref<1x64xf32, #tpu.memory_space<vmem>>, %arg8: memref<256x1024xbf16, #tpu.memory_space<vmem>>, %arg9: memref<1x1024xf32, #tpu.memory_space<vmem>>, %arg10: memref<1024x256xbf16, #tpu.memory_space<vmem>>, %arg11: memref<1x256xf32, #tpu.memory_space<vmem>>, %arg12: memref<1x1x256xf32, #tpu.memory_space<vmem>>, %arg13: memref<110x32xf32, #tpu.memory_space<vmem>>, %arg14: memref<42x64xf32, #tpu.memory_space<vmem>>, %arg15: memref<240x32xf32, #tpu.memory_space<vmem>>, %arg16: memref<70x64xf32, #tpu.memory_space<vmem>>) attributes {dimension_semantics = [#tpu.dimension_semantics<parallel>], iteration_bounds = array<i64: 2>, scalar_prefetch = 0 : i64, scratch_operands = 4 : i64, tpu.core_type = #tpu.core_type<tc>, window_params = [{transform_indices = @transform_0, window_bounds = array<i64: 1, 256, 27>}, {pipeline_mode = #tpu.pipeline_mode<synchronous>, transform_indices = @transform_1, window_bounds = array<i64: 27, 32>}, {pipeline_mode = #tpu.pipeline_mode<synchronous>, transform_indices = @transform_2, window_bounds = array<i64: 1, 32>}, {pipeline_mode = #tpu.pipeline_mode<synchronous>, transform_indices = @transform_3, window_bounds = array<i64: 288, 64>}, {pipeline_mode = #tpu.pipeline_mode<synchronous>, transform_indices = @transform_4, window_bounds = array<i64: 1, 64>}, {pipeline_mode = #tpu.pipeline_mode<synchronous>, transform_indices = @transform_5, window_bounds = array<i64: 576, 64>}, {pipeline_mode = #tpu.pipeline_mode<synchronous>, transform_indices = @transform_6, window_bounds = array<i64: 1, 64>}, {pipeline_mode = #tpu.pipeline_mode<synchronous>, transform_indices = @transform_7, window_bounds = array<i64: 256, 1024>}, {pipeline_mode = #tpu.pipeline_mode<synchronous>, transform_indices = @transform_8, window_bounds = array<i64: 1, 1024>}, {pipeline_mode = #tpu.pipeline_mode<synchronous>, transform_indices = @transform_9, window_bounds = array<i64: 1024, 256>}, {pipeline_mode = #tpu.pipeline_mode<synchronous>, transform_indices = @transform_10, window_bounds = array<i64: 1, 256>}, {transform_indices = @transform_11, window_bounds = array<i64: 1, 1, 256>}]} {
    %c0 = arith.constant 0 : index
    %c0_0 = arith.constant 0 : index
    %c0_1 = arith.constant 0 : index
    %0 = vector.load %arg1[%c0, %c0_0, %c0_1] : memref<1x256x27xbf16, #tpu.memory_space<vmem>>, vector<1x256x27xbf16>
    %1 = vector.shape_cast %0 : vector<1x256x27xbf16> to vector<256x27xbf16>
    %c0_2 = arith.constant 0 : index
    %c0_3 = arith.constant 0 : index
    %2 = vector.load %arg2[%c0_2, %c0_3] : memref<27x32xbf16, #tpu.memory_space<vmem>>, vector<27x32xbf16>
    %cst = arith.constant dense<0.000000e+00> : vector<256x32xf32>
    %3 = tpu.matmul %1, %2, %cst {dimension_numbers = #tpu.dot_dimension_numbers<[1], [0], [0], [1], [0, 0, 1, 1], [], []>} : vector<256x27xbf16>, vector<27x32xbf16>, vector<256x32xf32> -> vector<256x32xf32>
    %c0_4 = arith.constant 0 : index
    %c0_5 = arith.constant 0 : index
    %4 = vector.load %arg3[%c0_4, %c0_5] : memref<1x32xf32, #tpu.memory_space<vmem>>, vector<1x32xf32>
    %5 = vector.broadcast %4 : vector<1x32xf32> to vector<256x32xf32>
    %6 = arith.addf %3, %5 : vector<256x32xf32>
    %cst_6 = arith.constant 0.000000e+00 : f32
    %7 = vector.broadcast %cst_6 : f32 to vector<256x32xf32>
    %8 = arith.maximumf %6, %7 : vector<256x32xf32>
    %9 = vector.extract_strided_slice %8 {offsets = [0, 0], sizes = [240, 32], strides = [1, 1]} : vector<256x32xf32> to vector<240x32xf32>
    %10 = vector.extract_strided_slice %8 {offsets = [16, 0], sizes = [240, 32], strides = [1, 1]} : vector<256x32xf32> to vector<240x32xf32>
    %11 = arith.maximumf %9, %10 : vector<240x32xf32>
    %12 = vector.extract_strided_slice %11 {offsets = [0, 0], sizes = [239, 32], strides = [1, 1]} : vector<240x32xf32> to vector<239x32xf32>
    %13 = vector.extract_strided_slice %11 {offsets = [1, 0], sizes = [239, 32], strides = [1, 1]} : vector<240x32xf32> to vector<239x32xf32>
    %14 = arith.maximumf %12, %13 : vector<239x32xf32>
    %c0_7 = arith.constant 0 : index
    %c0_8 = arith.constant 0 : index
    %15 = vector.load %arg15[%c0_7, %c0_8] : memref<240x32xf32, #tpu.memory_space<vmem>>, vector<239x32xf32>
    tpu.vector_store %arg15[%c0_7, %c0_8], %14 {strides = array<i32>} : memref<240x32xf32, #tpu.memory_space<vmem>>, vector<239x32xf32>,
    %cst_9 = arith.constant 0.000000e+00 : f32
    %16 = vector.broadcast %cst_9 : f32 to vector<110x32xf32>
    %c0_10 = arith.constant 0 : index
    %c0_11 = arith.constant 0 : index
    %17 = vector.load %arg13[%c0_10, %c0_11] : memref<110x32xf32, #tpu.memory_space<vmem>>, vector<110x32xf32>
    tpu.vector_store %arg13[%c0_10, %c0_11], %16 {strides = array<i32>} : memref<110x32xf32, #tpu.memory_space<vmem>>, vector<110x32xf32>,
    %c0_12 = arith.constant 0 : index
    %c0_13 = arith.constant 0 : index
    %18 = tpu.strided_load %arg15[%c0_12, %c0_13] {strides = array<i32: 2, 1>} : memref<240x32xf32, #tpu.memory_space<vmem>>, vector<8x32xf32>
    %c11 = arith.constant 11 : index
    %c0_14 = arith.constant 0 : index
    %19 = vector.load %arg13[%c11, %c0_14] : memref<110x32xf32, #tpu.memory_space<vmem>>, vector<8x32xf32>
    tpu.vector_store %arg13[%c11, %c0_14], %18 {strides = array<i32>} : memref<110x32xf32, #tpu.memory_space<vmem>>, vector<8x32xf32>,
    %c32 = arith.constant 32 : index
    %c0_15 = arith.constant 0 : index
    %20 = tpu.strided_load %arg15[%c32, %c0_15] {strides = array<i32: 2, 1>} : memref<240x32xf32, #tpu.memory_space<vmem>>, vector<8x32xf32>
    %c21 = arith.constant 21 : index
    %c0_16 = arith.constant 0 : index
    %21 = vector.load %arg13[%c21, %c0_16] : memref<110x32xf32, #tpu.memory_space<vmem>>, vector<8x32xf32>
    tpu.vector_store %arg13[%c21, %c0_16], %20 {strides = array<i32>} : memref<110x32xf32, #tpu.memory_space<vmem>>, vector<8x32xf32>,
    %c64 = arith.constant 64 : index
    %c0_17 = arith.constant 0 : index
    %22 = tpu.strided_load %arg15[%c64, %c0_17] {strides = array<i32: 2, 1>} : memref<240x32xf32, #tpu.memory_space<vmem>>, vector<8x32xf32>
    %c31 = arith.constant 31 : index
    %c0_18 = arith.constant 0 : index
    %23 = vector.load %arg13[%c31, %c0_18] : memref<110x32xf32, #tpu.memory_space<vmem>>, vector<8x32xf32>
    tpu.vector_store %arg13[%c31, %c0_18], %22 {strides = array<i32>} : memref<110x32xf32, #tpu.memory_space<vmem>>, vector<8x32xf32>,
    %c96 = arith.constant 96 : index
    %c0_19 = arith.constant 0 : index
    %24 = tpu.strided_load %arg15[%c96, %c0_19] {strides = array<i32: 2, 1>} : memref<240x32xf32, #tpu.memory_space<vmem>>, vector<8x32xf32>
    %c41 = arith.constant 41 : index
    %c0_20 = arith.constant 0 : index
    %25 = vector.load %arg13[%c41, %c0_20] : memref<110x32xf32, #tpu.memory_space<vmem>>, vector<8x32xf32>
    tpu.vector_store %arg13[%c41, %c0_20], %24 {strides = array<i32>} : memref<110x32xf32, #tpu.memory_space<vmem>>, vector<8x32xf32>,
    %c128 = arith.constant 128 : index
    %c0_21 = arith.constant 0 : index
    %26 = tpu.strided_load %arg15[%c128, %c0_21] {strides = array<i32: 2, 1>} : memref<240x32xf32, #tpu.memory_space<vmem>>, vector<8x32xf32>
    %c51 = arith.constant 51 : index
    %c0_22 = arith.constant 0 : index
    %27 = vector.load %arg13[%c51, %c0_22] : memref<110x32xf32, #tpu.memory_space<vmem>>, vector<8x32xf32>
    tpu.vector_store %arg13[%c51, %c0_22], %26 {strides = array<i32>} : memref<110x32xf32, #tpu.memory_space<vmem>>, vector<8x32xf32>,
    %c160 = arith.constant 160 : index
    %c0_23 = arith.constant 0 : index
    %28 = tpu.strided_load %arg15[%c160, %c0_23] {strides = array<i32: 2, 1>} : memref<240x32xf32, #tpu.memory_space<vmem>>, vector<8x32xf32>
    %c61 = arith.constant 61 : index
    %c0_24 = arith.constant 0 : index
    %29 = vector.load %arg13[%c61, %c0_24] : memref<110x32xf32, #tpu.memory_space<vmem>>, vector<8x32xf32>
    tpu.vector_store %arg13[%c61, %c0_24], %28 {strides = array<i32>} : memref<110x32xf32, #tpu.memory_space<vmem>>, vector<8x32xf32>,
    %c192 = arith.constant 192 : index
    %c0_25 = arith.constant 0 : index
    %30 = tpu.strided_load %arg15[%c192, %c0_25] {strides = array<i32: 2, 1>} : memref<240x32xf32, #tpu.memory_space<vmem>>, vector<8x32xf32>
    %c71 = arith.constant 71 : index
    %c0_26 = arith.constant 0 : index
    %31 = vector.load %arg13[%c71, %c0_26] : memref<110x32xf32, #tpu.memory_space<vmem>>, vector<8x32xf32>
    tpu.vector_store %arg13[%c71, %c0_26], %30 {strides = array<i32>} : memref<110x32xf32, #tpu.memory_space<vmem>>, vector<8x32xf32>,
    %c224 = arith.constant 224 : index
    %c0_27 = arith.constant 0 : index
    %32 = tpu.strided_load %arg15[%c224, %c0_27] {strides = array<i32: 2, 1>} : memref<240x32xf32, #tpu.memory_space<vmem>>, vector<8x32xf32>
    %c81 = arith.constant 81 : index
    %c0_28 = arith.constant 0 : index
    %33 = vector.load %arg13[%c81, %c0_28] : memref<110x32xf32, #tpu.memory_space<vmem>>, vector<8x32xf32>
    tpu.vector_store %arg13[%c81, %c0_28], %32 {strides = array<i32>} : memref<110x32xf32, #tpu.memory_space<vmem>>, vector<8x32xf32>,
    %c0_29 = arith.constant 0 : index
    %c0_30 = arith.constant 0 : index
    %34 = vector.load %arg13[%c0_29, %c0_30] : memref<110x32xf32, #tpu.memory_space<vmem>>, vector<80x32xf32>
    %35 = arith.truncf %34 : vector<80x32xf32> to vector<80x32xbf16>
    %c1 = arith.constant 1 : index
    %c0_31 = arith.constant 0 : index
    %36 = vector.load %arg13[%c1, %c0_31] : memref<110x32xf32, #tpu.memory_space<vmem>>, vector<80x32xf32>
    %37 = arith.truncf %36 : vector<80x32xf32> to vector<80x32xbf16>
    %c2 = arith.constant 2 : index
    %c0_32 = arith.constant 0 : index
    %38 = vector.load %arg13[%c2, %c0_32] : memref<110x32xf32, #tpu.memory_space<vmem>>, vector<80x32xf32>
    %39 = arith.truncf %38 : vector<80x32xf32> to vector<80x32xbf16>
    %c10 = arith.constant 10 : index
    %c0_33 = arith.constant 0 : index
    %40 = vector.load %arg13[%c10, %c0_33] : memref<110x32xf32, #tpu.memory_space<vmem>>, vector<80x32xf32>
    %41 = arith.truncf %40 : vector<80x32xf32> to vector<80x32xbf16>
    %c11_34 = arith.constant 11 : index
    %c0_35 = arith.constant 0 : index
    %42 = vector.load %arg13[%c11_34, %c0_35] : memref<110x32xf32, #tpu.memory_space<vmem>>, vector<80x32xf32>
    %43 = arith.truncf %42 : vector<80x32xf32> to vector<80x32xbf16>
    %c12 = arith.constant 12 : index
    %c0_36 = arith.constant 0 : index
    %44 = vector.load %arg13[%c12, %c0_36] : memref<110x32xf32, #tpu.memory_space<vmem>>, vector<80x32xf32>
    %45 = arith.truncf %44 : vector<80x32xf32> to vector<80x32xbf16>
    %c20 = arith.constant 20 : index
    %c0_37 = arith.constant 0 : index
    %46 = vector.load %arg13[%c20, %c0_37] : memref<110x32xf32, #tpu.memory_space<vmem>>, vector<80x32xf32>
    %47 = arith.truncf %46 : vector<80x32xf32> to vector<80x32xbf16>
    %c21_38 = arith.constant 21 : index
    %c0_39 = arith.constant 0 : index
    %48 = vector.load %arg13[%c21_38, %c0_39] : memref<110x32xf32, #tpu.memory_space<vmem>>, vector<80x32xf32>
    %49 = arith.truncf %48 : vector<80x32xf32> to vector<80x32xbf16>
    %c22 = arith.constant 22 : index
    %c0_40 = arith.constant 0 : index
    %50 = vector.load %arg13[%c22, %c0_40] : memref<110x32xf32, #tpu.memory_space<vmem>>, vector<80x32xf32>
    %51 = arith.truncf %50 : vector<80x32xf32> to vector<80x32xbf16>
    %52 = tpu.concatenate %35, %37, %39, %41, %43, %45, %47, %49, %51 in 1 : vector<80x32xbf16>, vector<80x32xbf16>, vector<80x32xbf16>, vector<80x32xbf16>, vector<80x32xbf16>, vector<80x32xbf16>, vector<80x32xbf16>, vector<80x32xbf16>, vector<80x32xbf16> -> vector<80x288xbf16>
    %c0_41 = arith.constant 0 : index
    %c0_42 = arith.constant 0 : index
    %53 = vector.load %arg4[%c0_41, %c0_42] : memref<288x64xbf16, #tpu.memory_space<vmem>>, vector<288x64xbf16>
    %cst_43 = arith.constant dense<0.000000e+00> : vector<80x64xf32>
    %54 = tpu.matmul %52, %53, %cst_43 {dimension_numbers = #tpu.dot_dimension_numbers<[1], [0], [0], [1], [0, 0, 1, 1], [], []>} : vector<80x288xbf16>, vector<288x64xbf16>, vector<80x64xf32> -> vector<80x64xf32>
    %c0_44 = arith.constant 0 : index
    %c0_45 = arith.constant 0 : index
    %55 = vector.load %arg5[%c0_44, %c0_45] : memref<1x64xf32, #tpu.memory_space<vmem>>, vector<1x64xf32>
    %56 = vector.broadcast %55 : vector<1x64xf32> to vector<80x64xf32>
    %57 = arith.addf %54, %56 : vector<80x64xf32>
    %cst_46 = arith.constant 0.000000e+00 : f32
    %58 = vector.broadcast %cst_46 : f32 to vector<80x64xf32>
    %59 = arith.maximumf %57, %58 : vector<80x64xf32>
    %60 = vector.extract_strided_slice %59 {offsets = [0, 0], sizes = [70, 64], strides = [1, 1]} : vector<80x64xf32> to vector<70x64xf32>
    %61 = vector.extract_strided_slice %59 {offsets = [10, 0], sizes = [70, 64], strides = [1, 1]} : vector<80x64xf32> to vector<70x64xf32>
    %62 = arith.maximumf %60, %61 : vector<70x64xf32>
    %63 = vector.extract_strided_slice %62 {offsets = [0, 0], sizes = [69, 64], strides = [1, 1]} : vector<70x64xf32> to vector<69x64xf32>
    %64 = vector.extract_strided_slice %62 {offsets = [1, 0], sizes = [69, 64], strides = [1, 1]} : vector<70x64xf32> to vector<69x64xf32>
    %65 = arith.maximumf %63, %64 : vector<69x64xf32>
    %c0_47 = arith.constant 0 : index
    %c0_48 = arith.constant 0 : index
    %66 = vector.load %arg16[%c0_47, %c0_48] : memref<70x64xf32, #tpu.memory_space<vmem>>, vector<69x64xf32>
    tpu.vector_store %arg16[%c0_47, %c0_48], %65 {strides = array<i32>} : memref<70x64xf32, #tpu.memory_space<vmem>>, vector<69x64xf32>,
    %cst_49 = arith.constant 0.000000e+00 : f32
    %67 = vector.broadcast %cst_49 : f32 to vector<42x64xf32>
    %c0_50 = arith.constant 0 : index
    %c0_51 = arith.constant 0 : index
    %68 = vector.load %arg14[%c0_50, %c0_51] : memref<42x64xf32, #tpu.memory_space<vmem>>, vector<42x64xf32>
    tpu.vector_store %arg14[%c0_50, %c0_51], %67 {strides = array<i32>} : memref<42x64xf32, #tpu.memory_space<vmem>>, vector<42x64xf32>,
    %c0_52 = arith.constant 0 : index
    %c0_53 = arith.constant 0 : index
    %69 = tpu.strided_load %arg16[%c0_52, %c0_53] {strides = array<i32: 2, 1>} : memref<70x64xf32, #tpu.memory_space<vmem>>, vector<4x64xf32>
    %c7 = arith.constant 7 : index
    %c0_54 = arith.constant 0 : index
    %70 = vector.load %arg14[%c7, %c0_54] : memref<42x64xf32, #tpu.memory_space<vmem>>, vector<4x64xf32>
    tpu.vector_store %arg14[%c7, %c0_54], %69 {strides = array<i32>} : memref<42x64xf32, #tpu.memory_space<vmem>>, vector<4x64xf32>,
    %c20_55 = arith.constant 20 : index
    %c0_56 = arith.constant 0 : index
    %71 = tpu.strided_load %arg16[%c20_55, %c0_56] {strides = array<i32: 2, 1>} : memref<70x64xf32, #tpu.memory_space<vmem>>, vector<4x64xf32>
    %c13 = arith.constant 13 : index
    %c0_57 = arith.constant 0 : index
    %72 = vector.load %arg14[%c13, %c0_57] : memref<42x64xf32, #tpu.memory_space<vmem>>, vector<4x64xf32>
    tpu.vector_store %arg14[%c13, %c0_57], %71 {strides = array<i32>} : memref<42x64xf32, #tpu.memory_space<vmem>>, vector<4x64xf32>,
    %c40 = arith.constant 40 : index
    %c0_58 = arith.constant 0 : index
    %73 = tpu.strided_load %arg16[%c40, %c0_58] {strides = array<i32: 2, 1>} : memref<70x64xf32, #tpu.memory_space<vmem>>, vector<4x64xf32>
    %c19 = arith.constant 19 : index
    %c0_59 = arith.constant 0 : index
    %74 = vector.load %arg14[%c19, %c0_59] : memref<42x64xf32, #tpu.memory_space<vmem>>, vector<4x64xf32>
    tpu.vector_store %arg14[%c19, %c0_59], %73 {strides = array<i32>} : memref<42x64xf32, #tpu.memory_space<vmem>>, vector<4x64xf32>,
    %c60 = arith.constant 60 : index
    %c0_60 = arith.constant 0 : index
    %75 = tpu.strided_load %arg16[%c60, %c0_60] {strides = array<i32: 2, 1>} : memref<70x64xf32, #tpu.memory_space<vmem>>, vector<4x64xf32>
    %c25 = arith.constant 25 : index
    %c0_61 = arith.constant 0 : index
    %76 = vector.load %arg14[%c25, %c0_61] : memref<42x64xf32, #tpu.memory_space<vmem>>, vector<4x64xf32>
    tpu.vector_store %arg14[%c25, %c0_61], %75 {strides = array<i32>} : memref<42x64xf32, #tpu.memory_space<vmem>>, vector<4x64xf32>,
    %c0_62 = arith.constant 0 : index
    %c0_63 = arith.constant 0 : index
    %77 = vector.load %arg14[%c0_62, %c0_63] : memref<42x64xf32, #tpu.memory_space<vmem>>, vector<24x64xf32>
    %78 = arith.truncf %77 : vector<24x64xf32> to vector<24x64xbf16>
    %c1_64 = arith.constant 1 : index
    %c0_65 = arith.constant 0 : index
    %79 = vector.load %arg14[%c1_64, %c0_65] : memref<42x64xf32, #tpu.memory_space<vmem>>, vector<24x64xf32>
    %80 = arith.truncf %79 : vector<24x64xf32> to vector<24x64xbf16>
    %c2_66 = arith.constant 2 : index
    %c0_67 = arith.constant 0 : index
    %81 = vector.load %arg14[%c2_66, %c0_67] : memref<42x64xf32, #tpu.memory_space<vmem>>, vector<24x64xf32>
    %82 = arith.truncf %81 : vector<24x64xf32> to vector<24x64xbf16>
    %c6 = arith.constant 6 : index
    %c0_68 = arith.constant 0 : index
    %83 = vector.load %arg14[%c6, %c0_68] : memref<42x64xf32, #tpu.memory_space<vmem>>, vector<24x64xf32>
    %84 = arith.truncf %83 : vector<24x64xf32> to vector<24x64xbf16>
    %c7_69 = arith.constant 7 : index
    %c0_70 = arith.constant 0 : index
    %85 = vector.load %arg14[%c7_69, %c0_70] : memref<42x64xf32, #tpu.memory_space<vmem>>, vector<24x64xf32>
    %86 = arith.truncf %85 : vector<24x64xf32> to vector<24x64xbf16>
    %c8 = arith.constant 8 : index
    %c0_71 = arith.constant 0 : index
    %87 = vector.load %arg14[%c8, %c0_71] : memref<42x64xf32, #tpu.memory_space<vmem>>, vector<24x64xf32>
    %88 = arith.truncf %87 : vector<24x64xf32> to vector<24x64xbf16>
    %c12_72 = arith.constant 12 : index
    %c0_73 = arith.constant 0 : index
    %89 = vector.load %arg14[%c12_72, %c0_73] : memref<42x64xf32, #tpu.memory_space<vmem>>, vector<24x64xf32>
    %90 = arith.truncf %89 : vector<24x64xf32> to vector<24x64xbf16>
    %c13_74 = arith.constant 13 : index
    %c0_75 = arith.constant 0 : index
    %91 = vector.load %arg14[%c13_74, %c0_75] : memref<42x64xf32, #tpu.memory_space<vmem>>, vector<24x64xf32>
    %92 = arith.truncf %91 : vector<24x64xf32> to vector<24x64xbf16>
    %c14 = arith.constant 14 : index
    %c0_76 = arith.constant 0 : index
    %93 = vector.load %arg14[%c14, %c0_76] : memref<42x64xf32, #tpu.memory_space<vmem>>, vector<24x64xf32>
    %94 = arith.truncf %93 : vector<24x64xf32> to vector<24x64xbf16>
    %95 = tpu.concatenate %78, %80, %82, %84, %86, %88, %90, %92, %94 in 1 : vector<24x64xbf16>, vector<24x64xbf16>, vector<24x64xbf16>, vector<24x64xbf16>, vector<24x64xbf16>, vector<24x64xbf16>, vector<24x64xbf16>, vector<24x64xbf16>, vector<24x64xbf16> -> vector<24x576xbf16>
    %c0_77 = arith.constant 0 : index
    %c0_78 = arith.constant 0 : index
    %96 = vector.load %arg6[%c0_77, %c0_78] : memref<576x64xbf16, #tpu.memory_space<vmem>>, vector<576x64xbf16>
    %cst_79 = arith.constant dense<0.000000e+00> : vector<24x64xf32>
    %97 = tpu.matmul %95, %96, %cst_79 {dimension_numbers = #tpu.dot_dimension_numbers<[1], [0], [0], [1], [0, 0, 1, 1], [], []>} : vector<24x576xbf16>, vector<576x64xbf16>, vector<24x64xf32> -> vector<24x64xf32>
    %c0_80 = arith.constant 0 : index
    %c0_81 = arith.constant 0 : index
    %98 = vector.load %arg7[%c0_80, %c0_81] : memref<1x64xf32, #tpu.memory_space<vmem>>, vector<1x64xf32>
    %99 = vector.broadcast %98 : vector<1x64xf32> to vector<24x64xf32>
    %100 = arith.addf %97, %99 : vector<24x64xf32>
    %cst_82 = arith.constant 0.000000e+00 : f32
    %101 = vector.broadcast %cst_82 : f32 to vector<24x64xf32>
    %102 = arith.maximumf %100, %101 : vector<24x64xf32>
    %103 = vector.extract_strided_slice %102 {offsets = [0, 0], sizes = [18, 64], strides = [1, 1]} : vector<24x64xf32> to vector<18x64xf32>
    %104 = vector.extract_strided_slice %102 {offsets = [6, 0], sizes = [18, 64], strides = [1, 1]} : vector<24x64xf32> to vector<18x64xf32>
    %105 = arith.maximumf %103, %104 : vector<18x64xf32>
    %106 = vector.extract_strided_slice %105 {offsets = [0, 0], sizes = [17, 64], strides = [1, 1]} : vector<18x64xf32> to vector<17x64xf32>
    %107 = vector.extract_strided_slice %105 {offsets = [1, 0], sizes = [17, 64], strides = [1, 1]} : vector<18x64xf32> to vector<17x64xf32>
    %108 = arith.maximumf %106, %107 : vector<17x64xf32>
    %109 = vector.extract_strided_slice %108 {offsets = [0, 0], sizes = [1, 64], strides = [1, 1]} : vector<17x64xf32> to vector<1x64xf32>
    %110 = vector.extract_strided_slice %108 {offsets = [2, 0], sizes = [1, 64], strides = [1, 1]} : vector<17x64xf32> to vector<1x64xf32>
    %111 = vector.extract_strided_slice %108 {offsets = [12, 0], sizes = [1, 64], strides = [1, 1]} : vector<17x64xf32> to vector<1x64xf32>
    %112 = vector.extract_strided_slice %108 {offsets = [14, 0], sizes = [1, 64], strides = [1, 1]} : vector<17x64xf32> to vector<1x64xf32>
    %113 = tpu.concatenate %109, %110, %111, %112 in 1 : vector<1x64xf32>, vector<1x64xf32>, vector<1x64xf32>, vector<1x64xf32> -> vector<1x256xf32>
    %114 = arith.truncf %113 : vector<1x256xf32> to vector<1x256xbf16>
    %c0_83 = arith.constant 0 : index
    %c0_84 = arith.constant 0 : index
    %115 = vector.load %arg8[%c0_83, %c0_84] : memref<256x1024xbf16, #tpu.memory_space<vmem>>, vector<256x1024xbf16>
    %cst_85 = arith.constant dense<0.000000e+00> : vector<1x1024xf32>
    %116 = tpu.matmul %114, %115, %cst_85 {dimension_numbers = #tpu.dot_dimension_numbers<[1], [0], [0], [1], [0, 0, 1, 1], [], []>} : vector<1x256xbf16>, vector<256x1024xbf16>, vector<1x1024xf32> -> vector<1x1024xf32>
    %c0_86 = arith.constant 0 : index
    %c0_87 = arith.constant 0 : index
    %117 = vector.load %arg9[%c0_86, %c0_87] : memref<1x1024xf32, #tpu.memory_space<vmem>>, vector<1x1024xf32>
    %118 = arith.addf %116, %117 : vector<1x1024xf32>
    %cst_88 = arith.constant 0.000000e+00 : f32
    %119 = vector.broadcast %cst_88 : f32 to vector<1x1024xf32>
    %120 = arith.maximumf %118, %119 : vector<1x1024xf32>
    %121 = arith.truncf %120 : vector<1x1024xf32> to vector<1x1024xbf16>
    %c0_89 = arith.constant 0 : index
    %c0_90 = arith.constant 0 : index
    %122 = vector.load %arg10[%c0_89, %c0_90] : memref<1024x256xbf16, #tpu.memory_space<vmem>>, vector<1024x256xbf16>
    %cst_91 = arith.constant dense<0.000000e+00> : vector<1x256xf32>
    %123 = tpu.matmul %121, %122, %cst_91 {dimension_numbers = #tpu.dot_dimension_numbers<[1], [0], [0], [1], [0, 0, 1, 1], [], []>} : vector<1x1024xbf16>, vector<1024x256xbf16>, vector<1x256xf32> -> vector<1x256xf32>
    %c0_92 = arith.constant 0 : index
    %c0_93 = arith.constant 0 : index
    %124 = vector.load %arg11[%c0_92, %c0_93] : memref<1x256xf32, #tpu.memory_space<vmem>>, vector<1x256xf32>
    %125 = arith.addf %123, %124 : vector<1x256xf32>
    %c0_94 = arith.constant 0 : index
    %c0_95 = arith.constant 0 : index
    %c0_96 = arith.constant 0 : index
    %126 = vector.load %arg12[%c0_94, %c0_95, %c0_96] : memref<1x1x256xf32, #tpu.memory_space<vmem>>, vector<1x1x256xf32>
    %127 = vector.shape_cast %126 : vector<1x1x256xf32> to vector<1x256xf32>
    %128 = vector.shape_cast %125 : vector<1x256xf32> to vector<1x1x256xf32>
    tpu.vector_store %arg12[%c0_94, %c0_95, %c0_96], %128 {strides = array<i32>} : memref<1x1x256xf32, #tpu.memory_space<vmem>>, vector<1x1x256xf32>,
    return
  }
  func.func @transform_0(%arg0: i32) -> (i32, i32, i32) {
    %c0_i32 = arith.constant 0 : i32
    %c0_i32_0 = arith.constant 0 : i32
    %c0_i32_1 = arith.constant 0 : i32
    return %arg0, %c0_i32, %c0_i32_0 : i32, i32, i32
  }
  func.func @transform_1(%arg0: i32) -> (i32, i32) {
    %c0_i32 = arith.constant 0 : i32
    %c0_i32_0 = arith.constant 0 : i32
    %c0_i32_1 = arith.constant 0 : i32
    return %c0_i32, %c0_i32_0 : i32, i32
  }
  func.func @transform_2(%arg0: i32) -> (i32, i32) {
    %c0_i32 = arith.constant 0 : i32
    %c0_i32_0 = arith.constant 0 : i32
    %c0_i32_1 = arith.constant 0 : i32
    return %c0_i32, %c0_i32_0 : i32, i32
  }
  func.func @transform_3(%arg0: i32) -> (i32, i32) {
    %c0_i32 = arith.constant 0 : i32
    %c0_i32_0 = arith.constant 0 : i32
    %c0_i32_1 = arith.constant 0 : i32
    return %c0_i32, %c0_i32_0 : i32, i32
  }
  func.func @transform_4(%arg0: i32) -> (i32, i32) {
    %c0_i32 = arith.constant 0 : i32
    %c0_i32_0 = arith.constant 0 : i32
    %c0_i32_1 = arith.constant 0 : i32
    return %c0_i32, %c0_i32_0 : i32, i32
  }
  func.func @transform_5(%arg0: i32) -> (i32, i32) {
    %c0_i32 = arith.constant 0 : i32
    %c0_i32_0 = arith.constant 0 : i32
    %c0_i32_1 = arith.constant 0 : i32
    return %c0_i32, %c0_i32_0 : i32, i32
  }
  func.func @transform_6(%arg0: i32) -> (i32, i32) {
    %c0_i32 = arith.constant 0 : i32
    %c0_i32_0 = arith.constant 0 : i32
    %c0_i32_1 = arith.constant 0 : i32
    return %c0_i32, %c0_i32_0 : i32, i32
  }
  func.func @transform_7(%arg0: i32) -> (i32, i32) {
    %c0_i32 = arith.constant 0 : i32
    %c0_i32_0 = arith.constant 0 : i32
    %c0_i32_1 = arith.constant 0 : i32
    return %c0_i32, %c0_i32_0 : i32, i32
  }
  func.func @transform_8(%arg0: i32) -> (i32, i32) {
    %c0_i32 = arith.constant 0 : i32
    %c0_i32_0 = arith.constant 0 : i32
    %c0_i32_1 = arith.constant 0 : i32
    return %c0_i32, %c0_i32_0 : i32, i32
  }
  func.func @transform_9(%arg0: i32) -> (i32, i32) {
    %c0_i32 = arith.constant 0 : i32
    %c0_i32_0 = arith.constant 0 : i32
    %c0_i32_1 = arith.constant 0 : i32
    return %c0_i32, %c0_i32_0 : i32, i32
  }
  func.func @transform_10(%arg0: i32) -> (i32, i32) {
    %c0_i32 = arith.constant 0 : i32
    %c0_i32_0 = arith.constant 0 : i32
    %c0_i32_1 = arith.constant 0 : i32
    return %c0_i32, %c0_i32_0 : i32, i32
  }
  func.func @transform_11(%arg0: i32) -> (i32, i32, i32) {
    %c0_i32 = arith.constant 0 : i32
    %c0_i32_0 = arith.constant 0 : i32
    %c0_i32_1 = arith.constant 0 : i32
    return %arg0, %c0_i32, %c0_i32_0 : i32, i32, i32
  }
}

</mosaic_0001>

<llo_original>
// kernel: cnn_forward.1
$region0: #{cnn_forward.1}
  #allocation0 [shape = 'u32[]', space=smem, size = 0x4, offset = 0x4, fixed_abs, tag = 'smem constant byte address 0x4 - core index']
  #allocation1 [shape = 'u32[72,128]{1,0:T(1,128)}', space=vmem, size = 0x9000, scoped, tag = 'internal scratch']
  #allocation2 [shape = 'f32[110,32]{1,0:T(8,128)}', space=vmem, size = 0xe000, scoped, tag = 'scratch operand']
  #allocation3 [shape = 'f32[42,64]{1,0:T(8,128)}', space=vmem, size = 0x6000, scoped, tag = 'scratch operand']
  #allocation4 [shape = 'f32[240,32]{1,0:T(8,128)}', space=vmem, size = 0x1e000, scoped, tag = 'scratch operand']
  #allocation5 [shape = 'f32[70,64]{1,0:T(8,128)}', space=vmem, size = 0x9000, scoped, tag = 'scratch operand']
  %s0 = inlined_call_operand.vmem [shape: bf16[2,256,27], index: 0, kind: input, shape index: {}]
  %s1 = inlined_call_operand.vmem [shape: bf16[27,32], index: 1, kind: input, shape index: {}]
  %s2 = inlined_call_operand.vmem [shape: f32[1,32], index: 2, kind: input, shape index: {}]
  %s3 = inlined_call_operand.vmem [shape: bf16[288,64], index: 3, kind: input, shape index: {}]
  %s4 = inlined_call_operand.vmem [shape: f32[1,64], index: 4, kind: input, shape index: {}]
  %s5 = inlined_call_operand.vmem [shape: bf16[576,64], index: 5, kind: input, shape index: {}]
  %s6 = inlined_call_operand.vmem [shape: f32[1,64], index: 6, kind: input, shape index: {}]
  %s7 = inlined_call_operand.vmem [shape: bf16[256,1024], index: 7, kind: input, shape index: {}]
  %s8 = inlined_call_operand.vmem [shape: f32[1,1024], index: 8, kind: input, shape index: {}]
  %s9 = inlined_call_operand.vmem [shape: bf16[1024,256], index: 9, kind: input, shape index: {}]
  %s10 = inlined_call_operand.vmem [shape: f32[1,256], index: 10, kind: input, shape index: {}]
  %s11 = inlined_call_operand.vmem [shape: f32[2,1,256], index: 11, kind: output, shape index: {}]
  %s12 = sld [smem:[#allocation0]]
  $region77: #{cnn_forward.1} parent=0
    _
  %s14 = ssub.s32 1, %s12
  %s15 = scalar_select 0, %s14, %s12
  loop: start=0, step=1, limit=4
  $region2: #{cnn_forward.1} parent=0 // loop_pre_header
    _
  $region3: #{cnn_forward.1} parent=0 // loop_header
    %s17 = sphi 0, %s21
    %p18 = scmp.ge.s32.totalorder %s17, 4
    %s27 = sphi 0, %s29
    %s30 = sphi 0, %s27
    %s31 = sphi 0, %s30
    %s47 = sphi 0, %s31
    %s51 = sphi 0, %s51
    %s53 = sphi 0, %s51
    %s54 = sphi 0, %s53
    %s68 = sphi 0, %s54
    %s72 = sphi 0, %s72
    %s74 = sphi 0, %s72
    %s75 = sphi 0, %s74
    %s89 = sphi 0, %s75
    %s93 = sphi 0, %s93
    %s95 = sphi 0, %s93
    %s96 = sphi 0, %s95
    %s110 = sphi 0, %s96
    %s114 = sphi 0, %s114
    %s116 = sphi 0, %s114
    %s117 = sphi 0, %s116
    %s131 = sphi 0, %s117
    %s135 = sphi 0, %s135
    %s137 = sphi 0, %s135
    %s138 = sphi 0, %s137
    %s152 = sphi 0, %s138
    %s156 = sphi 0, %s156
    %s158 = sphi 0, %s156
    %s159 = sphi 0, %s158
    %s173 = sphi 0, %s159
    %s177 = sphi 0, %s177
    %s179 = sphi 0, %s177
    %s180 = sphi 0, %s179
    %s194 = sphi 0, %s180
    %s198 = sphi 0, %s198
    %s200 = sphi 0, %s198
    %s201 = sphi 0, %s200
    %s215 = sphi 0, %s201
    %s219 = sphi 0, %s219
    %s221 = sphi 0, %s219
    %s222 = sphi 0, %s221
    %s236 = sphi 0, %s222
    %s240 = sphi 0, %s240
    %s242 = sphi 0, %s240
    %s243 = sphi 0, %s242
    %s257 = sphi 0, %s243
    %s263 = sphi 0, %s265
    %s266 = sphi 0, %s263
    %s267 = sphi 0, %s266
    %s283 = sphi 0, %s267
  $region4: #{cnn_forward.1} parent=0 // loop_header_branch
    %20 = sbr.rel (%p18) target = $region8
  $region5: #{cnn_forward.1} parent=0 // loop_body
    %s22 = ssub.s32 %s17, 1
    %s23 = ssub.s32 %s17, 2
    %s24 = sadd.s32 %s17, 1
    %s25 = ssub.s32 %s17, %s24
    %p26 = scmp.eq.s32.totalorder %s25, 0
    %s28 = sadd.s32 %s27, 1
    %s29 = scalar_select %p26, %s27, %s28
    %p32 = pneg %p26
    %p33 = scmp.eq.s32.totalorder %s17, 1
    %p34 = por %p32, %p33
    %p35 = scmp.ne.s32.totalorder %s27, %s30
    %p36 = scmp.eq.s32.totalorder %s17, 0
    %p37 = por %p35, %p36
    %p38 = scmp.ne.s32.totalorder %s27, %s30
    %p39 = scmp.eq.s32.totalorder %s22, 1
    %p40 = por %p38, %p39
    %p41 = scmp.ne.s32.totalorder %s30, %s31
    %p42 = scmp.eq.s32.totalorder %s22, 0
    %p43 = por %p41, %p42
    %p44 = scmp.ne.s32.totalorder %s30, %s31
    %p45 = scmp.eq.s32.totalorder %s23, 1
    %p46 = por %p44, %p45
    %p48 = scmp.ne.s32.totalorder %s31, %s47
    %p49 = scmp.eq.s32.totalorder %s23, 0
    %p50 = por %p48, %p49
    %s52 = sadd.s32 %s51, 1
    %p55 = scmp.eq.s32.totalorder %s17, 1
    %p56 = scmp.ne.s32.totalorder %s51, %s53
    %p57 = scmp.eq.s32.totalorder %s17, 0
    %p58 = por %p56, %p57
    %p59 = scmp.ne.s32.totalorder %s51, %s53
    %p60 = scmp.eq.s32.totalorder %s22, 1
    %p61 = por %p59, %p60
    %p62 = scmp.ne.s32.totalorder %s53, %s54
    %p63 = scmp.eq.s32.totalorder %s22, 0
    %p64 = por %p62, %p63
    %p65 = scmp.ne.s32.totalorder %s53, %s54
    %p66 = scmp.eq.s32.totalorder %s23, 1
    %p67 = por %p65, %p66
    %p69 = scmp.ne.s32.totalorder %s54, %s68
    %p70 = scmp.eq.s32.totalorder %s23, 0
    %p71 = por %p69, %p70
    %s73 = sadd.s32 %s72, 1
    %p76 = scmp.eq.s32.totalorder %s17, 1
    %p77 = scmp.ne.s32.totalorder %s72, %s74
    %p78 = scmp.eq.s32.totalorder %s17, 0
    %p79 = por %p77, %p78
    %p80 = scmp.ne.s32.totalorder %s72, %s74
    %p81 = scmp.eq.s32.totalorder %s22, 1
    %p82 = por %p80, %p81
    %p83 = scmp.ne.s32.totalorder %s74, %s75
    %p84 = scmp.eq.s32.totalorder %s22, 0
    %p85 = por %p83, %p84
    %p86 = scmp.ne.s32.totalorder %s74, %s75
    %p87 = scmp.eq.s32.totalorder %s23, 1
    %p88 = por %p86, %p87
    %p90 = scmp.ne.s32.totalorder %s75, %s89
    %p91 = scmp.eq.s32.totalorder %s23, 0
    %p92 = por %p90, %p91
    %s94 = sadd.s32 %s93, 1
    %p97 = scmp.eq.s32.totalorder %s17, 1
    %p98 = scmp.ne.s32.totalorder %s93, %s95
    %p99 = scmp.eq.s32.totalorder %s17, 0
    %p100 = por %p98, %p99
    %p101 = scmp.ne.s32.totalorder %s93, %s95
    %p102 = scmp.eq.s32.totalorder %s22, 1
    %p103 = por %p101, %p102
    %p104 = scmp.ne.s32.totalorder %s95, %s96
    %p105 = scmp.eq.s32.totalorder %s22, 0
    %p106 = por %p104, %p105
    %p107 = scmp.ne.s32.totalorder %s95, %s96
    %p108 = scmp.eq.s32.totalorder %s23, 1
    %p109 = por %p107, %p108
    %p111 = scmp.ne.s32.totalorder %s96, %s110
    %p112 = scmp.eq.s32.totalorder %s23, 0
    %p113 = por %p111, %p112
    %s115 = sadd.s32 %s114, 1
    %p118 = scmp.eq.s32.totalorder %s17, 1
    %p119 = scmp.ne.s32.totalorder %s114, %s116
    %p120 = scmp.eq.s32.totalorder %s17, 0
    %p121 = por %p119, %p120
    %p122 = scmp.ne.s32.totalorder %s114, %s116
    %p123 = scmp.eq.s32.totalorder %s22, 1
    %p124 = por %p122, %p123
    %p125 = scmp.ne.s32.totalorder %s116, %s117
    %p126 = scmp.eq.s32.totalorder %s22, 0
    %p127 = por %p125, %p126
    %p128 = scmp.ne.s32.totalorder %s116, %s117
    %p129 = scmp.eq.s32.totalorder %s23, 1
    %p130 = por %p128, %p129
    %p132 = scmp.ne.s32.totalorder %s117, %s131
    %p133 = scmp.eq.s32.totalorder %s23, 0
    %p134 = por %p132, %p133
    %s136 = sadd.s32 %s135, 1
    %p139 = scmp.eq.s32.totalorder %s17, 1
    %p140 = scmp.ne.s32.totalorder %s135, %s137
    %p141 = scmp.eq.s32.totalorder %s17, 0
    %p142 = por %p140, %p141
    %p143 = scmp.ne.s32.totalorder %s135, %s137
    %p144 = scmp.eq.s32.totalorder %s22, 1
    %p145 = por %p143, %p144
    %p146 = scmp.ne.s32.totalorder %s137, %s138
    %p147 = scmp.eq.s32.totalorder %s22, 0
    %p148 = por %p146, %p147
    %p149 = scmp.ne.s32.totalorder %s137, %s138
    %p150 = scmp.eq.s32.totalorder %s23, 1
    %p151 = por %p149, %p150
    %p153 = scmp.ne.s32.totalorder %s138, %s152
    %p154 = scmp.eq.s32.totalorder %s23, 0
    %p155 = por %p153, %p154
    %s157 = sadd.s32 %s156, 1
    %p160 = scmp.eq.s32.totalorder %s17, 1
    %p161 = scmp.ne.s32.totalorder %s156, %s158
    %p162 = scmp.eq.s32.totalorder %s17, 0
    %p163 = por %p161, %p162
    %p164 = scmp.ne.s32.totalorder %s156, %s158
    %p165 = scmp.eq.s32.totalorder %s22, 1
    %p166 = por %p164, %p165
    %p167 = scmp.ne.s32.totalorder %s158, %s159
    %p168 = scmp.eq.s32.totalorder %s22, 0
    %p169 = por %p167, %p168
    %p170 = scmp.ne.s32.totalorder %s158, %s159
    %p171 = scmp.eq.s32.totalorder %s23, 1
    %p172 = por %p170, %p171
    %p174 = scmp.ne.s32.totalorder %s159, %s173
    %p175 = scmp.eq.s32.totalorder %s23, 0
    %p176 = por %p174, %p175
    %s178 = sadd.s32 %s177, 1
    %p181 = scmp.eq.s32.totalorder %s17, 1
    %p182 = scmp.ne.s32.totalorder %s177, %s179
    %p183 = scmp.eq.s32.totalorder %s17, 0
    %p184 = por %p182, %p183
    %p185 = scmp.ne.s32.totalorder %s177, %s179
    %p186 = scmp.eq.s32.totalorder %s22, 1
    %p187 = por %p185, %p186
    %p188 = scmp.ne.s32.totalorder %s179, %s180
    %p189 = scmp.eq.s32.totalorder %s22, 0
    %p190 = por %p188, %p189
    %p191 = scmp.ne.s32.totalorder %s179, %s180
    %p192 = scmp.eq.s32.totalorder %s23, 1
    %p193 = por %p191, %p192
    %p195 = scmp.ne.s32.totalorder %s180, %s194
    %p196 = scmp.eq.s32.totalorder %s23, 0
    %p197 = por %p195, %p196
    %s199 = sadd.s32 %s198, 1
    %p202 = scmp.eq.s32.totalorder %s17, 1
    %p203 = scmp.ne.s32.totalorder %s198, %s200
    %p204 = scmp.eq.s32.totalorder %s17, 0
    %p205 = por %p203, %p204
    %p206 = scmp.ne.s32.totalorder %s198, %s200
    %p207 = scmp.eq.s32.totalorder %s22, 1
    %p208 = por %p206, %p207
    %p209 = scmp.ne.s32.totalorder %s200, %s201
    %p210 = scmp.eq.s32.totalorder %s22, 0
    %p211 = por %p209, %p210
    %p212 = scmp.ne.s32.totalorder %s200, %s201
    %p213 = scmp.eq.s32.totalorder %s23, 1
    %p214 = por %p212, %p213
    %p216 = scmp.ne.s32.totalorder %s201, %s215
    %p217 = scmp.eq.s32.totalorder %s23, 0
    %p218 = por %p216, %p217
    %s220 = sadd.s32 %s219, 1
    %p223 = scmp.eq.s32.totalorder %s17, 1
    %p224 = scmp.ne.s32.totalorder %s219, %s221
    %p225 = scmp.eq.s32.totalorder %s17, 0
    %p226 = por %p224, %p225
    %p227 = scmp.ne.s32.totalorder %s219, %s221
    %p228 = scmp.eq.s32.totalorder %s22, 1
    %p229 = por %p227, %p228
    %p230 = scmp.ne.s32.totalorder %s221, %s222
    %p231 = scmp.eq.s32.totalorder %s22, 0
    %p232 = por %p230, %p231
    %p233 = scmp.ne.s32.totalorder %s221, %s222
    %p234 = scmp.eq.s32.totalorder %s23, 1
    %p235 = por %p233, %p234
    %p237 = scmp.ne.s32.totalorder %s222, %s236
    %p238 = scmp.eq.s32.totalorder %s23, 0
    %p239 = por %p237, %p238
    %s241 = sadd.s32 %s240, 1
    %p244 = scmp.eq.s32.totalorder %s17, 1
    %p245 = scmp.ne.s32.totalorder %s240, %s242
    %p246 = scmp.eq.s32.totalorder %s17, 0
    %p247 = por %p245, %p246
    %p248 = scmp.ne.s32.totalorder %s240, %s242
    %p249 = scmp.eq.s32.totalorder %s22, 1
    %p250 = por %p248, %p249
    %p251 = scmp.ne.s32.totalorder %s242, %s243
    %p252 = scmp.eq.s32.totalorder %s22, 0
    %p253 = por %p251, %p252
    %p254 = scmp.ne.s32.totalorder %s242, %s243
    %p255 = scmp.eq.s32.totalorder %s23, 1
    %p256 = por %p254, %p255
    %p258 = scmp.ne.s32.totalorder %s243, %s257
    %p259 = scmp.eq.s32.totalorder %s23, 0
    %p260 = por %p258, %p259
    %s261 = ssub.s32 %s17, %s24
    %p262 = scmp.eq.s32.totalorder %s261, 0
    %s264 = sadd.s32 %s263, 1
    %s265 = scalar_select %p262, %s263, %s264
    %p268 = pneg %p262
    %p269 = scmp.eq.s32.totalorder %s17, 1
    %p270 = por %p268, %p269
    %p271 = scmp.ne.s32.totalorder %s263, %s266
    %p272 = scmp.eq.s32.totalorder %s17, 0
    %p273 = por %p271, %p272
    %p274 = scmp.ne.s32.totalorder %s263, %s266
    %p275 = scmp.eq.s32.totalorder %s22, 1
    %p276 = por %p274, %p275
    %p277 = scmp.ne.s32.totalorder %s266, %s267
    %p278 = scmp.eq.s32.totalorder %s22, 0
    %p279 = por %p277, %p278
    %p280 = scmp.ne.s32.totalorder %s266, %s267
    %p281 = scmp.eq.s32.totalorder %s23, 1
    %p282 = por %p280, %p281
    %p284 = scmp.ne.s32.totalorder %s267, %s283
    %p285 = scmp.eq.s32.totalorder %s23, 0
    %p286 = por %p284, %p285
    %p287 = scmp.le.s32.totalorder 1, %s17
    %p288 = scmp.lt.s32.totalorder %s17, 3
    %p289 = pnand %p287, %p288
    %p290 = pneg %p289
    // Predicated region
    $region9: #{cnn_forward.1} parent=5 // pred_check
      _
    $region10: #{cnn_forward.1} parent=5 // pred_check_branch
      %292 = sbr.rel (%p289) target = $region12
    $region11: #{cnn_forward.1} parent=5 // pred_region
      %s293 = ssub.s32 %s17, 1
      // Predicated region
      $region13: #{cnn_forward.1} parent=11 // pred_check
        %p294 = pneg %p64
      $region14: #{cnn_forward.1} parent=11 // pred_check_branch
        %296 = sbr.rel (%p294) target = $region16
      $region15: #{cnn_forward.1} parent=11 // pred_region
        _
      $region16: #{cnn_forward.1} parent=11 // pred_fallthru
        _
      // Predicated region
      $region17: #{cnn_forward.1} parent=11 // pred_check
        %p297 = pneg %p85
      $region18: #{cnn_forward.1} parent=11 // pred_check_branch
        %299 = sbr.rel (%p297) target = $region20
      $region19: #{cnn_forward.1} parent=11 // pred_region
        _
      $region20: #{cnn_forward.1} parent=11 // pred_fallthru
        _
      // Predicated region
      $region21: #{cnn_forward.1} parent=11 // pred_check
        %p300 = pneg %p106
      $region22: #{cnn_forward.1} parent=11 // pred_check_branch
        %302 = sbr.rel (%p300) target = $region24
      $region23: #{cnn_forward.1} parent=11 // pred_region
        _
      $region24: #{cnn_forward.1} parent=11 // pred_fallthru
        _
      // Predicated region
      $region25: #{cnn_forward.1} parent=11 // pred_check
        %p303 = pneg %p127
      $region26: #{cnn_forward.1} parent=11 // pred_check_branch
        %305 = sbr.rel (%p303) target = $region28
      $region27: #{cnn_forward.1} parent=11 // pred_region
        _
      $region28: #{cnn_forward.1} parent=11 // pred_fallthru
        _
      // Predicated region
      $region29: #{cnn_forward.1} parent=11 // pred_check
        %p306 = pneg %p148
      $region30: #{cnn_forward.1} parent=11 // pred_check_branch
        %308 = sbr.rel (%p306) target = $region32
      $region31: #{cnn_forward.1} parent=11 // pred_region
        _
      $region32: #{cnn_forward.1} parent=11 // pred_fallthru
        _
      // Predicated region
      $region33: #{cnn_forward.1} parent=11 // pred_check
        %p309 = pneg %p169
      $region34: #{cnn_forward.1} parent=11 // pred_check_branch
        %311 = sbr.rel (%p309) target = $region36
      $region35: #{cnn_forward.1} parent=11 // pred_region
        _
      $region36: #{cnn_forward.1} parent=11 // pred_fallthru
        _
      // Predicated region
      $region37: #{cnn_forward.1} parent=11 // pred_check
        %p312 = pneg %p190
      $region38: #{cnn_forward.1} parent=11 // pred_check_branch
        %314 = sbr.rel (%p312) target = $region40
      $region39: #{cnn_forward.1} parent=11 // pred_region
        _
      $region40: #{cnn_forward.1} parent=11 // pred_fallthru
        _
      // Predicated region
      $region41: #{cnn_forward.1} parent=11 // pred_check
        %p315 = pneg %p211
      $region42: #{cnn_forward.1} parent=11 // pred_check_branch
        %317 = sbr.rel (%p315) target = $region44
      $region43: #{cnn_forward.1} parent=11 // pred_region
        _
      $region44: #{cnn_forward.1} parent=11 // pred_fallthru
        _
      // Predicated region
      $region45: #{cnn_forward.1} parent=11 // pred_check
        %p318 = pneg %p232
      $region46: #{cnn_forward.1} parent=11 // pred_check_branch
        %320 = sbr.rel (%p318) target = $region48
      $region47: #{cnn_forward.1} parent=11 // pred_region
        _
      $region48: #{cnn_forward.1} parent=11 // pred_fallthru
        _
      // Predicated region
      $region49: #{cnn_forward.1} parent=11 // pred_check
        %p321 = pneg %p253
      $region50: #{cnn_forward.1} parent=11 // pred_check_branch
        %323 = sbr.rel (%p321) target = $region52
      $region51: #{cnn_forward.1} parent=11 // pred_region
        _
      $region52: #{cnn_forward.1} parent=11 // pred_fallthru
        _
    $region12: #{cnn_forward.1} parent=5 // pred_fallthru
      _
    %p324 = scmp.lt.s32.totalorder %s17, 2
    // Predicated region
    $region53: #{cnn_forward.1} parent=5 // pred_check
      %p325 = pneg %p324
    $region54: #{cnn_forward.1} parent=5 // pred_check_branch
      %327 = sbr.rel (%p325) target = $region56
    $region55: #{cnn_forward.1} parent=5 // pred_region
      // Predicated region
      $region57: #{cnn_forward.1} parent=55 // pred_check
        %p328 = pneg %p37
      $region58: #{cnn_forward.1} parent=55 // pred_check_branch
        %330 = sbr.rel (%p328) target = $region60
      $region59: #{cnn_forward.1} parent=55 // pred_region
        %p331 = scmp.lt.s32.totalorder %s17, 1
        %s332 = scalar_select %p331, %s17, 1
        %s333 = smul.addr %s332, 32
        %s334 = smul.addr %s333, 4
        %s335 = scalar_lea.vmem %s0, %s334
      $region60: #{cnn_forward.1} parent=55 // pred_fallthru
        _
    $region56: #{cnn_forward.1} parent=5 // pred_fallthru
      _
    %p336 = scmp.le.s32.totalorder 1, %s17
    %p337 = scmp.lt.s32.totalorder %s17, 3
    %p338 = pnand %p336, %p337
    %p339 = pneg %p338
    // Predicated region
    $region61: #{cnn_forward.1} parent=5 // pred_check
      _
    $region62: #{cnn_forward.1} parent=5 // pred_check_branch
      %341 = sbr.rel (%p338) target = $region64
    $region63: #{cnn_forward.1} parent=5 // pred_region
      %s342 = ssub.s32 %s17, 1
      %p343 = scmp.lt.s32.totalorder %s22, 1
      %s344 = scalar_select %p343, %s22, 1
      %s345 = smul.addr %s344, 32
      %s346 = smul.addr %s345, 4
      %s347 = scalar_lea.vmem %s0, %s346
      %p348 = pneg %p43
      %p349 = pneg %p40
      %p350 = pneg %p64
      %p351 = pneg %p61
      %p352 = pneg %p85
      %p353 = pneg %p82
      %p354 = pneg %p106
      %p355 = pneg %p103
      %p356 = pneg %p127
      %p357 = pneg %p124
      %p358 = pneg %p148
      %p359 = pneg %p145
      %p360 = pneg %p169
      %p361 = pneg %p166
      %p362 = pneg %p190
      %p363 = pneg %p187
      %p364 = pneg %p211
      %p365 = pneg %p208
      %p366 = pneg %p232
      %p367 = pneg %p229
      %p368 = pneg %p253
      %p369 = pneg %p250
      %p370 = pneg %p279
      %p371 = pneg %p276
      %p372 = scmp.lt.s32.totalorder %s22, 1
      %s373 = scalar_select %p372, %s22, 1
      %s374 = smul.addr %s373, 2
      %s375 = scalar_lea.vmem %s11, %s374
      %p376 = scmp.lt.s32.totalorder %s22, 1
      %s377 = scalar_select %p376, %s22, 1
      %s378 = smul.addr %s377, 32
      %s379 = smul.addr %s378, 4
      %s380 = scalar_lea.vmem %s0, %s379
      %p381 = scmp.lt.s32.totalorder %s22, 1
      %s382 = scalar_select %p381, %s22, 1
      %s383 = smul.addr %s382, 2
      %s384 = scalar_lea.vmem %s11, %s383
      %v386 = vld [vmem:[%s380] sm:$0xf]
      %v387 = vld [vmem:[%s380 + $0x4] sm:$0xf]
      %v388 = vld [vmem:[%s380 + $0x8] sm:$0xf]
      %v389 = vld [vmem:[%s380 + $0xc] sm:$0xf]
      %v390 = vld [vmem:[%s380 + $0x10] sm:$0xf]
      %v391 = vld [vmem:[%s380 + $0x14] sm:$0xf]
      %v392 = vld [vmem:[%s380 + $0x18] sm:$0xf]
      %v393 = vld [vmem:[%s380 + $0x1c] sm:$0xf]
      %v394 = vld [vmem:[%s380 + $0x20] sm:$0xf]
      %v395 = vld [vmem:[%s380 + $0x24] sm:$0xf]
      %v396 = vld [vmem:[%s380 + $0x28] sm:$0xf]
      %v397 = vld [vmem:[%s380 + $0x2c] sm:$0xf]
      %v398 = vld [vmem:[%s380 + $0x30] sm:$0xf]
      %v399 = vld [vmem:[%s380 + $0x34] sm:$0xf]
      %v400 = vld [vmem:[%s380 + $0x38] sm:$0xf]
      %v401 = vld [vmem:[%s380 + $0x3c] sm:$0xf]
      %v402 = vld [vmem:[%s380 + $0x40] sm:$0xf]
      %v403 = vld [vmem:[%s380 + $0x44] sm:$0xf]
      %v404 = vld [vmem:[%s380 + $0x48] sm:$0xf]
      %v405 = vld [vmem:[%s380 + $0x4c] sm:$0xf]
      %v406 = vld [vmem:[%s380 + $0x50] sm:$0xf]
      %v407 = vld [vmem:[%s380 + $0x54] sm:$0xf]
      %v408 = vld [vmem:[%s380 + $0x58] sm:$0xf]
      %v409 = vld [vmem:[%s380 + $0x5c] sm:$0xf]
      %v410 = vld [vmem:[%s380 + $0x60] sm:$0xf]
      %v411 = vld [vmem:[%s380 + $0x64] sm:$0xf]
      %v412 = vld [vmem:[%s380 + $0x68] sm:$0xf]
      %v413 = vld [vmem:[%s380 + $0x6c] sm:$0xf]
      %v414 = vld [vmem:[%s380 + $0x70] sm:$0xf]
      %v415 = vld [vmem:[%s380 + $0x74] sm:$0xf]
      %v416 = vld [vmem:[%s380 + $0x78] sm:$0xf]
      %v417 = vld [vmem:[%s380 + $0x7c] sm:$0xf]
      %v418 = vld [vmem:[%s1] sm:$0xf]
      %v419 = vld [vmem:[%s1 + $0x4] sm:$0xf]
      %v420 = vld [vmem:[%s1 + $0x8] sm:$0xf]
      %v421 = vld [vmem:[%s1 + $0xc] sm:$0x3]
      %v422 = vld [vmem:[%s2] sm:$0x1]
      %v424 = vperm.slane %v422, 0
      %v458 = vunpack.c.l.b16 %v386
      %v459 = vunpack.c.l.b16 %v387
      %v460 = vunpack.c.l.b16 %v388
      %v461 = vunpack.c.l.b16 %v389
      %v462 = vunpack.c.l.b16 %v390
      %v463 = vunpack.c.l.b16 %v391
      %v464 = vunpack.c.l.b16 %v392
      %v465 = vunpack.c.l.b16 %v393
      %v466 = vunpack.c.l.b16 %v394
      %v467 = vunpack.c.l.b16 %v395
      %v468 = vunpack.c.l.b16 %v396
      %v469 = vunpack.c.l.b16 %v397
      %v470 = vunpack.c.l.b16 %v398
      %v471 = vunpack.c.l.b16 %v399
      %v472 = vunpack.c.l.b16 %v400
      %v473 = vunpack.c.l.b16 %v401
      %v474 = vunpack.c.l.b16 %v402
      %v475 = vunpack.c.l.b16 %v403
      %v476 = vunpack.c.l.b16 %v404
      %v477 = vunpack.c.l.b16 %v405
      %v478 = vunpack.c.l.b16 %v406
      %v479 = vunpack.c.l.b16 %v407
      %v480 = vunpack.c.l.b16 %v408
      %v481 = vunpack.c.l.b16 %v409
      %v482 = vunpack.c.l.b16 %v410
      %v483 = vunpack.c.l.b16 %v411
      %v484 = vunpack.c.l.b16 %v412
      %v485 = vunpack.c.l.b16 %v413
      %v486 = vunpack.c.l.b16 %v414
      %v487 = vunpack.c.l.b16 %v415
      %v488 = vunpack.c.l.b16 %v416
      %v489 = vunpack.c.l.b16 %v417
      %v490 = vpack.c.b16 %v459, %v458
      %v491 = vpack.c.b16 %v461, %v460
      %v492 = vpack.c.b16 %v463, %v462
      %v493 = vpack.c.b16 %v465, %v464
      %v494 = vpack.c.b16 %v467, %v466
      %v495 = vpack.c.b16 %v469, %v468
      %v496 = vpack.c.b16 %v471, %v470
      %v497 = vpack.c.b16 %v473, %v472
      %v498 = vpack.c.b16 %v475, %v474
      %v499 = vpack.c.b16 %v477, %v476
      %v500 = vpack.c.b16 %v479, %v478
      %v501 = vpack.c.b16 %v481, %v480
      %v502 = vpack.c.b16 %v483, %v482
      %v503 = vpack.c.b16 %v485, %v484
      %v504 = vpack.c.b16 %v487, %v486
      %v505 = vpack.c.b16 %v489, %v488
      %v510 = vunpack.c.l.b16 %v418
      %v511 = vunpack.c.l.b16 %v419
      %v512 = vunpack.c.l.b16 %v420
      %v513 = vunpack.c.l.b16 %v421
      %v514 = vpack.c.b16 %v511, %v510
      %v515 = vpack.c.b16 %v513, %v512
      %vm517 = vcmask 220160
      %v519 = vsel %vm517, %v490, 0
      %v522 = vsel %vm517, %v491, 0
      %v525 = vsel %vm517, %v492, 0
      %v528 = vsel %vm517, %v493, 0
      %v531 = vsel %vm517, %v494, 0
      %v534 = vsel %vm517, %v495, 0
      %v537 = vsel %vm517, %v496, 0
      %v540 = vsel %vm517, %v497, 0
      %v543 = vsel %vm517, %v498, 0
      %v546 = vsel %vm517, %v499, 0
      %v549 = vsel %vm517, %v500, 0
      %v552 = vsel %vm517, %v501, 0
      %v555 = vsel %vm517, %v502, 0
      %v558 = vsel %vm517, %v503, 0
      %v561 = vsel %vm517, %v504, 0
      %v564 = vsel %vm517, %v505, 0
      %vm566 = vcmask 1044480
      %vm567 = vcmask 1045504
      %v568 = vsel %vm566, 4294967295, 65535
      %v569 = vsel %vm567, %v568, 0
      %v571 = vand.u32 %v515, %v569
      %573 = vmatpush.bf16.msra.mxu0 0
      %574 = vmatpush.bf16.msra.mxu0 0
      %575 = vmatpush.bf16.msra.mxu0 0
      %576 = vmatpush.bf16.msra.mxu0 0
      %577 = vmatpush.bf16.msra.mxu0 0
      %578 = vmatpush.bf16.msra.mxu0 0
      %579 = vmatpush.bf16.msra.mxu0 %v571
      %580 = vmatpush.bf16.msra.mxu0 %v514
      %581 = vmatmul.bf16.gmra.mxu0 %v519
      %v582 = vpop.f32.mrf.mxu0
      %v583 = vadd.f32 %v424, %v582
      %v584 = vpop.f32.mrf.mxu0
      %v585 = vadd.f32 %v424, %v584
      %586 = vmatmul.bf16.gmra.mxu0 %v522
      %v587 = vpop.f32.mrf.mxu0
      %v588 = vadd.f32 %v424, %v587
      %v589 = vpop.f32.mrf.mxu0
      %v590 = vadd.f32 %v424, %v589
      %591 = vmatmul.bf16.gmra.mxu0 %v525
      %v592 = vpop.f32.mrf.mxu0
      %v593 = vadd.f32 %v424, %v592
      %v594 = vpop.f32.mrf.mxu0
      %v595 = vadd.f32 %v424, %v594
      %596 = vmatmul.bf16.gmra.mxu0 %v528
      %v597 = vpop.f32.mrf.mxu0
      %v598 = vadd.f32 %v424, %v597
      %v599 = vpop.f32.mrf.mxu0
      %v600 = vadd.f32 %v424, %v599
      %601 = vmatmul.bf16.gmra.mxu0 %v531
      %v602 = vpop.f32.mrf.mxu0
      %v603 = vadd.f32 %v424, %v602
      %v604 = vpop.f32.mrf.mxu0
      %v605 = vadd.f32 %v424, %v604
      %606 = vmatmul.bf16.gmra.mxu0 %v534
      %v607 = vpop.f32.mrf.mxu0
      %v608 = vadd.f32 %v424, %v607
      %v609 = vpop.f32.mrf.mxu0
      %v610 = vadd.f32 %v424, %v609
      %611 = vmatmul.bf16.gmra.mxu0 %v537
      %v612 = vpop.f32.mrf.mxu0
      %v613 = vadd.f32 %v424, %v612
      %v614 = vpop.f32.mrf.mxu0
      %v615 = vadd.f32 %v424, %v614
      %616 = vmatmul.bf16.gmra.mxu0 %v540
      %v617 = vpop.f32.mrf.mxu0
      %v618 = vadd.f32 %v424, %v617
      %v619 = vpop.f32.mrf.mxu0
      %v620 = vadd.f32 %v424, %v619
      %621 = vmatmul.bf16.gmra.mxu0 %v543
      %v622 = vpop.f32.mrf.mxu0
      %v623 = vadd.f32 %v424, %v622
      %v624 = vpop.f32.mrf.mxu0
      %v625 = vadd.f32 %v424, %v624
      %626 = vmatmul.bf16.gmra.mxu0 %v546
      %v627 = vpop.f32.mrf.mxu0
      %v628 = vadd.f32 %v424, %v627
      %v629 = vpop.f32.mrf.mxu0
      %v630 = vadd.f32 %v424, %v629
      %631 = vmatmul.bf16.gmra.mxu0 %v549
      %v632 = vpop.f32.mrf.mxu0
      %v633 = vadd.f32 %v424, %v632
      %v634 = vpop.f32.mrf.mxu0
      %v635 = vadd.f32 %v424, %v634
      %636 = vmatmul.bf16.gmra.mxu0 %v552
      %v637 = vpop.f32.mrf.mxu0
      %v638 = vadd.f32 %v424, %v637
      %v639 = vpop.f32.mrf.mxu0
      %v640 = vadd.f32 %v424, %v639
      %641 = vmatmul.bf16.gmra.mxu0 %v555
      %v642 = vpop.f32.mrf.mxu0
      %v643 = vadd.f32 %v424, %v642
      %v644 = vpop.f32.mrf.mxu0
      %v645 = vadd.f32 %v424, %v644
      %646 = vmatmul.bf16.gmra.mxu0 %v558
      %v647 = vpop.f32.mrf.mxu0
      %v648 = vadd.f32 %v424, %v647
      %v649 = vpop.f32.mrf.mxu0
      %v650 = vadd.f32 %v424, %v649
      %651 = vmatmul.bf16.gmra.mxu0 %v561
      %v652 = vpop.f32.mrf.mxu0
      %v653 = vadd.f32 %v424, %v652
      %v654 = vpop.f32.mrf.mxu0
      %v655 = vadd.f32 %v424, %v654
      %656 = vmatmul.bf16.gmra.mxu0 %v564
      %v657 = vpop.f32.mrf.mxu0
      %v658 = vadd.f32 %v424, %v657
      %v659 = vpop.f32.mrf.mxu0
      %v660 = vadd.f32 %v424, %v659
      %661 = vdwg.mxu0
      %v662 = vmax.f32 %v583, 0.0
      %v663 = vmax.f32 %v585, 0.0
      %v664 = vmax.f32 %v588, 0.0
      %v665 = vmax.f32 %v590, 0.0
      %v666 = vmax.f32 %v593, 0.0
      %v667 = vmax.f32 %v595, 0.0
      %v668 = vmax.f32 %v598, 0.0
      %v669 = vmax.f32 %v600, 0.0
      %v670 = vmax.f32 %v603, 0.0
      %v671 = vmax.f32 %v605, 0.0
      %v672 = vmax.f32 %v608, 0.0
      %v673 = vmax.f32 %v610, 0.0
      %v674 = vmax.f32 %v613, 0.0
      %v675 = vmax.f32 %v615, 0.0
      %v676 = vmax.f32 %v618, 0.0
      %v677 = vmax.f32 %v620, 0.0
      %v678 = vmax.f32 %v623, 0.0
      %v679 = vmax.f32 %v625, 0.0
      %v680 = vmax.f32 %v628, 0.0
      %v681 = vmax.f32 %v630, 0.0
      %v682 = vmax.f32 %v633, 0.0
      %v683 = vmax.f32 %v635, 0.0
      %v684 = vmax.f32 %v638, 0.0
      %v685 = vmax.f32 %v640, 0.0
      %v686 = vmax.f32 %v643, 0.0
      %v687 = vmax.f32 %v645, 0.0
      %v688 = vmax.f32 %v648, 0.0
      %v689 = vmax.f32 %v650, 0.0
      %v690 = vmax.f32 %v653, 0.0
      %v691 = vmax.f32 %v655, 0.0
      %v692 = vmax.f32 %v658, 0.0
      %v693 = vmax.f32 %v660, 0.0
      %v694 = vmax.f32 %v662, %v664
      %v695 = vmax.f32 %v663, %v665
      %v696 = vmax.f32 %v664, %v666
      %v697 = vmax.f32 %v665, %v667
      %v698 = vmax.f32 %v666, %v668
      %v699 = vmax.f32 %v667, %v669
      %v700 = vmax.f32 %v668, %v670
      %v701 = vmax.f32 %v669, %v671
      %v702 = vmax.f32 %v670, %v672
      %v703 = vmax.f32 %v671, %v673
      %v704 = vmax.f32 %v672, %v674
      %v705 = vmax.f32 %v673, %v675
      %v706 = vmax.f32 %v674, %v676
      %v707 = vmax.f32 %v675, %v677
      %v708 = vmax.f32 %v676, %v678
      %v709 = vmax.f32 %v677, %v679
      %v710 = vmax.f32 %v678, %v680
      %v711 = vmax.f32 %v679, %v681
      %v712 = vmax.f32 %v680, %v682
      %v713 = vmax.f32 %v681, %v683
      %v714 = vmax.f32 %v682, %v684
      %v715 = vmax.f32 %v683, %v685
      %v716 = vmax.f32 %v684, %v686
      %v717 = vmax.f32 %v685, %v687
      %v718 = vmax.f32 %v686, %v688
      %v719 = vmax.f32 %v687, %v689
      %v720 = vmax.f32 %v688, %v690
      %v721 = vmax.f32 %v689, %v691
      %v722 = vmax.f32 %v690, %v692
      %v723 = vmax.f32 %v691, %v693
      %vm754 = vcmask 1046528
      %v755 = vrot.slane %v694, 1
      %v756 = vrot.slane %v695, 1
      %v757 = vsel %vm754, %v755, %v756
      %v758 = vrot.slane %v696, 1
      %v759 = vsel %vm754, %v756, %v758
      %v760 = vrot.slane %v697, 1
      %v761 = vsel %vm754, %v758, %v760
      %v762 = vrot.slane %v698, 1
      %v763 = vsel %vm754, %v760, %v762
      %v764 = vrot.slane %v699, 1
      %v765 = vsel %vm754, %v762, %v764
      %v766 = vrot.slane %v700, 1
      %v767 = vsel %vm754, %v764, %v766
      %v768 = vrot.slane %v701, 1
      %v769 = vsel %vm754, %v766, %v768
      %v770 = vrot.slane %v702, 1
      %v771 = vsel %vm754, %v768, %v770
      %v772 = vrot.slane %v703, 1
      %v773 = vsel %vm754, %v770, %v772
      %v774 = vrot.slane %v704, 1
      %v775 = vsel %vm754, %v772, %v774
      %v776 = vrot.slane %v705, 1
      %v777 = vsel %vm754, %v774, %v776
      %v778 = vrot.slane %v706, 1
      %v779 = vsel %vm754, %v776, %v778
      %v780 = vrot.slane %v707, 1
      %v781 = vsel %vm754, %v778, %v780
      %v782 = vrot.slane %v708, 1
      %v783 = vsel %vm754, %v780, %v782
      %v784 = vrot.slane %v709, 1
      %v785 = vsel %vm754, %v782, %v784
      %v786 = vrot.slane %v710, 1
      %v787 = vsel %vm754, %v784, %v786
      %v788 = vrot.slane %v711, 1
      %v789 = vsel %vm754, %v786, %v788
      %v790 = vrot.slane %v712, 1
      %v791 = vsel %vm754, %v788, %v790
      %v792 = vrot.slane %v713, 1
      %v793 = vsel %vm754, %v790, %v792
      %v794 = vrot.slane %v714, 1
      %v795 = vsel %vm754, %v792, %v794
      %v796 = vrot.slane %v715, 1
      %v797 = vsel %vm754, %v794, %v796
      %v798 = vrot.slane %v716, 1
      %v799 = vsel %vm754, %v796, %v798
      %v800 = vrot.slane %v717, 1
      %v801 = vsel %vm754, %v798, %v800
      %v802 = vrot.slane %v718, 1
      %v803 = vsel %vm754, %v800, %v802
      %v804 = vrot.slane %v719, 1
      %v805 = vsel %vm754, %v802, %v804
      %v806 = vrot.slane %v720, 1
      %v807 = vsel %vm754, %v804, %v806
      %v808 = vrot.slane %v721, 1
      %v809 = vsel %vm754, %v806, %v808
      %v810 = vrot.slane %v722, 1
      %v811 = vsel %vm754, %v808, %v810
      %v812 = vrot.slane %v723, 1
      %v813 = vsel %vm754, %v810, %v812
      %v844 = vmax.f32 %v694, %v757
      %v845 = vmax.f32 %v695, %v759
      %v846 = vmax.f32 %v696, %v761
      %v847 = vmax.f32 %v697, %v763
      %v848 = vmax.f32 %v698, %v765
      %v849 = vmax.f32 %v699, %v767
      %v850 = vmax.f32 %v700, %v769
      %v851 = vmax.f32 %v701, %v771
      %v852 = vmax.f32 %v702, %v773
      %v853 = vmax.f32 %v703, %v775
      %v854 = vmax.f32 %v704, %v777
      %v855 = vmax.f32 %v705, %v779
      %v856 = vmax.f32 %v706, %v781
      %v857 = vmax.f32 %v707, %v783
      %v858 = vmax.f32 %v708, %v785
      %v859 = vmax.f32 %v709, %v787
      %v860 = vmax.f32 %v710, %v789
      %v861 = vmax.f32 %v711, %v791
      %v862 = vmax.f32 %v712, %v793
      %v863 = vmax.f32 %v713, %v795
      %v864 = vmax.f32 %v714, %v797
      %v865 = vmax.f32 %v715, %v799
      %v866 = vmax.f32 %v716, %v801
      %v867 = vmax.f32 %v717, %v803
      %v868 = vmax.f32 %v718, %v805
      %v869 = vmax.f32 %v719, %v807
      %v870 = vmax.f32 %v720, %v809
      %v871 = vmax.f32 %v721, %v811
      %v872 = vmax.f32 %v722, %v813
      %v873 = vmax.f32 %v723, %v812
      %vm874 = vcmask 261120
      %875 = vst.msk [vmem:[#allocation4] sm:$0xff] %vm874, %v844
      %876 = vst.msk [vmem:[#allocation4 + $0x8] sm:$0xff] %vm874, %v845
      %877 = vst.msk [vmem:[#allocation4 + $0x10] sm:$0xff] %vm874, %v846
      %878 = vst.msk [vmem:[#allocation4 + $0x18] sm:$0xff] %vm874, %v847
      %879 = vst.msk [vmem:[#allocation4 + $0x20] sm:$0xff] %vm874, %v848
      %880 = vst.msk [vmem:[#allocation4 + $0x28] sm:$0xff] %vm874, %v849
      %881 = vst.msk [vmem:[#allocation4 + $0x30] sm:$0xff] %vm874, %v850
      %882 = vst.msk [vmem:[#allocation4 + $0x38] sm:$0xff] %vm874, %v851
      %883 = vst.msk [vmem:[#allocation4 + $0x40] sm:$0xff] %vm874, %v852
      %884 = vst.msk [vmem:[#allocation4 + $0x48] sm:$0xff] %vm874, %v853
      %885 = vst.msk [vmem:[#allocation4 + $0x50] sm:$0xff] %vm874, %v854
      %886 = vst.msk [vmem:[#allocation4 + $0x58] sm:$0xff] %vm874, %v855
      %887 = vst.msk [vmem:[#allocation4 + $0x60] sm:$0xff] %vm874, %v856
      %888 = vst.msk [vmem:[#allocation4 + $0x68] sm:$0xff] %vm874, %v857
      %889 = vst.msk [vmem:[#allocation4 + $0x70] sm:$0xff] %vm874, %v858
      %890 = vst.msk [vmem:[#allocation4 + $0x78] sm:$0xff] %vm874, %v859
      %891 = vst.msk [vmem:[#allocation4 + $0x80] sm:$0xff] %vm874, %v860
      %892 = vst.msk [vmem:[#allocation4 + $0x88] sm:$0xff] %vm874, %v861
      %893 = vst.msk [vmem:[#allocation4 + $0x90] sm:$0xff] %vm874, %v862
      %894 = vst.msk [vmem:[#allocation4 + $0x98] sm:$0xff] %vm874, %v863
      %895 = vst.msk [vmem:[#allocation4 + $0xa0] sm:$0xff] %vm874, %v864
      %896 = vst.msk [vmem:[#allocation4 + $0xa8] sm:$0xff] %vm874, %v865
      %897 = vst.msk [vmem:[#allocation4 + $0xb0] sm:$0xff] %vm874, %v866
      %898 = vst.msk [vmem:[#allocation4 + $0xb8] sm:$0xff] %vm874, %v867
      %899 = vst.msk [vmem:[#allocation4 + $0xc0] sm:$0xff] %vm874, %v868
      %900 = vst.msk [vmem:[#allocation4 + $0xc8] sm:$0xff] %vm874, %v869
      %901 = vst.msk [vmem:[#allocation4 + $0xd0] sm:$0xff] %vm874, %v870
      %902 = vst.msk [vmem:[#allocation4 + $0xd8] sm:$0xff] %vm874, %v871
      %903 = vst.msk [vmem:[#allocation4 + $0xe0] sm:$0xff] %vm874, %v872
      %vm904 = vcmask 260096
      %905 = vst.msk [vmem:[#allocation4 + $0xe8] sm:$0x7f] %vm904, %v873
      %906 = vst.msk [vmem:[#allocation2] sm:$0xff] %vm874, 0.0
      %907 = vst.msk [vmem:[#allocation2 + $0x8] sm:$0xff] %vm874, 0.0
      %908 = vst.msk [vmem:[#allocation2 + $0x10] sm:$0xff] %vm874, 0.0
      %909 = vst.msk [vmem:[#allocation2 + $0x18] sm:$0xff] %vm874, 0.0
      %910 = vst.msk [vmem:[#allocation2 + $0x20] sm:$0xff] %vm874, 0.0
      %911 = vst.msk [vmem:[#allocation2 + $0x28] sm:$0xff] %vm874, 0.0
      %912 = vst.msk [vmem:[#allocation2 + $0x30] sm:$0xff] %vm874, 0.0
      %913 = vst.msk [vmem:[#allocation2 + $0x38] sm:$0xff] %vm874, 0.0
      %914 = vst.msk [vmem:[#allocation2 + $0x40] sm:$0xff] %vm874, 0.0
      %915 = vst.msk [vmem:[#allocation2 + $0x48] sm:$0xff] %vm874, 0.0
      %916 = vst.msk [vmem:[#allocation2 + $0x50] sm:$0xff] %vm874, 0.0
      %917 = vst.msk [vmem:[#allocation2 + $0x58] sm:$0xff] %vm874, 0.0
      %918 = vst.msk [vmem:[#allocation2 + $0x60] sm:$0xff] %vm874, 0.0
      %vm919 = vcmask 259072
      %920 = vst.msk [vmem:[#allocation2 + $0x68] sm:$0x3f] %vm919, 0.0
      %v921 = vld [vmem:[#allocation4] ss:$2 sm:$0xff]
      %922 = vst.msk [vmem:[#allocation2 + $0xb] sm:$0xff] %vm874, %v921
      %s923 = scalar_lea.vmem [#allocation4], 32
      %v924 = vld [vmem:[%s923] ss:$2 sm:$0xff]
      %925 = vst.msk [vmem:[#allocation2 + $0x15] sm:$0xff] %vm874, %v924
      %s926 = scalar_lea.vmem [#allocation4], 64
      %v927 = vld [vmem:[%s926] ss:$2 sm:$0xff]
      %928 = vst.msk [vmem:[#allocation2 + $0x1f] sm:$0xff] %vm874, %v927
      %s929 = scalar_lea.vmem [#allocation4], 96
      %v930 = vld [vmem:[%s929] ss:$2 sm:$0xff]
      %931 = vst.msk [vmem:[#allocation2 + $0x29] sm:$0xff] %vm874, %v930
      %s932 = scalar_lea.vmem [#allocation4], 128
      %v933 = vld [vmem:[%s932] ss:$2 sm:$0xff]
      %934 = vst.msk [vmem:[#allocation2 + $0x33] sm:$0xff] %vm874, %v933
      %s935 = scalar_lea.vmem [#allocation4], 160
      %v936 = vld [vmem:[%s935] ss:$2 sm:$0xff]
      %937 = vst.msk [vmem:[#allocation2 + $0x3d] sm:$0xff] %vm874, %v936
      %s938 = scalar_lea.vmem [#allocation4], 192
      %v939 = vld [vmem:[%s938] ss:$2 sm:$0xff]
      %940 = vst.msk [vmem:[#allocation2 + $0x47] sm:$0xff] %vm874, %v939
      %s941 = scalar_lea.vmem [#allocation4], 224
      %v942 = vld [vmem:[%s941] ss:$2 sm:$0xff]
      %943 = vst.msk [vmem:[#allocation2 + $0x51] sm:$0xff] %vm874, %v942
      %v944 = vld [vmem:[#allocation2] sm:$0xff]
      %v945 = vld [vmem:[#allocation2 + $0x8] sm:$0xff]
      %v946 = vld [vmem:[#allocation2 + $0x10] sm:$0xff]
      %v947 = vld [vmem:[#allocation2 + $0x18] sm:$0xff]
      %v948 = vld [vmem:[#allocation2 + $0x20] sm:$0xff]
      %v949 = vld [vmem:[#allocation2 + $0x28] sm:$0xff]
      %v950 = vld [vmem:[#allocation2 + $0x30] sm:$0xff]
      %v951 = vld [vmem:[#allocation2 + $0x38] sm:$0xff]
      %v952 = vld [vmem:[#allocation2 + $0x40] sm:$0xff]
      %v953 = vld [vmem:[#allocation2 + $0x48] sm:$0xff]
      %v954 = vpack.c.bf16 %v944, %v944
      %v955 = vpack.c.bf16 %v945, %v945
      %v956 = vpack.c.bf16 %v946, %v946
      %v957 = vpack.c.bf16 %v947, %v947
      %v958 = vpack.c.bf16 %v948, %v948
      %v959 = vpack.c.bf16 %v949, %v949
      %v960 = vpack.c.bf16 %v950, %v950
      %v961 = vpack.c.bf16 %v951, %v951
      %v962 = vpack.c.bf16 %v952, %v952
      %v963 = vpack.c.bf16 %v953, %v953
      %v964 = vld [vmem:[#allocation2 + $0x1] sm:$0xff]
      %v965 = vld [vmem:[#allocation2 + $0x9] sm:$0xff]
      %v966 = vld [vmem:[#allocation2 + $0x11] sm:$0xff]
      %v967 = vld [vmem:[#allocation2 + $0x19] sm:$0xff]
      %v968 = vld [vmem:[#allocation2 + $0x21] sm:$0xff]
      %v969 = vld [vmem:[#allocation2 + $0x29] sm:$0xff]
      %v970 = vld [vmem:[#allocation2 + $0x31] sm:$0xff]
      %v971 = vld [vmem:[#allocation2 + $0x39] sm:$0xff]
      %v972 = vld [vmem:[#allocation2 + $0x41] sm:$0xff]
      %v973 = vld [vmem:[#allocation2 + $0x49] sm:$0xff]
      %v974 = vpack.c.bf16 %v964, %v964
      %v975 = vpack.c.bf16 %v965, %v965
      %v976 = vpack.c.bf16 %v966, %v966
      %v977 = vpack.c.bf16 %v967, %v967
      %v978 = vpack.c.bf16 %v968, %v968
      %v979 = vpack.c.bf16 %v969, %v969
      %v980 = vpack.c.bf16 %v970, %v970
      %v981 = vpack.c.bf16 %v971, %v971
      %v982 = vpack.c.bf16 %v972, %v972
      %v983 = vpack.c.bf16 %v973, %v973
      %v984 = vld [vmem:[#allocation2 + $0x2] sm:$0xff]
      %v985 = vld [vmem:[#allocation2 + $0xa] sm:$0xff]
      %v986 = vld [vmem:[#allocation2 + $0x12] sm:$0xff]
      %v987 = vld [vmem:[#allocation2 + $0x1a] sm:$0xff]
      %v988 = vld [vmem:[#allocation2 + $0x22] sm:$0xff]
      %v989 = vld [vmem:[#allocation2 + $0x2a] sm:$0xff]
      %v990 = vld [vmem:[#allocation2 + $0x32] sm:$0xff]
      %v991 = vld [vmem:[#allocation2 + $0x3a] sm:$0xff]
      %v992 = vld [vmem:[#allocation2 + $0x42] sm:$0xff]
      %v993 = vld [vmem:[#allocation2 + $0x4a] sm:$0xff]
      %v994 = vpack.c.bf16 %v984, %v984
      %v995 = vpack.c.bf16 %v985, %v985
      %v996 = vpack.c.bf16 %v986, %v986
      %v997 = vpack.c.bf16 %v987, %v987
      %v998 = vpack.c.bf16 %v988, %v988
      %v999 = vpack.c.bf16 %v989, %v989
      %v1000 = vpack.c.bf16 %v990, %v990
      %v1001 = vpack.c.bf16 %v991, %v991
      %v1002 = vpack.c.bf16 %v992, %v992
      %v1003 = vpack.c.bf16 %v993, %v993
      %v1004 = vld [vmem:[#allocation2 + $0x52] sm:$0xff]
      %v1005 = vpack.c.bf16 %v1004, %v1004
      %v1006 = vld [vmem:[#allocation2 + $0xb] sm:$0xff]
      %v1007 = vld [vmem:[#allocation2 + $0x13] sm:$0xff]
      %v1008 = vld [vmem:[#allocation2 + $0x1b] sm:$0xff]
      %v1009 = vld [vmem:[#allocation2 + $0x23] sm:$0xff]
      %v1010 = vld [vmem:[#allocation2 + $0x2b] sm:$0xff]
      %v1011 = vld [vmem:[#allocation2 + $0x33] sm:$0xff]
      %v1012 = vld [vmem:[#allocation2 + $0x3b] sm:$0xff]
      %v1013 = vld [vmem:[#allocation2 + $0x43] sm:$0xff]
      %v1014 = vld [vmem:[#allocation2 + $0x4b] sm:$0xff]
      %v1015 = vld [vmem:[#allocation2 + $0x53] sm:$0xff]
      %v1016 = vpack.c.bf16 %v1006, %v1006
      %v1017 = vpack.c.bf16 %v1007, %v1007
      %v1018 = vpack.c.bf16 %v1008, %v1008
      %v1019 = vpack.c.bf16 %v1009, %v1009
      %v1020 = vpack.c.bf16 %v1010, %v1010
      %v1021 = vpack.c.bf16 %v1011, %v1011
      %v1022 = vpack.c.bf16 %v1012, %v1012
      %v1023 = vpack.c.bf16 %v1013, %v1013
      %v1024 = vpack.c.bf16 %v1014, %v1014
      %v1025 = vpack.c.bf16 %v1015, %v1015
      %v1026 = vld [vmem:[#allocation2 + $0xc] sm:$0xff]
      %v1027 = vld [vmem:[#allocation2 + $0x14] sm:$0xff]
      %v1028 = vld [vmem:[#allocation2 + $0x1c] sm:$0xff]
      %v1029 = vld [vmem:[#allocation2 + $0x24] sm:$0xff]
      %v1030 = vld [vmem:[#allocation2 + $0x2c] sm:$0xff]
      %v1031 = vld [vmem:[#allocation2 + $0x34] sm:$0xff]
      %v1032 = vld [vmem:[#allocation2 + $0x3c] sm:$0xff]
      %v1033 = vld [vmem:[#allocation2 + $0x44] sm:$0xff]
      %v1034 = vld [vmem:[#allocation2 + $0x4c] sm:$0xff]
      %v1035 = vld [vmem:[#allocation2 + $0x54] sm:$0xff]
      %v1036 = vpack.c.bf16 %v1026, %v1026
      %v1037 = vpack.c.bf16 %v1027, %v1027
      %v1038 = vpack.c.bf16 %v1028, %v1028
      %v1039 = vpack.c.bf16 %v1029, %v1029
      %v1040 = vpack.c.bf16 %v1030, %v1030
      %v1041 = vpack.c.bf16 %v1031, %v1031
      %v1042 = vpack.c.bf16 %v1032, %v1032
      %v1043 = vpack.c.bf16 %v1033, %v1033
      %v1044 = vpack.c.bf16 %v1034, %v1034
      %v1045 = vpack.c.bf16 %v1035, %v1035
      %v1046 = vld [vmem:[#allocation2 + $0x5c] sm:$0xff]
      %v1047 = vpack.c.bf16 %v1046, %v1046
      %v1048 = vld [vmem:[#allocation2 + $0x15] sm:$0xff]
      %v1049 = vld [vmem:[#allocation2 + $0x1d] sm:$0xff]
      %v1050 = vld [vmem:[#allocation2 + $0x25] sm:$0xff]
      %v1051 = vld [vmem:[#allocation2 + $0x2d] sm:$0xff]
      %v1052 = vld [vmem:[#allocation2 + $0x35] sm:$0xff]
      %v1053 = vld [vmem:[#allocation2 + $0x3d] sm:$0xff]
      %v1054 = vld [vmem:[#allocation2 + $0x45] sm:$0xff]
      %v1055 = vld [vmem:[#allocation2 + $0x4d] sm:$0xff]
      %v1056 = vld [vmem:[#allocation2 + $0x55] sm:$0xff]
      %v1057 = vld [vmem:[#allocation2 + $0x5d] sm:$0xff]
      %v1058 = vpack.c.bf16 %v1048, %v1048
      %v1059 = vpack.c.bf16 %v1049, %v1049
      %v1060 = vpack.c.bf16 %v1050, %v1050
      %v1061 = vpack.c.bf16 %v1051, %v1051
      %v1062 = vpack.c.bf16 %v1052, %v1052
      %v1063 = vpack.c.bf16 %v1053, %v1053
      %v1064 = vpack.c.bf16 %v1054, %v1054
      %v1065 = vpack.c.bf16 %v1055, %v1055
      %v1066 = vpack.c.bf16 %v1056, %v1056
      %v1067 = vpack.c.bf16 %v1057, %v1057
      %v1068 = vld [vmem:[#allocation2 + $0x16] sm:$0xff]
      %v1069 = vld [vmem:[#allocation2 + $0x1e] sm:$0xff]
      %v1070 = vld [vmem:[#allocation2 + $0x26] sm:$0xff]
      %v1071 = vld [vmem:[#allocation2 + $0x2e] sm:$0xff]
      %v1072 = vld [vmem:[#allocation2 + $0x36] sm:$0xff]
      %v1073 = vld [vmem:[#allocation2 + $0x3e] sm:$0xff]
      %v1074 = vld [vmem:[#allocation2 + $0x46] sm:$0xff]
      %v1075 = vld [vmem:[#allocation2 + $0x4e] sm:$0xff]
      %v1076 = vld [vmem:[#allocation2 + $0x56] sm:$0xff]
      %v1077 = vld [vmem:[#allocation2 + $0x5e] sm:$0xff]
      %v1078 = vpack.c.bf16 %v1068, %v1068
      %v1079 = vpack.c.bf16 %v1069, %v1069
      %v1080 = vpack.c.bf16 %v1070, %v1070
      %v1081 = vpack.c.bf16 %v1071, %v1071
      %v1082 = vpack.c.bf16 %v1072, %v1072
      %v1083 = vpack.c.bf16 %v1073, %v1073
      %v1084 = vpack.c.bf16 %v1074, %v1074
      %v1085 = vpack.c.bf16 %v1075, %v1075
      %v1086 = vpack.c.bf16 %v1076, %v1076
      %v1087 = vpack.c.bf16 %v1077, %v1077
      %v1098 = vunpack.c.l.b16 %v954
      %v1099 = vunpack.c.l.b16 %v955
      %v1100 = vunpack.c.l.b16 %v956
      %v1101 = vunpack.c.l.b16 %v957
      %v1102 = vunpack.c.l.b16 %v958
      %v1103 = vunpack.c.l.b16 %v959
      %v1104 = vunpack.c.l.b16 %v960
      %v1105 = vunpack.c.l.b16 %v961
      %v1106 = vunpack.c.l.b16 %v962
      %v1107 = vunpack.c.l.b16 %v963
      %v1108 = vpack.c.b16 %v1099, %v1098
      %v1109 = vpack.c.b16 %v1101, %v1100
      %v1110 = vpack.c.b16 %v1103, %v1102
      %v1111 = vpack.c.b16 %v1105, %v1104
      %v1112 = vpack.c.b16 %v1107, %v1106
      %v1123 = vunpack.c.l.b16 %v974
      %v1124 = vunpack.c.l.b16 %v975
      %v1125 = vunpack.c.l.b16 %v976
      %v1126 = vunpack.c.l.b16 %v977
      %v1127 = vunpack.c.l.b16 %v978
      %v1128 = vunpack.c.l.b16 %v979
      %v1129 = vunpack.c.l.b16 %v980
      %v1130 = vunpack.c.l.b16 %v981
      %v1131 = vunpack.c.l.b16 %v982
      %v1132 = vunpack.c.l.b16 %v983
      %v1133 = vpack.c.b16 %v1124, %v1123
      %v1134 = vpack.c.b16 %v1126, %v1125
      %v1135 = vpack.c.b16 %v1128, %v1127
      %v1136 = vpack.c.b16 %v1130, %v1129
      %v1137 = vpack.c.b16 %v1132, %v1131
      %1138 = vrot.lane.b32.xlu0 %v1133, 32
      %v1139 = vpop.permute.xlu0 %1138
      %1140 = vrot.lane.b32.xlu0 %v1134, 32
      %v1141 = vpop.permute.xlu0 %1140
      %1142 = vrot.lane.b32.xlu0 %v1135, 32
      %v1143 = vpop.permute.xlu0 %1142
      %1144 = vrot.lane.b32.xlu0 %v1136, 32
      %v1145 = vpop.permute.xlu0 %1144
      %1146 = vrot.lane.b32.xlu0 %v1137, 32
      %v1147 = vpop.permute.xlu0 %1146
      %v1158 = vunpack.c.l.b16 %v994
      %v1159 = vunpack.c.l.b16 %v995
      %v1160 = vunpack.c.l.b16 %v996
      %v1161 = vunpack.c.l.b16 %v997
      %v1162 = vunpack.c.l.b16 %v998
      %v1163 = vunpack.c.l.b16 %v999
      %v1164 = vunpack.c.l.b16 %v1000
      %v1165 = vunpack.c.l.b16 %v1001
      %v1166 = vunpack.c.l.b16 %v1002
      %v1167 = vunpack.c.l.b16 %v1003
      %v1168 = vpack.c.b16 %v1159, %v1158
      %v1169 = vpack.c.b16 %v1161, %v1160
      %v1170 = vpack.c.b16 %v1163, %v1162
      %v1171 = vpack.c.b16 %v1165, %v1164
      %v1172 = vpack.c.b16 %v1167, %v1166
      %1173 = vrot.lane.b32.xlu0 %v1168, 64
      %v1174 = vpop.permute.xlu0 %1173
      %1175 = vrot.lane.b32.xlu0 %v1169, 64
      %v1176 = vpop.permute.xlu0 %1175
      %1177 = vrot.lane.b32.xlu0 %v1170, 64
      %v1178 = vpop.permute.xlu0 %1177
      %1179 = vrot.lane.b32.xlu0 %v1171, 64
      %v1180 = vpop.permute.xlu0 %1179
      %1181 = vrot.lane.b32.xlu0 %v1172, 64
      %v1182 = vpop.permute.xlu0 %1181
      %v1184 = vunpack.c.l.b16 %v1005
      %v1185 = vpack.c.b16 %v1160, %v1159
      %v1186 = vpack.c.b16 %v1162, %v1161
      %v1187 = vpack.c.b16 %v1164, %v1163
      %v1188 = vpack.c.b16 %v1166, %v1165
      %v1189 = vpack.c.b16 %v1184, %v1167
      %1190 = vrot.lane.b32.xlu0 %v1185, 96
      %v1191 = vpop.permute.xlu0 %1190
      %1192 = vrot.lane.b32.xlu0 %v1186, 96
      %v1193 = vpop.permute.xlu0 %1192
      %1194 = vrot.lane.b32.xlu0 %v1187, 96
      %v1195 = vpop.permute.xlu0 %1194
      %1196 = vrot.lane.b32.xlu0 %v1188, 96
      %v1197 = vpop.permute.xlu0 %1196
      %1198 = vrot.lane.b32.xlu0 %v1189, 96
      %v1199 = vpop.permute.xlu0 %1198
      %v1210 = vunpack.c.l.b16 %v1016
      %v1211 = vunpack.c.l.b16 %v1017
      %v1212 = vunpack.c.l.b16 %v1018
      %v1213 = vunpack.c.l.b16 %v1019
      %v1214 = vunpack.c.l.b16 %v1020
      %v1215 = vunpack.c.l.b16 %v1021
      %v1216 = vunpack.c.l.b16 %v1022
      %v1217 = vunpack.c.l.b16 %v1023
      %v1218 = vunpack.c.l.b16 %v1024
      %v1219 = vunpack.c.l.b16 %v1025
      %v1220 = vpack.c.b16 %v1211, %v1210
      %v1221 = vpack.c.b16 %v1213, %v1212
      %v1222 = vpack.c.b16 %v1215, %v1214
      %v1223 = vpack.c.b16 %v1217, %v1216
      %v1224 = vpack.c.b16 %v1219, %v1218
      %v1235 = vunpack.c.l.b16 %v1036
      %v1236 = vunpack.c.l.b16 %v1037
      %v1237 = vunpack.c.l.b16 %v1038
      %v1238 = vunpack.c.l.b16 %v1039
      %v1239 = vunpack.c.l.b16 %v1040
      %v1240 = vunpack.c.l.b16 %v1041
      %v1241 = vunpack.c.l.b16 %v1042
      %v1242 = vunpack.c.l.b16 %v1043
      %v1243 = vunpack.c.l.b16 %v1044
      %v1244 = vunpack.c.l.b16 %v1045
      %v1245 = vpack.c.b16 %v1236, %v1235
      %v1246 = vpack.c.b16 %v1238, %v1237
      %v1247 = vpack.c.b16 %v1240, %v1239
      %v1248 = vpack.c.b16 %v1242, %v1241
      %v1249 = vpack.c.b16 %v1244, %v1243
      %1250 = vrot.lane.b32.xlu0 %v1245, 32
      %v1251 = vpop.permute.xlu0 %1250
      %1252 = vrot.lane.b32.xlu0 %v1246, 32
      %v1253 = vpop.permute.xlu0 %1252
      %1254 = vrot.lane.b32.xlu0 %v1247, 32
      %v1255 = vpop.permute.xlu0 %1254
      %1256 = vrot.lane.b32.xlu0 %v1248, 32
      %v1257 = vpop.permute.xlu0 %1256
      %1258 = vrot.lane.b32.xlu0 %v1249, 32
      %v1259 = vpop.permute.xlu0 %1258
      %v1261 = vunpack.c.l.b16 %v1047
      %v1262 = vpack.c.b16 %v1237, %v1236
      %v1263 = vpack.c.b16 %v1239, %v1238
      %v1264 = vpack.c.b16 %v1241, %v1240
      %v1265 = vpack.c.b16 %v1243, %v1242
      %v1266 = vpack.c.b16 %v1261, %v1244
      %1267 = vrot.lane.b32.xlu0 %v1262, 64
      %v1268 = vpop.permute.xlu0 %1267
      %1269 = vrot.lane.b32.xlu0 %v1263, 64
      %v1270 = vpop.permute.xlu0 %1269
      %1271 = vrot.lane.b32.xlu0 %v1264, 64
      %v1272 = vpop.permute.xlu0 %1271
      %1273 = vrot.lane.b32.xlu0 %v1265, 64
      %v1274 = vpop.permute.xlu0 %1273
      %1275 = vrot.lane.b32.xlu0 %v1266, 64
      %v1276 = vpop.permute.xlu0 %1275
      %v1287 = vunpack.c.l.b16 %v1058
      %v1288 = vunpack.c.l.b16 %v1059
      %v1289 = vunpack.c.l.b16 %v1060
      %v1290 = vunpack.c.l.b16 %v1061
      %v1291 = vunpack.c.l.b16 %v1062
      %v1292 = vunpack.c.l.b16 %v1063
      %v1293 = vunpack.c.l.b16 %v1064
      %v1294 = vunpack.c.l.b16 %v1065
      %v1295 = vunpack.c.l.b16 %v1066
      %v1296 = vunpack.c.l.b16 %v1067
      %v1297 = vpack.c.b16 %v1288, %v1287
      %v1298 = vpack.c.b16 %v1290, %v1289
      %v1299 = vpack.c.b16 %v1292, %v1291
      %v1300 = vpack.c.b16 %v1294, %v1293
      %v1301 = vpack.c.b16 %v1296, %v1295
      %1302 = vrot.lane.b32.xlu0 %v1297, 96
      %v1303 = vpop.permute.xlu0 %1302
      %1304 = vrot.lane.b32.xlu0 %v1298, 96
      %v1305 = vpop.permute.xlu0 %1304
      %1306 = vrot.lane.b32.xlu0 %v1299, 96
      %v1307 = vpop.permute.xlu0 %1306
      %1308 = vrot.lane.b32.xlu0 %v1300, 96
      %v1309 = vpop.permute.xlu0 %1308
      %1310 = vrot.lane.b32.xlu0 %v1301, 96
      %v1311 = vpop.permute.xlu0 %1310
      %v1322 = vunpack.c.l.b16 %v1078
      %v1323 = vunpack.c.l.b16 %v1079
      %v1324 = vunpack.c.l.b16 %v1080
      %v1325 = vunpack.c.l.b16 %v1081
      %v1326 = vunpack.c.l.b16 %v1082
      %v1327 = vunpack.c.l.b16 %v1083
      %v1328 = vunpack.c.l.b16 %v1084
      %v1329 = vunpack.c.l.b16 %v1085
      %v1330 = vunpack.c.l.b16 %v1086
      %v1331 = vunpack.c.l.b16 %v1087
      %v1332 = vpack.c.b16 %v1323, %v1322
      %v1333 = vpack.c.b16 %v1325, %v1324
      %v1334 = vpack.c.b16 %v1327, %v1326
      %v1335 = vpack.c.b16 %v1329, %v1328
      %v1336 = vpack.c.b16 %v1331, %v1330
      %v1339 = vsel %vm874, %v1108, %v1139
      %v1342 = vsel %vm874, %v1109, %v1141
      %v1345 = vsel %vm874, %v1110, %v1143
      %v1348 = vsel %vm874, %v1111, %v1145
      %v1351 = vsel %vm874, %v1112, %v1147
      %vm1352 = vcmask 523264
      %v1354 = vsel %vm1352, %v1339, %v1174
      %v1356 = vsel %vm1352, %v1342, %v1176
      %v1358 = vsel %vm1352, %v1345, %v1178
      %v1360 = vsel %vm1352, %v1348, %v1180
      %v1362 = vsel %vm1352, %v1351, %v1182
      %vm1363 = vcmask 785408
      %v1365 = vsel %vm1363, %v1354, %v1191
      %v1368 = vsel %vm1363, %v1356, %v1193
      %v1371 = vsel %vm1363, %v1358, %v1195
      %v1374 = vsel %vm1363, %v1360, %v1197
      %v1377 = vsel %vm1363, %v1362, %v1199
      %v1381 = vsel %vm874, %v1220, %v1251
      %v1384 = vsel %vm874, %v1221, %v1253
      %v1387 = vsel %vm874, %v1222, %v1255
      %v1390 = vsel %vm874, %v1223, %v1257
      %v1393 = vsel %vm874, %v1224, %v1259
      %v1395 = vsel %vm1352, %v1381, %v1268
      %v1397 = vsel %vm1352, %v1384, %v1270
      %v1399 = vsel %vm1352, %v1387, %v1272
      %v1401 = vsel %vm1352, %v1390, %v1274
      %v1403 = vsel %vm1352, %v1393, %v1276
      %v1405 = vsel %vm1363, %v1395, %v1303
      %v1408 = vsel %vm1363, %v1397, %v1305
      %v1411 = vsel %vm1363, %v1399, %v1307
      %v1414 = vsel %vm1363, %v1401, %v1309
      %v1417 = vsel %vm1363, %v1403, %v1311
      %v1419 = vld [vmem:[%s3] sm:$0xf]
      %v1420 = vld [vmem:[%s3 + $0x4] sm:$0xf]
      %v1421 = vld [vmem:[%s3 + $0x8] sm:$0xf]
      %v1422 = vld [vmem:[%s3 + $0xc] sm:$0xf]
      %v1423 = vld [vmem:[%s3 + $0x10] sm:$0xf]
      %v1424 = vld [vmem:[%s3 + $0x14] sm:$0xf]
      %v1425 = vld [vmem:[%s3 + $0x18] sm:$0xf]
      %v1426 = vld [vmem:[%s3 + $0x1c] sm:$0xf]
      %v1427 = vld [vmem:[%s3 + $0x20] sm:$0xf]
      %v1428 = vld [vmem:[%s3 + $0x24] sm:$0xf]
      %v1429 = vld [vmem:[%s3 + $0x28] sm:$0xf]
      %v1430 = vld [vmem:[%s3 + $0x2c] sm:$0xf]
      %v1431 = vld [vmem:[%s3 + $0x30] sm:$0xf]
      %v1432 = vld [vmem:[%s3 + $0x34] sm:$0xf]
      %v1433 = vld [vmem:[%s3 + $0x38] sm:$0xf]
      %v1434 = vld [vmem:[%s3 + $0x3c] sm:$0xf]
      %v1435 = vld [vmem:[%s3 + $0x40] sm:$0xf]
      %v1436 = vld [vmem:[%s3 + $0x44] sm:$0xf]
      %v1437 = vld [vmem:[%s3 + $0x48] sm:$0xf]
      %v1438 = vld [vmem:[%s3 + $0x4c] sm:$0xf]
      %v1439 = vld [vmem:[%s3 + $0x50] sm:$0xf]
      %v1440 = vld [vmem:[%s3 + $0x54] sm:$0xf]
      %v1441 = vld [vmem:[%s3 + $0x58] sm:$0xf]
      %v1442 = vld [vmem:[%s3 + $0x5c] sm:$0xf]
      %v1443 = vld [vmem:[%s3 + $0x60] sm:$0xf]
      %v1444 = vld [vmem:[%s3 + $0x64] sm:$0xf]
      %v1445 = vld [vmem:[%s3 + $0x68] sm:$0xf]
      %v1446 = vld [vmem:[%s3 + $0x6c] sm:$0xf]
      %v1447 = vld [vmem:[%s3 + $0x70] sm:$0xf]
      %v1448 = vld [vmem:[%s3 + $0x74] sm:$0xf]
      %v1449 = vld [vmem:[%s3 + $0x78] sm:$0xf]
      %v1450 = vld [vmem:[%s3 + $0x7c] sm:$0xf]
      %v1451 = vld [vmem:[%s3 + $0x80] sm:$0xf]
      %v1452 = vld [vmem:[%s3 + $0x84] sm:$0xf]
      %v1453 = vld [vmem:[%s3 + $0x88] sm:$0xf]
      %v1454 = vld [vmem:[%s3 + $0x8c] sm:$0xf]
      %v1455 = vld [vmem:[%s4] sm:$0x1]
      %v1457 = vperm.slane %v1455, 0
      %v1495 = vunpack.c.l.b16 %v1419
      %v1496 = vunpack.c.l.b16 %v1420
      %v1497 = vunpack.c.l.b16 %v1421
      %v1498 = vunpack.c.l.b16 %v1422
      %v1499 = vunpack.c.l.b16 %v1423
      %v1500 = vunpack.c.l.b16 %v1424
      %v1501 = vunpack.c.l.b16 %v1425
      %v1502 = vunpack.c.l.b16 %v1426
      %v1503 = vunpack.c.l.b16 %v1427
      %v1504 = vunpack.c.l.b16 %v1428
      %v1505 = vunpack.c.l.b16 %v1429
      %v1506 = vunpack.c.l.b16 %v1430
      %v1507 = vunpack.c.l.b16 %v1431
      %v1508 = vunpack.c.l.b16 %v1432
      %v1509 = vunpack.c.l.b16 %v1433
      %v1510 = vunpack.c.l.b16 %v1434
      %v1511 = vunpack.c.l.b16 %v1435
      %v1512 = vunpack.c.l.b16 %v1436
      %v1513 = vunpack.c.l.b16 %v1437
      %v1514 = vunpack.c.l.b16 %v1438
      %v1515 = vunpack.c.l.b16 %v1439
      %v1516 = vunpack.c.l.b16 %v1440
      %v1517 = vunpack.c.l.b16 %v1441
      %v1518 = vunpack.c.l.b16 %v1442
      %v1519 = vunpack.c.l.b16 %v1443
      %v1520 = vunpack.c.l.b16 %v1444
      %v1521 = vunpack.c.l.b16 %v1445
      %v1522 = vunpack.c.l.b16 %v1446
      %v1523 = vunpack.c.l.b16 %v1447
      %v1524 = vunpack.c.l.b16 %v1448
      %v1525 = vunpack.c.l.b16 %v1449
      %v1526 = vunpack.c.l.b16 %v1450
      %v1527 = vunpack.c.l.b16 %v1451
      %v1528 = vunpack.c.l.b16 %v1452
      %v1529 = vunpack.c.l.b16 %v1453
      %v1530 = vunpack.c.l.b16 %v1454
      %v1531 = vpack.c.b16 %v1496, %v1495
      %v1532 = vpack.c.b16 %v1498, %v1497
      %v1533 = vpack.c.b16 %v1500, %v1499
      %v1534 = vpack.c.b16 %v1502, %v1501
      %v1535 = vpack.c.b16 %v1504, %v1503
      %v1536 = vpack.c.b16 %v1506, %v1505
      %v1537 = vpack.c.b16 %v1508, %v1507
      %v1538 = vpack.c.b16 %v1510, %v1509
      %v1539 = vpack.c.b16 %v1512, %v1511
      %v1540 = vpack.c.b16 %v1514, %v1513
      %v1541 = vpack.c.b16 %v1516, %v1515
      %v1542 = vpack.c.b16 %v1518, %v1517
      %v1543 = vpack.c.b16 %v1520, %v1519
      %v1544 = vpack.c.b16 %v1522, %v1521
      %v1545 = vpack.c.b16 %v1524, %v1523
      %v1546 = vpack.c.b16 %v1526, %v1525
      %v1547 = vpack.c.b16 %v1528, %v1527
      %v1548 = vpack.c.b16 %v1530, %v1529
      %v1568 = vsel %vm874, %v1332, 0
      %v1571 = vsel %vm874, %v1333, 0
      %v1574 = vsel %vm874, %v1334, 0
      %v1577 = vsel %vm874, %v1335, 0
      %v1580 = vsel %vm874, %v1336, 0
      %1582 = vmatpush.bf16.msra.mxu0 %v1538
      %1583 = vmatpush.bf16.msra.mxu0 %v1537
      %1584 = vmatpush.bf16.msra.mxu0 %v1536
      %1585 = vmatpush.bf16.msra.mxu0 %v1535
      %1586 = vmatpush.bf16.msra.mxu0 %v1534
      %1587 = vmatpush.bf16.msra.mxu0 %v1533
      %1588 = vmatpush.bf16.msra.mxu0 %v1532
      %1589 = vmatpush.bf16.msra.mxu0 %v1531
      %1590 = vmatmul.bf16.gmra.mxu0 %v1365
      %v1591 = vpop.f32.mrf.mxu0
      %v1592 = vadd.f32 %v1457, %v1591
      %v1593 = vpop.f32.mrf.mxu0
      %v1594 = vadd.f32 %v1457, %v1593
      %1595 = vmatmul.bf16.gmra.mxu0 %v1368
      %v1596 = vpop.f32.mrf.mxu0
      %v1597 = vadd.f32 %v1457, %v1596
      %v1598 = vpop.f32.mrf.mxu0
      %v1599 = vadd.f32 %v1457, %v1598
      %1600 = vmatmul.bf16.gmra.mxu0 %v1371
      %v1601 = vpop.f32.mrf.mxu0
      %v1602 = vadd.f32 %v1457, %v1601
      %v1603 = vpop.f32.mrf.mxu0
      %v1604 = vadd.f32 %v1457, %v1603
      %1605 = vmatmul.bf16.gmra.mxu0 %v1374
      %v1606 = vpop.f32.mrf.mxu0
      %v1607 = vadd.f32 %v1457, %v1606
      %v1608 = vpop.f32.mrf.mxu0
      %v1609 = vadd.f32 %v1457, %v1608
      %1610 = vmatmul.bf16.gmra.mxu0 %v1377
      %v1611 = vpop.f32.mrf.mxu0
      %v1612 = vadd.f32 %v1457, %v1611
      %v1613 = vpop.f32.mrf.mxu0
      %v1614 = vadd.f32 %v1457, %v1613
      %1615 = vdwg.mxu0
      %1616 = vmatpush.bf16.msra.mxu0 %v1546
      %1617 = vmatpush.bf16.msra.mxu0 %v1545
      %1618 = vmatpush.bf16.msra.mxu0 %v1544
      %1619 = vmatpush.bf16.msra.mxu0 %v1543
      %1620 = vmatpush.bf16.msra.mxu0 %v1542
      %1621 = vmatpush.bf16.msra.mxu0 %v1541
      %1622 = vmatpush.bf16.msra.mxu0 %v1540
      %1623 = vmatpush.bf16.msra.mxu0 %v1539
      %1624 = vmatmul.bf16.gmra.mxu0 %v1405
      %v1625 = vpop.f32.mrf.mxu0
      %v1626 = vadd.f32 %v1592, %v1625
      %v1627 = vpop.f32.mrf.mxu0
      %v1628 = vadd.f32 %v1594, %v1627
      %1629 = vmatmul.bf16.gmra.mxu0 %v1408
      %v1630 = vpop.f32.mrf.mxu0
      %v1631 = vadd.f32 %v1597, %v1630
      %v1632 = vpop.f32.mrf.mxu0
      %v1633 = vadd.f32 %v1599, %v1632
      %1634 = vmatmul.bf16.gmra.mxu0 %v1411
      %v1635 = vpop.f32.mrf.mxu0
      %v1636 = vadd.f32 %v1602, %v1635
      %v1637 = vpop.f32.mrf.mxu0
      %v1638 = vadd.f32 %v1604, %v1637
      %1639 = vmatmul.bf16.gmra.mxu0 %v1414
      %v1640 = vpop.f32.mrf.mxu0
      %v1641 = vadd.f32 %v1607, %v1640
      %v1642 = vpop.f32.mrf.mxu0
      %v1643 = vadd.f32 %v1609, %v1642
      %1644 = vmatmul.bf16.gmra.mxu0 %v1417
      %v1645 = vpop.f32.mrf.mxu0
      %v1646 = vadd.f32 %v1612, %v1645
      %v1647 = vpop.f32.mrf.mxu0
      %v1648 = vadd.f32 %v1614, %v1647
      %1649 = vdwg.mxu0
      %1650 = vmatpush.bf16.msra.mxu0 0
      %1651 = vmatpush.bf16.msra.mxu0 0
      %1652 = vmatpush.bf16.msra.mxu0 0
      %1653 = vmatpush.bf16.msra.mxu0 0
      %1654 = vmatpush.bf16.msra.mxu0 0
      %1655 = vmatpush.bf16.msra.mxu0 0
      %1656 = vmatpush.bf16.msra.mxu0 %v1548
      %1657 = vmatpush.bf16.msra.mxu0 %v1547
      %1658 = vmatmul.bf16.gmra.mxu0 %v1568
      %v1659 = vpop.f32.mrf.mxu0
      %v1660 = vadd.f32 %v1626, %v1659
      %v1661 = vpop.f32.mrf.mxu0
      %v1662 = vadd.f32 %v1628, %v1661
      %1663 = vmatmul.bf16.gmra.mxu0 %v1571
      %v1664 = vpop.f32.mrf.mxu0
      %v1665 = vadd.f32 %v1631, %v1664
      %v1666 = vpop.f32.mrf.mxu0
      %v1667 = vadd.f32 %v1633, %v1666
      %1668 = vmatmul.bf16.gmra.mxu0 %v1574
      %v1669 = vpop.f32.mrf.mxu0
      %v1670 = vadd.f32 %v1636, %v1669
      %v1671 = vpop.f32.mrf.mxu0
      %v1672 = vadd.f32 %v1638, %v1671
      %1673 = vmatmul.bf16.gmra.mxu0 %v1577
      %v1674 = vpop.f32.mrf.mxu0
      %v1675 = vadd.f32 %v1641, %v1674
      %v1676 = vpop.f32.mrf.mxu0
      %v1677 = vadd.f32 %v1643, %v1676
      %1678 = vmatmul.bf16.gmra.mxu0 %v1580
      %v1679 = vpop.f32.mrf.mxu0
      %v1680 = vadd.f32 %v1646, %v1679
      %v1681 = vpop.f32.mrf.mxu0
      %v1682 = vadd.f32 %v1648, %v1681
      %1683 = vdwg.mxu0
      %v1684 = vmax.f32 %v1660, 0.0
      %v1685 = vmax.f32 %v1662, 0.0
      %v1686 = vmax.f32 %v1665, 0.0
      %v1687 = vmax.f32 %v1667, 0.0
      %v1688 = vmax.f32 %v1670, 0.0
      %v1689 = vmax.f32 %v1672, 0.0
      %v1690 = vmax.f32 %v1675, 0.0
      %v1691 = vmax.f32 %v1677, 0.0
      %v1692 = vmax.f32 %v1680, 0.0
      %v1693 = vmax.f32 %v1682, 0.0
      %v1703 = vrot.slane %v1685, 2
      %v1704 = vrot.slane %v1686, 2
      %v1705 = vsel %vm567, %v1703, %v1704
      %v1706 = vrot.slane %v1687, 2
      %v1707 = vsel %vm567, %v1704, %v1706
      %v1708 = vrot.slane %v1688, 2
      %v1709 = vsel %vm567, %v1706, %v1708
      %v1710 = vrot.slane %v1689, 2
      %v1711 = vsel %vm567, %v1708, %v1710
      %v1712 = vrot.slane %v1690, 2
      %v1713 = vsel %vm567, %v1710, %v1712
      %v1714 = vrot.slane %v1691, 2
      %v1715 = vsel %vm567, %v1712, %v1714
      %v1716 = vrot.slane %v1692, 2
      %v1717 = vsel %vm567, %v1714, %v1716
      %v1718 = vrot.slane %v1693, 2
      %v1719 = vsel %vm567, %v1716, %v1718
      %v1729 = vmax.f32 %v1684, %v1705
      %v1730 = vmax.f32 %v1685, %v1707
      %v1731 = vmax.f32 %v1686, %v1709
      %v1732 = vmax.f32 %v1687, %v1711
      %v1733 = vmax.f32 %v1688, %v1713
      %v1734 = vmax.f32 %v1689, %v1715
      %v1735 = vmax.f32 %v1690, %v1717
      %v1736 = vmax.f32 %v1691, %v1719
      %v1737 = vmax.f32 %v1692, %v1718
      %v1747 = vrot.slane %v1729, 1
      %v1748 = vrot.slane %v1730, 1
      %v1749 = vsel %vm754, %v1747, %v1748
      %v1750 = vrot.slane %v1731, 1
      %v1751 = vsel %vm754, %v1748, %v1750
      %v1752 = vrot.slane %v1732, 1
      %v1753 = vsel %vm754, %v1750, %v1752
      %v1754 = vrot.slane %v1733, 1
      %v1755 = vsel %vm754, %v1752, %v1754
      %v1756 = vrot.slane %v1734, 1
      %v1757 = vsel %vm754, %v1754, %v1756
      %v1758 = vrot.slane %v1735, 1
      %v1759 = vsel %vm754, %v1756, %v1758
      %v1760 = vrot.slane %v1736, 1
      %v1761 = vsel %vm754, %v1758, %v1760
      %v1762 = vrot.slane %v1737, 1
      %v1763 = vsel %vm754, %v1760, %v1762
      %v1773 = vmax.f32 %v1729, %v1749
      %v1774 = vmax.f32 %v1730, %v1751
      %v1775 = vmax.f32 %v1731, %v1753
      %v1776 = vmax.f32 %v1732, %v1755
      %v1777 = vmax.f32 %v1733, %v1757
      %v1778 = vmax.f32 %v1734, %v1759
      %v1779 = vmax.f32 %v1735, %v1761
      %v1780 = vmax.f32 %v1736, %v1763
      %v1781 = vmax.f32 %v1737, %v1762
      %1782 = vst.msk [vmem:[#allocation5] sm:$0xff] %vm1352, %v1773
      %1783 = vst.msk [vmem:[#allocation5 + $0x8] sm:$0xff] %vm1352, %v1774
      %1784 = vst.msk [vmem:[#allocation5 + $0x10] sm:$0xff] %vm1352, %v1775
      %1785 = vst.msk [vmem:[#allocation5 + $0x18] sm:$0xff] %vm1352, %v1776
      %1786 = vst.msk [vmem:[#allocation5 + $0x20] sm:$0xff] %vm1352, %v1777
      %1787 = vst.msk [vmem:[#allocation5 + $0x28] sm:$0xff] %vm1352, %v1778
      %1788 = vst.msk [vmem:[#allocation5 + $0x30] sm:$0xff] %vm1352, %v1779
      %1789 = vst.msk [vmem:[#allocation5 + $0x38] sm:$0xff] %vm1352, %v1780
      %vm1790 = vcmask 520192
      %1791 = vst.msk [vmem:[#allocation5 + $0x40] sm:$0x1f] %vm1790, %v1781
      %1792 = vst.msk [vmem:[#allocation3] sm:$0xff] %vm1352, 0.0
      %1793 = vst.msk [vmem:[#allocation3 + $0x8] sm:$0xff] %vm1352, 0.0
      %1794 = vst.msk [vmem:[#allocation3 + $0x10] sm:$0xff] %vm1352, 0.0
      %1795 = vst.msk [vmem:[#allocation3 + $0x18] sm:$0xff] %vm1352, 0.0
      %1796 = vst.msk [vmem:[#allocation3 + $0x20] sm:$0xff] %vm1352, 0.0
      %vm1797 = vcmask 517120
      %1798 = vst.msk [vmem:[#allocation3 + $0x28] sm:$0x3] %vm1797, 0.0
      %v1799 = vld [vmem:[#allocation5] ss:$2 sm:$0xf]
      %vm1800 = vcmask 519168
      %1801 = vst.msk [vmem:[#allocation3 + $0x7] sm:$0xf] %vm1800, %v1799
      %s1802 = scalar_lea.vmem [#allocation5], 20
      %v1803 = vld [vmem:[%s1802] ss:$2 sm:$0xf]
      %1804 = vst.msk [vmem:[#allocation3 + $0xd] sm:$0xf] %vm1800, %v1803
      %s1805 = scalar_lea.vmem [#allocation5], 40
      %v1806 = vld [vmem:[%s1805] ss:$2 sm:$0xf]
      %1807 = vst.msk [vmem:[#allocation3 + $0x13] sm:$0xf] %vm1800, %v1806
      %s1808 = scalar_lea.vmem [#allocation5], 60
      %v1809 = vld [vmem:[%s1808] ss:$2 sm:$0xf]
      %1810 = vst.msk [vmem:[#allocation3 + $0x19] sm:$0xf] %vm1800, %v1809
      %v1811 = vld [vmem:[#allocation3] sm:$0xff]
      %v1812 = vld [vmem:[#allocation3 + $0x8] sm:$0xff]
      %v1813 = vld [vmem:[#allocation3 + $0x10] sm:$0xff]
      %v1814 = vpack.c.bf16 %v1811, %v1811
      %v1815 = vpack.c.bf16 %v1812, %v1812
      %v1816 = vpack.c.bf16 %v1813, %v1813
      %v1817 = vld [vmem:[#allocation3 + $0x1] sm:$0xff]
      %v1818 = vld [vmem:[#allocation3 + $0x9] sm:$0xff]
      %v1819 = vld [vmem:[#allocation3 + $0x11] sm:$0xff]
      %v1820 = vpack.c.bf16 %v1817, %v1817
      %v1821 = vpack.c.bf16 %v1818, %v1818
      %v1822 = vpack.c.bf16 %v1819, %v1819
      %v1823 = vld [vmem:[#allocation3 + $0x2] sm:$0xff]
      %v1824 = vld [vmem:[#allocation3 + $0xa] sm:$0xff]
      %v1825 = vld [vmem:[#allocation3 + $0x12] sm:$0xff]
      %v1826 = vpack.c.bf16 %v1823, %v1823
      %v1827 = vpack.c.bf16 %v1824, %v1824
      %v1828 = vpack.c.bf16 %v1825, %v1825
      %v1829 = vld [vmem:[#allocation3 + $0x6] sm:$0xff]
      %v1830 = vld [vmem:[#allocation3 + $0xe] sm:$0xff]
      %v1831 = vld [vmem:[#allocation3 + $0x16] sm:$0xff]
      %v1832 = vpack.c.bf16 %v1829, %v1829
      %v1833 = vpack.c.bf16 %v1830, %v1830
      %v1834 = vpack.c.bf16 %v1831, %v1831
      %v1835 = vld [vmem:[#allocation3 + $0x7] sm:$0xff]
      %v1836 = vld [vmem:[#allocation3 + $0xf] sm:$0xff]
      %v1837 = vld [vmem:[#allocation3 + $0x17] sm:$0xff]
      %v1838 = vpack.c.bf16 %v1835, %v1835
      %v1839 = vpack.c.bf16 %v1836, %v1836
      %v1840 = vpack.c.bf16 %v1837, %v1837
      %v1841 = vld [vmem:[#allocation3 + $0x18] sm:$0xff]
      %v1842 = vpack.c.bf16 %v1841, %v1841
      %v1843 = vld [vmem:[#allocation3 + $0xc] sm:$0xff]
      %v1844 = vld [vmem:[#allocation3 + $0x14] sm:$0xff]
      %v1845 = vld [vmem:[#allocation3 + $0x1c] sm:$0xff]
      %v1846 = vpack.c.bf16 %v1843, %v1843
      %v1847 = vpack.c.bf16 %v1844, %v1844
      %v1848 = vpack.c.bf16 %v1845, %v1845
      %v1849 = vld [vmem:[#allocation3 + $0xd] sm:$0xff]
      %v1850 = vld [vmem:[#allocation3 + $0x15] sm:$0xff]
      %v1851 = vld [vmem:[#allocation3 + $0x1d] sm:$0xff]
      %v1852 = vpack.c.bf16 %v1849, %v1849
      %v1853 = vpack.c.bf16 %v1850, %v1850
      %v1854 = vpack.c.bf16 %v1851, %v1851
      %v1855 = vld [vmem:[#allocation3 + $0x1e] sm:$0xff]
      %v1856 = vpack.c.bf16 %v1855, %v1855
      %v1860 = vunpack.c.l.b16 %v1814
      %v1861 = vunpack.c.l.b16 %v1815
      %v1862 = vunpack.c.l.b16 %v1816
      %v1863 = vpack.c.b16 %v1861, %v1860
      %v1864 = vpack.c.b16 %v1862, %v1862
      %v1868 = vunpack.c.l.b16 %v1820
      %v1869 = vunpack.c.l.b16 %v1821
      %v1870 = vunpack.c.l.b16 %v1822
      %v1871 = vpack.c.b16 %v1869, %v1868
      %v1872 = vpack.c.b16 %v1870, %v1870
      %1873 = vrot.lane.b32.xlu0 %v1871, 64
      %v1874 = vpop.permute.xlu0 %1873
      %1875 = vrot.lane.b32.xlu0 %v1872, 64
      %v1876 = vpop.permute.xlu0 %1875
      %v1880 = vunpack.c.l.b16 %v1826
      %v1881 = vunpack.c.l.b16 %v1827
      %v1882 = vunpack.c.l.b16 %v1828
      %v1883 = vpack.c.b16 %v1881, %v1880
      %v1884 = vpack.c.b16 %v1882, %v1882
      %v1888 = vunpack.c.l.b16 %v1832
      %v1889 = vunpack.c.l.b16 %v1833
      %v1890 = vunpack.c.l.b16 %v1834
      %v1891 = vpack.c.b16 %v1889, %v1888
      %v1892 = vpack.c.b16 %v1890, %v1890
      %1893 = vrot.lane.b32.xlu0 %v1891, 64
      %v1894 = vpop.permute.xlu0 %1893
      %1895 = vrot.lane.b32.xlu0 %v1892, 64
      %v1896 = vpop.permute.xlu0 %1895
      %v1900 = vunpack.c.l.b16 %v1838
      %v1901 = vunpack.c.l.b16 %v1839
      %v1902 = vunpack.c.l.b16 %v1840
      %v1903 = vpack.c.b16 %v1901, %v1900
      %v1904 = vpack.c.b16 %v1902, %v1902
      %v1906 = vunpack.c.l.b16 %v1842
      %v1907 = vpack.c.b16 %v1862, %v1861
      %v1908 = vpack.c.b16 %v1906, %v1906
      %1909 = vrot.lane.b32.xlu0 %v1907, 64
      %v1910 = vpop.permute.xlu0 %1909
      %1911 = vrot.lane.b32.xlu0 %v1908, 64
      %v1912 = vpop.permute.xlu0 %1911
      %v1916 = vunpack.c.l.b16 %v1846
      %v1917 = vunpack.c.l.b16 %v1847
      %v1918 = vunpack.c.l.b16 %v1848
      %v1919 = vpack.c.b16 %v1917, %v1916
      %v1920 = vpack.c.b16 %v1918, %v1918
      %v1924 = vunpack.c.l.b16 %v1852
      %v1925 = vunpack.c.l.b16 %v1853
      %v1926 = vunpack.c.l.b16 %v1854
      %v1927 = vpack.c.b16 %v1925, %v1924
      %v1928 = vpack.c.b16 %v1926, %v1926
      %1929 = vrot.lane.b32.xlu0 %v1927, 64
      %v1930 = vpop.permute.xlu0 %1929
      %1931 = vrot.lane.b32.xlu0 %v1928, 64
      %v1932 = vpop.permute.xlu0 %1931
      %v1934 = vunpack.c.l.b16 %v1856
      %v1935 = vpack.c.b16 %v1890, %v1889
      %v1936 = vpack.c.b16 %v1934, %v1934
      %v1939 = vsel %vm1352, %v1863, %v1874
      %v1943 = vsel %vm1352, %v1864, %v1876
      %v1947 = vsel %vm1352, %v1883, %v1894
      %v1951 = vsel %vm1352, %v1884, %v1896
      %v1955 = vsel %vm1352, %v1903, %v1910
      %v1959 = vsel %vm1352, %v1904, %v1912
      %v1963 = vsel %vm1352, %v1919, %v1930
      %v1967 = vsel %vm1352, %v1920, %v1932
      %v1969 = vld [vmem:[%s5] sm:$0xf]
      %v1970 = vld [vmem:[%s5 + $0x4] sm:$0xf]
      %v1971 = vld [vmem:[%s5 + $0x8] sm:$0xf]
      %v1972 = vld [vmem:[%s5 + $0xc] sm:$0xf]
      %v1973 = vld [vmem:[%s5 + $0x10] sm:$0xf]
      %v1974 = vld [vmem:[%s5 + $0x14] sm:$0xf]
      %v1975 = vld [vmem:[%s5 + $0x18] sm:$0xf]
      %v1976 = vld [vmem:[%s5 + $0x1c] sm:$0xf]
      %v1977 = vld [vmem:[%s5 + $0x20] sm:$0xf]
      %v1978 = vld [vmem:[%s5 + $0x24] sm:$0xf]
      %v1979 = vld [vmem:[%s5 + $0x28] sm:$0xf]
      %v1980 = vld [vmem:[%s5 + $0x2c] sm:$0xf]
      %v1981 = vld [vmem:[%s5 + $0x30] sm:$0xf]
      %v1982 = vld [vmem:[%s5 + $0x34] sm:$0xf]
      %v1983 = vld [vmem:[%s5 + $0x38] sm:$0xf]
      %v1984 = vld [vmem:[%s5 + $0x3c] sm:$0xf]
      %v1985 = vld [vmem:[%s5 + $0x40] sm:$0xf]
      %v1986 = vld [vmem:[%s5 + $0x44] sm:$0xf]
      %v1987 = vld [vmem:[%s5 + $0x48] sm:$0xf]
      %v1988 = vld [vmem:[%s5 + $0x4c] sm:$0xf]
      %v1989 = vld [vmem:[%s5 + $0x50] sm:$0xf]
      %v1990 = vld [vmem:[%s5 + $0x54] sm:$0xf]
      %v1991 = vld [vmem:[%s5 + $0x58] sm:$0xf]
      %v1992 = vld [vmem:[%s5 + $0x5c] sm:$0xf]
      %v1993 = vld [vmem:[%s5 + $0x60] sm:$0xf]
      %v1994 = vld [vmem:[%s5 + $0x64] sm:$0xf]
      %v1995 = vld [vmem:[%s5 + $0x68] sm:$0xf]
      %v1996 = vld [vmem:[%s5 + $0x6c] sm:$0xf]
      %v1997 = vld [vmem:[%s5 + $0x70] sm:$0xf]
      %v1998 = vld [vmem:[%s5 + $0x74] sm:$0xf]
      %v1999 = vld [vmem:[%s5 + $0x78] sm:$0xf]
      %v2000 = vld [vmem:[%s5 + $0x7c] sm:$0xf]
      %v2001 = vld [vmem:[%s5 + $0x80] sm:$0xf]
      %v2002 = vld [vmem:[%s5 + $0x84] sm:$0xf]
      %v2003 = vld [vmem:[%s5 + $0x88] sm:$0xf]
      %v2004 = vld [vmem:[%s5 + $0x8c] sm:$0xf]
      %v2005 = vld [vmem:[%s5 + $0x90] sm:$0xf]
      %v2006 = vld [vmem:[%s5 + $0x94] sm:$0xf]
      %v2007 = vld [vmem:[%s5 + $0x98] sm:$0xf]
      %v2008 = vld [vmem:[%s5 + $0x9c] sm:$0xf]
      %v2009 = vld [vmem:[%s5 + $0xa0] sm:$0xf]
      %v2010 = vld [vmem:[%s5 + $0xa4] sm:$0xf]
      %v2011 = vld [vmem:[%s5 + $0xa8] sm:$0xf]
      %v2012 = vld [vmem:[%s5 + $0xac] sm:$0xf]
      %v2013 = vld [vmem:[%s5 + $0xb0] sm:$0xf]
      %v2014 = vld [vmem:[%s5 + $0xb4] sm:$0xf]
      %v2015 = vld [vmem:[%s5 + $0xb8] sm:$0xf]
      %v2016 = vld [vmem:[%s5 + $0xbc] sm:$0xf]
      %v2017 = vld [vmem:[%s5 + $0xc0] sm:$0xf]
      %v2018 = vld [vmem:[%s5 + $0xc4] sm:$0xf]
      %v2019 = vld [vmem:[%s5 + $0xc8] sm:$0xf]
      %v2020 = vld [vmem:[%s5 + $0xcc] sm:$0xf]
      %v2021 = vld [vmem:[%s5 + $0xd0] sm:$0xf]
      %v2022 = vld [vmem:[%s5 + $0xd4] sm:$0xf]
      %v2023 = vld [vmem:[%s5 + $0xd8] sm:$0xf]
      %v2024 = vld [vmem:[%s5 + $0xdc] sm:$0xf]
      %v2025 = vld [vmem:[%s5 + $0xe0] sm:$0xf]
      %v2026 = vld [vmem:[%s5 + $0xe4] sm:$0xf]
      %v2027 = vld [vmem:[%s5 + $0xe8] sm:$0xf]
      %v2028 = vld [vmem:[%s5 + $0xec] sm:$0xf]
      %v2029 = vld [vmem:[%s5 + $0xf0] sm:$0xf]
      %v2030 = vld [vmem:[%s5 + $0xf4] sm:$0xf]
      %v2031 = vld [vmem:[%s5 + $0xf8] sm:$0xf]
      %v2032 = vld [vmem:[%s5 + $0xfc] sm:$0xf]
      %v2033 = vld [vmem:[%s5 + $0x100] sm:$0xf]
      %v2034 = vld [vmem:[%s5 + $0x104] sm:$0xf]
      %v2035 = vld [vmem:[%s5 + $0x108] sm:$0xf]
      %v2036 = vld [vmem:[%s5 + $0x10c] sm:$0xf]
      %v2037 = vld [vmem:[%s5 + $0x110] sm:$0xf]
      %v2038 = vld [vmem:[%s5 + $0x114] sm:$0xf]
      %v2039 = vld [vmem:[%s5 + $0x118] sm:$0xf]
      %v2040 = vld [vmem:[%s5 + $0x11c] sm:$0xf]
      %v2041 = vld [vmem:[%s6] sm:$0x1]
      %v2043 = vperm.slane %v2041, 0
      %v2117 = vunpack.c.l.b16 %v1969
      %v2118 = vunpack.c.l.b16 %v1970
      %v2119 = vunpack.c.l.b16 %v1971
      %v2120 = vunpack.c.l.b16 %v1972
      %v2121 = vunpack.c.l.b16 %v1973
      %v2122 = vunpack.c.l.b16 %v1974
      %v2123 = vunpack.c.l.b16 %v1975
      %v2124 = vunpack.c.l.b16 %v1976
      %v2125 = vunpack.c.l.b16 %v1977
      %v2126 = vunpack.c.l.b16 %v1978
      %v2127 = vunpack.c.l.b16 %v1979
      %v2128 = vunpack.c.l.b16 %v1980
      %v2129 = vunpack.c.l.b16 %v1981
      %v2130 = vunpack.c.l.b16 %v1982
      %v2131 = vunpack.c.l.b16 %v1983
      %v2132 = vunpack.c.l.b16 %v1984
      %v2133 = vunpack.c.l.b16 %v1985
      %v2134 = vunpack.c.l.b16 %v1986
      %v2135 = vunpack.c.l.b16 %v1987
      %v2136 = vunpack.c.l.b16 %v1988
      %v2137 = vunpack.c.l.b16 %v1989
      %v2138 = vunpack.c.l.b16 %v1990
      %v2139 = vunpack.c.l.b16 %v1991
      %v2140 = vunpack.c.l.b16 %v1992
      %v2141 = vunpack.c.l.b16 %v1993
      %v2142 = vunpack.c.l.b16 %v1994
      %v2143 = vunpack.c.l.b16 %v1995
      %v2144 = vunpack.c.l.b16 %v1996
      %v2145 = vunpack.c.l.b16 %v1997
      %v2146 = vunpack.c.l.b16 %v1998
      %v2147 = vunpack.c.l.b16 %v1999
      %v2148 = vunpack.c.l.b16 %v2000
      %v2149 = vunpack.c.l.b16 %v2001
      %v2150 = vunpack.c.l.b16 %v2002
      %v2151 = vunpack.c.l.b16 %v2003
      %v2152 = vunpack.c.l.b16 %v2004
      %v2153 = vunpack.c.l.b16 %v2005
      %v2154 = vunpack.c.l.b16 %v2006
      %v2155 = vunpack.c.l.b16 %v2007
      %v2156 = vunpack.c.l.b16 %v2008
      %v2157 = vunpack.c.l.b16 %v2009
      %v2158 = vunpack.c.l.b16 %v2010
      %v2159 = vunpack.c.l.b16 %v2011
      %v2160 = vunpack.c.l.b16 %v2012
      %v2161 = vunpack.c.l.b16 %v2013
      %v2162 = vunpack.c.l.b16 %v2014
      %v2163 = vunpack.c.l.b16 %v2015
      %v2164 = vunpack.c.l.b16 %v2016
      %v2165 = vunpack.c.l.b16 %v2017
      %v2166 = vunpack.c.l.b16 %v2018
      %v2167 = vunpack.c.l.b16 %v2019
      %v2168 = vunpack.c.l.b16 %v2020
      %v2169 = vunpack.c.l.b16 %v2021
      %v2170 = vunpack.c.l.b16 %v2022
      %v2171 = vunpack.c.l.b16 %v2023
      %v2172 = vunpack.c.l.b16 %v2024
      %v2173 = vunpack.c.l.b16 %v2025
      %v2174 = vunpack.c.l.b16 %v2026
      %v2175 = vunpack.c.l.b16 %v2027
      %v2176 = vunpack.c.l.b16 %v2028
      %v2177 = vunpack.c.l.b16 %v2029
      %v2178 = vunpack.c.l.b16 %v2030
      %v2179 = vunpack.c.l.b16 %v2031
      %v2180 = vunpack.c.l.b16 %v2032
      %v2181 = vunpack.c.l.b16 %v2033
      %v2182 = vunpack.c.l.b16 %v2034
      %v2183 = vunpack.c.l.b16 %v2035
      %v2184 = vunpack.c.l.b16 %v2036
      %v2185 = vunpack.c.l.b16 %v2037
      %v2186 = vunpack.c.l.b16 %v2038
      %v2187 = vunpack.c.l.b16 %v2039
      %v2188 = vunpack.c.l.b16 %v2040
      %v2189 = vpack.c.b16 %v2118, %v2117
      %v2190 = vpack.c.b16 %v2120, %v2119
      %v2191 = vpack.c.b16 %v2122, %v2121
      %v2192 = vpack.c.b16 %v2124, %v2123
      %v2193 = vpack.c.b16 %v2126, %v2125
      %v2194 = vpack.c.b16 %v2128, %v2127
      %v2195 = vpack.c.b16 %v2130, %v2129
      %v2196 = vpack.c.b16 %v2132, %v2131
      %v2197 = vpack.c.b16 %v2134, %v2133
      %v2198 = vpack.c.b16 %v2136, %v2135
      %v2199 = vpack.c.b16 %v2138, %v2137
      %v2200 = vpack.c.b16 %v2140, %v2139
      %v2201 = vpack.c.b16 %v2142, %v2141
      %v2202 = vpack.c.b16 %v2144, %v2143
      %v2203 = vpack.c.b16 %v2146, %v2145
      %v2204 = vpack.c.b16 %v2148, %v2147
      %v2205 = vpack.c.b16 %v2150, %v2149
      %v2206 = vpack.c.b16 %v2152, %v2151
      %v2207 = vpack.c.b16 %v2154, %v2153
      %v2208 = vpack.c.b16 %v2156, %v2155
      %v2209 = vpack.c.b16 %v2158, %v2157
      %v2210 = vpack.c.b16 %v2160, %v2159
      %v2211 = vpack.c.b16 %v2162, %v2161
      %v2212 = vpack.c.b16 %v2164, %v2163
      %v2213 = vpack.c.b16 %v2166, %v2165
      %v2214 = vpack.c.b16 %v2168, %v2167
      %v2215 = vpack.c.b16 %v2170, %v2169
      %v2216 = vpack.c.b16 %v2172, %v2171
      %v2217 = vpack.c.b16 %v2174, %v2173
      %v2218 = vpack.c.b16 %v2176, %v2175
      %v2219 = vpack.c.b16 %v2178, %v2177
      %v2220 = vpack.c.b16 %v2180, %v2179
      %v2221 = vpack.c.b16 %v2182, %v2181
      %v2222 = vpack.c.b16 %v2184, %v2183
      %v2223 = vpack.c.b16 %v2186, %v2185
      %v2224 = vpack.c.b16 %v2188, %v2187
      %v2262 = vsel %vm1352, %v1935, 0
      %v2265 = vsel %vm1352, %v1936, 0
      %2267 = vmatpush.bf16.msra.mxu0 %v2196
      %2268 = vmatpush.bf16.msra.mxu0 %v2195
      %2269 = vmatpush.bf16.msra.mxu0 %v2194
      %2270 = vmatpush.bf16.msra.mxu0 %v2193
      %2271 = vmatpush.bf16.msra.mxu0 %v2192
      %2272 = vmatpush.bf16.msra.mxu0 %v2191
      %2273 = vmatpush.bf16.msra.mxu0 %v2190
      %2274 = vmatpush.bf16.msra.mxu0 %v2189
      %2275 = vmatmul.bf16.gmra.mxu0 %v1939
      %v2276 = vpop.f32.mrf.mxu0
      %v2277 = vadd.f32 %v2043, %v2276
      %v2278 = vpop.f32.mrf.mxu0
      %v2279 = vadd.f32 %v2043, %v2278
      %2280 = vmatmul.bf16.gmra.mxu0 %v1943
      %v2281 = vpop.f32.mrf.mxu0
      %v2282 = vadd.f32 %v2043, %v2281
      %v2283 = vpop.f32.mrf.mxu0
      %2284 = vdwg.mxu0
      %2285 = vmatpush.bf16.msra.mxu0 %v2204
      %2286 = vmatpush.bf16.msra.mxu0 %v2203
      %2287 = vmatpush.bf16.msra.mxu0 %v2202
      %2288 = vmatpush.bf16.msra.mxu0 %v2201
      %2289 = vmatpush.bf16.msra.mxu0 %v2200
      %2290 = vmatpush.bf16.msra.mxu0 %v2199
      %2291 = vmatpush.bf16.msra.mxu0 %v2198
      %2292 = vmatpush.bf16.msra.mxu0 %v2197
      %2293 = vmatmul.bf16.gmra.mxu0 %v1947
      %v2294 = vpop.f32.mrf.mxu0
      %v2295 = vadd.f32 %v2277, %v2294
      %v2296 = vpop.f32.mrf.mxu0
      %v2297 = vadd.f32 %v2279, %v2296
      %2298 = vmatmul.bf16.gmra.mxu0 %v1951
      %v2299 = vpop.f32.mrf.mxu0
      %v2300 = vadd.f32 %v2282, %v2299
      %v2301 = vpop.f32.mrf.mxu0
      %2302 = vdwg.mxu0
      %2303 = vmatpush.bf16.msra.mxu0 %v2212
      %2304 = vmatpush.bf16.msra.mxu0 %v2211
      %2305 = vmatpush.bf16.msra.mxu0 %v2210
      %2306 = vmatpush.bf16.msra.mxu0 %v2209
      %2307 = vmatpush.bf16.msra.mxu0 %v2208
      %2308 = vmatpush.bf16.msra.mxu0 %v2207
      %2309 = vmatpush.bf16.msra.mxu0 %v2206
      %2310 = vmatpush.bf16.msra.mxu0 %v2205
      %2311 = vmatmul.bf16.gmra.mxu0 %v1955
      %v2312 = vpop.f32.mrf.mxu0
      %v2313 = vadd.f32 %v2295, %v2312
      %v2314 = vpop.f32.mrf.mxu0
      %v2315 = vadd.f32 %v2297, %v2314
      %2316 = vmatmul.bf16.gmra.mxu0 %v1959
      %v2317 = vpop.f32.mrf.mxu0
      %v2318 = vadd.f32 %v2300, %v2317
      %v2319 = vpop.f32.mrf.mxu0
      %2320 = vdwg.mxu0
      %2321 = vmatpush.bf16.msra.mxu0 %v2220
      %2322 = vmatpush.bf16.msra.mxu0 %v2219
      %2323 = vmatpush.bf16.msra.mxu0 %v2218
      %2324 = vmatpush.bf16.msra.mxu0 %v2217
      %2325 = vmatpush.bf16.msra.mxu0 %v2216
      %2326 = vmatpush.bf16.msra.mxu0 %v2215
      %2327 = vmatpush.bf16.msra.mxu0 %v2214
      %2328 = vmatpush.bf16.msra.mxu0 %v2213
      %2329 = vmatmul.bf16.gmra.mxu0 %v1963
      %v2330 = vpop.f32.mrf.mxu0
      %v2331 = vadd.f32 %v2313, %v2330
      %v2332 = vpop.f32.mrf.mxu0
      %v2333 = vadd.f32 %v2315, %v2332
      %2334 = vmatmul.bf16.gmra.mxu0 %v1967
      %v2335 = vpop.f32.mrf.mxu0
      %v2336 = vadd.f32 %v2318, %v2335
      %v2337 = vpop.f32.mrf.mxu0
      %2338 = vdwg.mxu0
      %2339 = vmatpush.bf16.msra.mxu0 0
      %2340 = vmatpush.bf16.msra.mxu0 0
      %2341 = vmatpush.bf16.msra.mxu0 0
      %2342 = vmatpush.bf16.msra.mxu0 0
      %2343 = vmatpush.bf16.msra.mxu0 %v2224
      %2344 = vmatpush.bf16.msra.mxu0 %v2223
      %2345 = vmatpush.bf16.msra.mxu0 %v2222
      %2346 = vmatpush.bf16.msra.mxu0 %v2221
      %2347 = vmatmul.bf16.gmra.mxu0 %v2262
      %v2348 = vpop.f32.mrf.mxu0
      %v2349 = vadd.f32 %v2331, %v2348
      %v2350 = vpop.f32.mrf.mxu0
      %v2351 = vadd.f32 %v2333, %v2350
      %2352 = vmatmul.bf16.gmra.mxu0 %v2265
      %v2353 = vpop.f32.mrf.mxu0
      %v2354 = vadd.f32 %v2336, %v2353
      %v2355 = vpop.f32.mrf.mxu0
      %2356 = vdwg.mxu0
      %v2357 = vmax.f32 %v2349, 0.0
      %v2358 = vmax.f32 %v2351, 0.0
      %v2359 = vmax.f32 %v2354, 0.0
      %vm2363 = vcmask 1041408
      %v2364 = vrot.slane %v2357, 6
      %v2365 = vrot.slane %v2358, 6
      %v2366 = vsel %vm2363, %v2364, %v2365
      %v2367 = vrot.slane %v2359, 6
      %v2368 = vsel %vm2363, %v2365, %v2367
      %v2372 = vmax.f32 %v2357, %v2366
      %v2373 = vmax.f32 %v2358, %v2368
      %v2374 = vmax.f32 %v2359, %v2367
      %v2378 = vrot.slane %v2372, 1
      %v2379 = vrot.slane %v2373, 1
      %v2380 = vsel %vm754, %v2378, %v2379
      %v2381 = vrot.slane %v2374, 1
      %v2382 = vsel %vm754, %v2379, %v2381
      %v2385 = vmax.f32 %v2372, %v2380
      %v2386 = vmax.f32 %v2373, %v2382
      %v2388 = vrot.slane %v2385, 2
      %2389 = vrot.lane.b32.xlu0 %v2388, 64
      %v2390 = vpop.permute.xlu0 %2389
      %v2393 = vrot.slane %v2386, 4
      %v2395 = vrot.slane %v2386, 6
      %2396 = vrot.lane.b32.xlu0 %v2395, 64
      %v2397 = vpop.permute.xlu0 %2396
      %v2399 = vsel %vm1352, %v2385, %v2390
      %v2400 = vsel %vm1352, %v2393, %v2397
      %v2401 = vpack.c.bf16 %v2399, %v2399
      %v2402 = vpack.c.bf16 %v2400, %v2400
      %v2403 = vld [vmem:[%s7] sm:$0xff]
      %v2404 = vld [vmem:[%s7 + $0x8] sm:$0xff]
      %v2405 = vld [vmem:[%s7 + $0x10] sm:$0xff]
      %v2406 = vld [vmem:[%s7 + $0x18] sm:$0xff]
      %v2407 = vld [vmem:[%s7 + $0x20] sm:$0xff]
      %v2408 = vld [vmem:[%s7 + $0x28] sm:$0xff]
      %v2409 = vld [vmem:[%s7 + $0x30] sm:$0xff]
      %v2410 = vld [vmem:[%s7 + $0x38] sm:$0xff]
      %v2411 = vld [vmem:[%s7 + $0x40] sm:$0xff]
      %v2412 = vld [vmem:[%s7 + $0x48] sm:$0xff]
      %v2413 = vld [vmem:[%s7 + $0x50] sm:$0xff]
      %v2414 = vld [vmem:[%s7 + $0x58] sm:$0xff]
      %v2415 = vld [vmem:[%s7 + $0x60] sm:$0xff]
      %v2416 = vld [vmem:[%s7 + $0x68] sm:$0xff]
      %v2417 = vld [vmem:[%s7 + $0x70] sm:$0xff]
      %v2418 = vld [vmem:[%s7 + $0x78] sm:$0xff]
      %v2419 = vld [vmem:[%s7 + $0x80] sm:$0xff]
      %v2420 = vld [vmem:[%s7 + $0x88] sm:$0xff]
      %v2421 = vld [vmem:[%s7 + $0x90] sm:$0xff]
      %v2422 = vld [vmem:[%s7 + $0x98] sm:$0xff]
      %v2423 = vld [vmem:[%s7 + $0xa0] sm:$0xff]
      %v2424 = vld [vmem:[%s7 + $0xa8] sm:$0xff]
      %v2425 = vld [vmem:[%s7 + $0xb0] sm:$0xff]
      %v2426 = vld [vmem:[%s7 + $0xb8] sm:$0xff]
      %v2427 = vld [vmem:[%s7 + $0xc0] sm:$0xff]
      %v2428 = vld [vmem:[%s7 + $0xc8] sm:$0xff]
      %v2429 = vld [vmem:[%s7 + $0xd0] sm:$0xff]
      %v2430 = vld [vmem:[%s7 + $0xd8] sm:$0xff]
      %v2431 = vld [vmem:[%s7 + $0xe0] sm:$0xff]
      %v2432 = vld [vmem:[%s7 + $0xe8] sm:$0xff]
      %v2433 = vld [vmem:[%s7 + $0xf0] sm:$0xff]
      %v2434 = vld [vmem:[%s7 + $0xf8] sm:$0xff]
      %v2435 = vld [vmem:[%s7 + $0x100] sm:$0xff]
      %v2436 = vld [vmem:[%s7 + $0x108] sm:$0xff]
      %v2437 = vld [vmem:[%s7 + $0x110] sm:$0xff]
      %v2438 = vld [vmem:[%s7 + $0x118] sm:$0xff]
      %v2439 = vld [vmem:[%s7 + $0x120] sm:$0xff]
      %v2440 = vld [vmem:[%s7 + $0x128] sm:$0xff]
      %v2441 = vld [vmem:[%s7 + $0x130] sm:$0xff]
      %v2442 = vld [vmem:[%s7 + $0x138] sm:$0xff]
      %v2443 = vld [vmem:[%s7 + $0x140] sm:$0xff]
      %v2444 = vld [vmem:[%s7 + $0x148] sm:$0xff]
      %v2445 = vld [vmem:[%s7 + $0x150] sm:$0xff]
      %v2446 = vld [vmem:[%s7 + $0x158] sm:$0xff]
      %v2447 = vld [vmem:[%s7 + $0x160] sm:$0xff]
      %v2448 = vld [vmem:[%s7 + $0x168] sm:$0xff]
      %v2449 = vld [vmem:[%s7 + $0x170] sm:$0xff]
      %v2450 = vld [vmem:[%s7 + $0x178] sm:$0xff]
      %v2451 = vld [vmem:[%s7 + $0x180] sm:$0xff]
      %v2452 = vld [vmem:[%s7 + $0x188] sm:$0xff]
      %v2453 = vld [vmem:[%s7 + $0x190] sm:$0xff]
      %v2454 = vld [vmem:[%s7 + $0x198] sm:$0xff]
      %v2455 = vld [vmem:[%s7 + $0x1a0] sm:$0xff]
      %v2456 = vld [vmem:[%s7 + $0x1a8] sm:$0xff]
      %v2457 = vld [vmem:[%s7 + $0x1b0] sm:$0xff]
      %v2458 = vld [vmem:[%s7 + $0x1b8] sm:$0xff]
      %v2459 = vld [vmem:[%s7 + $0x1c0] sm:$0xff]
      %v2460 = vld [vmem:[%s7 + $0x1c8] sm:$0xff]
      %v2461 = vld [vmem:[%s7 + $0x1d0] sm:$0xff]
      %v2462 = vld [vmem:[%s7 + $0x1d8] sm:$0xff]
      %v2463 = vld [vmem:[%s7 + $0x1e0] sm:$0xff]
      %v2464 = vld [vmem:[%s7 + $0x1e8] sm:$0xff]
      %v2465 = vld [vmem:[%s7 + $0x1f0] sm:$0xff]
      %v2466 = vld [vmem:[%s7 + $0x1f8] sm:$0xff]
      %v2467 = vld [vmem:[%s7 + $0x200] sm:$0xff]
      %v2468 = vld [vmem:[%s7 + $0x208] sm:$0xff]
      %v2469 = vld [vmem:[%s7 + $0x210] sm:$0xff]
      %v2470 = vld [vmem:[%s7 + $0x218] sm:$0xff]
      %v2471 = vld [vmem:[%s7 + $0x220] sm:$0xff]
      %v2472 = vld [vmem:[%s7 + $0x228] sm:$0xff]
      %v2473 = vld [vmem:[%s7 + $0x230] sm:$0xff]
      %v2474 = vld [vmem:[%s7 + $0x238] sm:$0xff]
      %v2475 = vld [vmem:[%s7 + $0x240] sm:$0xff]
      %v2476 = vld [vmem:[%s7 + $0x248] sm:$0xff]
      %v2477 = vld [vmem:[%s7 + $0x250] sm:$0xff]
      %v2478 = vld [vmem:[%s7 + $0x258] sm:$0xff]
      %v2479 = vld [vmem:[%s7 + $0x260] sm:$0xff]
      %v2480 = vld [vmem:[%s7 + $0x268] sm:$0xff]
      %v2481 = vld [vmem:[%s7 + $0x270] sm:$0xff]
      %v2482 = vld [vmem:[%s7 + $0x278] sm:$0xff]
      %v2483 = vld [vmem:[%s7 + $0x280] sm:$0xff]
      %v2484 = vld [vmem:[%s7 + $0x288] sm:$0xff]
      %v2485 = vld [vmem:[%s7 + $0x290] sm:$0xff]
      %v2486 = vld [vmem:[%s7 + $0x298] sm:$0xff]
      %v2487 = vld [vmem:[%s7 + $0x2a0] sm:$0xff]
      %v2488 = vld [vmem:[%s7 + $0x2a8] sm:$0xff]
      %v2489 = vld [vmem:[%s7 + $0x2b0] sm:$0xff]
      %v2490 = vld [vmem:[%s7 + $0x2b8] sm:$0xff]
      %v2491 = vld [vmem:[%s7 + $0x2c0] sm:$0xff]
      %v2492 = vld [vmem:[%s7 + $0x2c8] sm:$0xff]
      %v2493 = vld [vmem:[%s7 + $0x2d0] sm:$0xff]
      %v2494 = vld [vmem:[%s7 + $0x2d8] sm:$0xff]
      %v2495 = vld [vmem:[%s7 + $0x2e0] sm:$0xff]
      %v2496 = vld [vmem:[%s7 + $0x2e8] sm:$0xff]
      %v2497 = vld [vmem:[%s7 + $0x2f0] sm:$0xff]
      %v2498 = vld [vmem:[%s7 + $0x2f8] sm:$0xff]
      %v2499 = vld [vmem:[%s7 + $0x300] sm:$0xff]
      %v2500 = vld [vmem:[%s7 + $0x308] sm:$0xff]
      %v2501 = vld [vmem:[%s7 + $0x310] sm:$0xff]
      %v2502 = vld [vmem:[%s7 + $0x318] sm:$0xff]
      %v2503 = vld [vmem:[%s7 + $0x320] sm:$0xff]
      %v2504 = vld [vmem:[%s7 + $0x328] sm:$0xff]
      %v2505 = vld [vmem:[%s7 + $0x330] sm:$0xff]
      %v2506 = vld [vmem:[%s7 + $0x338] sm:$0xff]
      %v2507 = vld [vmem:[%s7 + $0x340] sm:$0xff]
      %v2508 = vld [vmem:[%s7 + $0x348] sm:$0xff]
      %v2509 = vld [vmem:[%s7 + $0x350] sm:$0xff]
      %v2510 = vld [vmem:[%s7 + $0x358] sm:$0xff]
      %v2511 = vld [vmem:[%s7 + $0x360] sm:$0xff]
      %v2512 = vld [vmem:[%s7 + $0x368] sm:$0xff]
      %v2513 = vld [vmem:[%s7 + $0x370] sm:$0xff]
      %v2514 = vld [vmem:[%s7 + $0x378] sm:$0xff]
      %v2515 = vld [vmem:[%s7 + $0x380] sm:$0xff]
      %v2516 = vld [vmem:[%s7 + $0x388] sm:$0xff]
      %v2517 = vld [vmem:[%s7 + $0x390] sm:$0xff]
      %v2518 = vld [vmem:[%s7 + $0x398] sm:$0xff]
      %v2519 = vld [vmem:[%s7 + $0x3a0] sm:$0xff]
      %v2520 = vld [vmem:[%s7 + $0x3a8] sm:$0xff]
      %v2521 = vld [vmem:[%s7 + $0x3b0] sm:$0xff]
      %v2522 = vld [vmem:[%s7 + $0x3b8] sm:$0xff]
      %v2523 = vld [vmem:[%s7 + $0x3c0] sm:$0xff]
      %v2524 = vld [vmem:[%s7 + $0x3c8] sm:$0xff]
      %v2525 = vld [vmem:[%s7 + $0x3d0] sm:$0xff]
      %v2526 = vld [vmem:[%s7 + $0x3d8] sm:$0xff]
      %v2527 = vld [vmem:[%s7 + $0x3e0] sm:$0xff]
      %v2528 = vld [vmem:[%s7 + $0x3e8] sm:$0xff]
      %v2529 = vld [vmem:[%s7 + $0x3f0] sm:$0xff]
      %v2530 = vld [vmem:[%s7 + $0x3f8] sm:$0xff]
      %v2531 = vld [vmem:[%s8] sm:$0xff]
      %v2660 = vunpack.c.l.b16 %v2403
      %v2661 = vunpack.c.h.b16 %v2403
      %v2662 = vunpack.c.l.b16 %v2404
      %v2663 = vunpack.c.h.b16 %v2404
      %v2664 = vunpack.c.l.b16 %v2405
      %v2665 = vunpack.c.h.b16 %v2405
      %v2666 = vunpack.c.l.b16 %v2406
      %v2667 = vunpack.c.h.b16 %v2406
      %v2668 = vunpack.c.l.b16 %v2407
      %v2669 = vunpack.c.h.b16 %v2407
      %v2670 = vunpack.c.l.b16 %v2408
      %v2671 = vunpack.c.h.b16 %v2408
      %v2672 = vunpack.c.l.b16 %v2409
      %v2673 = vunpack.c.h.b16 %v2409
      %v2674 = vunpack.c.l.b16 %v2410
      %v2675 = vunpack.c.h.b16 %v2410
      %v2676 = vunpack.c.l.b16 %v2411
      %v2677 = vunpack.c.h.b16 %v2411
      %v2678 = vunpack.c.l.b16 %v2412
      %v2679 = vunpack.c.h.b16 %v2412
      %v2680 = vunpack.c.l.b16 %v2413
      %v2681 = vunpack.c.h.b16 %v2413
      %v2682 = vunpack.c.l.b16 %v2414
      %v2683 = vunpack.c.h.b16 %v2414
      %v2684 = vunpack.c.l.b16 %v2415
      %v2685 = vunpack.c.h.b16 %v2415
      %v2686 = vunpack.c.l.b16 %v2416
      %v2687 = vunpack.c.h.b16 %v2416
      %v2688 = vunpack.c.l.b16 %v2417
      %v2689 = vunpack.c.h.b16 %v2417
      %v2690 = vunpack.c.l.b16 %v2418
      %v2691 = vunpack.c.h.b16 %v2418
      %v2692 = vunpack.c.l.b16 %v2419
      %v2693 = vunpack.c.h.b16 %v2419
      %v2694 = vunpack.c.l.b16 %v2420
      %v2695 = vunpack.c.h.b16 %v2420
      %v2696 = vunpack.c.l.b16 %v2421
      %v2697 = vunpack.c.h.b16 %v2421
      %v2698 = vunpack.c.l.b16 %v2422
      %v2699 = vunpack.c.h.b16 %v2422
      %v2700 = vunpack.c.l.b16 %v2423
      %v2701 = vunpack.c.h.b16 %v2423
      %v2702 = vunpack.c.l.b16 %v2424
      %v2703 = vunpack.c.h.b16 %v2424
      %v2704 = vunpack.c.l.b16 %v2425
      %v2705 = vunpack.c.h.b16 %v2425
      %v2706 = vunpack.c.l.b16 %v2426
      %v2707 = vunpack.c.h.b16 %v2426
      %v2708 = vunpack.c.l.b16 %v2427
      %v2709 = vunpack.c.h.b16 %v2427
      %v2710 = vunpack.c.l.b16 %v2428
      %v2711 = vunpack.c.h.b16 %v2428
      %v2712 = vunpack.c.l.b16 %v2429
      %v2713 = vunpack.c.h.b16 %v2429
      %v2714 = vunpack.c.l.b16 %v2430
      %v2715 = vunpack.c.h.b16 %v2430
      %v2716 = vunpack.c.l.b16 %v2431
      %v2717 = vunpack.c.h.b16 %v2431
      %v2718 = vunpack.c.l.b16 %v2432
      %v2719 = vunpack.c.h.b16 %v2432
      %v2720 = vunpack.c.l.b16 %v2433
      %v2721 = vunpack.c.h.b16 %v2433
      %v2722 = vunpack.c.l.b16 %v2434
      %v2723 = vunpack.c.h.b16 %v2434
      %v2724 = vunpack.c.l.b16 %v2435
      %v2725 = vunpack.c.h.b16 %v2435
      %v2726 = vunpack.c.l.b16 %v2436
      %v2727 = vunpack.c.h.b16 %v2436
      %v2728 = vunpack.c.l.b16 %v2437
      %v2729 = vunpack.c.h.b16 %v2437
      %v2730 = vunpack.c.l.b16 %v2438
      %v2731 = vunpack.c.h.b16 %v2438
      %v2732 = vunpack.c.l.b16 %v2439
      %v2733 = vunpack.c.h.b16 %v2439
      %v2734 = vunpack.c.l.b16 %v2440
      %v2735 = vunpack.c.h.b16 %v2440
      %v2736 = vunpack.c.l.b16 %v2441
      %v2737 = vunpack.c.h.b16 %v2441
      %v2738 = vunpack.c.l.b16 %v2442
      %v2739 = vunpack.c.h.b16 %v2442
      %v2740 = vunpack.c.l.b16 %v2443
      %v2741 = vunpack.c.h.b16 %v2443
      %v2742 = vunpack.c.l.b16 %v2444
      %v2743 = vunpack.c.h.b16 %v2444
      %v2744 = vunpack.c.l.b16 %v2445
      %v2745 = vunpack.c.h.b16 %v2445
      %v2746 = vunpack.c.l.b16 %v2446
      %v2747 = vunpack.c.h.b16 %v2446
      %v2748 = vunpack.c.l.b16 %v2447
      %v2749 = vunpack.c.h.b16 %v2447
      %v2750 = vunpack.c.l.b16 %v2448
      %v2751 = vunpack.c.h.b16 %v2448
      %v2752 = vunpack.c.l.b16 %v2449
      %v2753 = vunpack.c.h.b16 %v2449
      %v2754 = vunpack.c.l.b16 %v2450
      %v2755 = vunpack.c.h.b16 %v2450
      %v2756 = vunpack.c.l.b16 %v2451
      %v2757 = vunpack.c.h.b16 %v2451
      %v2758 = vunpack.c.l.b16 %v2452
      %v2759 = vunpack.c.h.b16 %v2452
      %v2760 = vunpack.c.l.b16 %v2453
      %v2761 = vunpack.c.h.b16 %v2453
      %v2762 = vunpack.c.l.b16 %v2454
      %v2763 = vunpack.c.h.b16 %v2454
      %v2764 = vunpack.c.l.b16 %v2455
      %v2765 = vunpack.c.h.b16 %v2455
      %v2766 = vunpack.c.l.b16 %v2456
      %v2767 = vunpack.c.h.b16 %v2456
      %v2768 = vunpack.c.l.b16 %v2457
      %v2769 = vunpack.c.h.b16 %v2457
      %v2770 = vunpack.c.l.b16 %v2458
      %v2771 = vunpack.c.h.b16 %v2458
      %v2772 = vunpack.c.l.b16 %v2459
      %v2773 = vunpack.c.h.b16 %v2459
      %v2774 = vunpack.c.l.b16 %v2460
      %v2775 = vunpack.c.h.b16 %v2460
      %v2776 = vunpack.c.l.b16 %v2461
      %v2777 = vunpack.c.h.b16 %v2461
      %v2778 = vunpack.c.l.b16 %v2462
      %v2779 = vunpack.c.h.b16 %v2462
      %v2780 = vunpack.c.l.b16 %v2463
      %v2781 = vunpack.c.h.b16 %v2463
      %v2782 = vunpack.c.l.b16 %v2464
      %v2783 = vunpack.c.h.b16 %v2464
      %v2784 = vunpack.c.l.b16 %v2465
      %v2785 = vunpack.c.h.b16 %v2465
      %v2786 = vunpack.c.l.b16 %v2466
      %v2787 = vunpack.c.h.b16 %v2466
      %v2788 = vunpack.c.l.b16 %v2467
      %v2789 = vunpack.c.h.b16 %v2467
      %v2790 = vunpack.c.l.b16 %v2468
      %v2791 = vunpack.c.h.b16 %v2468
      %v2792 = vunpack.c.l.b16 %v2469
      %v2793 = vunpack.c.h.b16 %v2469
      %v2794 = vunpack.c.l.b16 %v2470
      %v2795 = vunpack.c.h.b16 %v2470
      %v2796 = vunpack.c.l.b16 %v2471
      %v2797 = vunpack.c.h.b16 %v2471
      %v2798 = vunpack.c.l.b16 %v2472
      %v2799 = vunpack.c.h.b16 %v2472
      %v2800 = vunpack.c.l.b16 %v2473
      %v2801 = vunpack.c.h.b16 %v2473
      %v2802 = vunpack.c.l.b16 %v2474
      %v2803 = vunpack.c.h.b16 %v2474
      %v2804 = vunpack.c.l.b16 %v2475
      %v2805 = vunpack.c.h.b16 %v2475
      %v2806 = vunpack.c.l.b16 %v2476
      %v2807 = vunpack.c.h.b16 %v2476
      %v2808 = vunpack.c.l.b16 %v2477
      %v2809 = vunpack.c.h.b16 %v2477
      %v2810 = vunpack.c.l.b16 %v2478
      %v2811 = vunpack.c.h.b16 %v2478
      %v2812 = vunpack.c.l.b16 %v2479
      %v2813 = vunpack.c.h.b16 %v2479
      %v2814 = vunpack.c.l.b16 %v2480
      %v2815 = vunpack.c.h.b16 %v2480
      %v2816 = vunpack.c.l.b16 %v2481
      %v2817 = vunpack.c.h.b16 %v2481
      %v2818 = vunpack.c.l.b16 %v2482
      %v2819 = vunpack.c.h.b16 %v2482
      %v2820 = vunpack.c.l.b16 %v2483
      %v2821 = vunpack.c.h.b16 %v2483
      %v2822 = vunpack.c.l.b16 %v2484
      %v2823 = vunpack.c.h.b16 %v2484
      %v2824 = vunpack.c.l.b16 %v2485
      %v2825 = vunpack.c.h.b16 %v2485
      %v2826 = vunpack.c.l.b16 %v2486
      %v2827 = vunpack.c.h.b16 %v2486
      %v2828 = vunpack.c.l.b16 %v2487
      %v2829 = vunpack.c.h.b16 %v2487
      %v2830 = vunpack.c.l.b16 %v2488
      %v2831 = vunpack.c.h.b16 %v2488
      %v2832 = vunpack.c.l.b16 %v2489
      %v2833 = vunpack.c.h.b16 %v2489
      %v2834 = vunpack.c.l.b16 %v2490
      %v2835 = vunpack.c.h.b16 %v2490
      %v2836 = vunpack.c.l.b16 %v2491
      %v2837 = vunpack.c.h.b16 %v2491
      %v2838 = vunpack.c.l.b16 %v2492
      %v2839 = vunpack.c.h.b16 %v2492
      %v2840 = vunpack.c.l.b16 %v2493
      %v2841 = vunpack.c.h.b16 %v2493
      %v2842 = vunpack.c.l.b16 %v2494
      %v2843 = vunpack.c.h.b16 %v2494
      %v2844 = vunpack.c.l.b16 %v2495
      %v2845 = vunpack.c.h.b16 %v2495
      %v2846 = vunpack.c.l.b16 %v2496
      %v2847 = vunpack.c.h.b16 %v2496
      %v2848 = vunpack.c.l.b16 %v2497
      %v2849 = vunpack.c.h.b16 %v2497
      %v2850 = vunpack.c.l.b16 %v2498
      %v2851 = vunpack.c.h.b16 %v2498
      %v2852 = vunpack.c.l.b16 %v2499
      %v2853 = vunpack.c.h.b16 %v2499
      %v2854 = vunpack.c.l.b16 %v2500
      %v2855 = vunpack.c.h.b16 %v2500
      %v2856 = vunpack.c.l.b16 %v2501
      %v2857 = vunpack.c.h.b16 %v2501
      %v2858 = vunpack.c.l.b16 %v2502
      %v2859 = vunpack.c.h.b16 %v2502
      %v2860 = vunpack.c.l.b16 %v2503
      %v2861 = vunpack.c.h.b16 %v2503
      %v2862 = vunpack.c.l.b16 %v2504
      %v2863 = vunpack.c.h.b16 %v2504
      %v2864 = vunpack.c.l.b16 %v2505
      %v2865 = vunpack.c.h.b16 %v2505
      %v2866 = vunpack.c.l.b16 %v2506
      %v2867 = vunpack.c.h.b16 %v2506
      %v2868 = vunpack.c.l.b16 %v2507
      %v2869 = vunpack.c.h.b16 %v2507
      %v2870 = vunpack.c.l.b16 %v2508
      %v2871 = vunpack.c.h.b16 %v2508
      %v2872 = vunpack.c.l.b16 %v2509
      %v2873 = vunpack.c.h.b16 %v2509
      %v2874 = vunpack.c.l.b16 %v2510
      %v2875 = vunpack.c.h.b16 %v2510
      %v2876 = vunpack.c.l.b16 %v2511
      %v2877 = vunpack.c.h.b16 %v2511
      %v2878 = vunpack.c.l.b16 %v2512
      %v2879 = vunpack.c.h.b16 %v2512
      %v2880 = vunpack.c.l.b16 %v2513
      %v2881 = vunpack.c.h.b16 %v2513
      %v2882 = vunpack.c.l.b16 %v2514
      %v2883 = vunpack.c.h.b16 %v2514
      %v2884 = vunpack.c.l.b16 %v2515
      %v2885 = vunpack.c.h.b16 %v2515
      %v2886 = vunpack.c.l.b16 %v2516
      %v2887 = vunpack.c.h.b16 %v2516
      %v2888 = vunpack.c.l.b16 %v2517
      %v2889 = vunpack.c.h.b16 %v2517
      %v2890 = vunpack.c.l.b16 %v2518
      %v2891 = vunpack.c.h.b16 %v2518
      %v2892 = vunpack.c.l.b16 %v2519
      %v2893 = vunpack.c.h.b16 %v2519
      %v2894 = vunpack.c.l.b16 %v2520
      %v2895 = vunpack.c.h.b16 %v2520
      %v2896 = vunpack.c.l.b16 %v2521
      %v2897 = vunpack.c.h.b16 %v2521
      %v2898 = vunpack.c.l.b16 %v2522
      %v2899 = vunpack.c.h.b16 %v2522
      %v2900 = vunpack.c.l.b16 %v2523
      %v2901 = vunpack.c.h.b16 %v2523
      %v2902 = vunpack.c.l.b16 %v2524
      %v2903 = vunpack.c.h.b16 %v2524
      %v2904 = vunpack.c.l.b16 %v2525
      %v2905 = vunpack.c.h.b16 %v2525
      %v2906 = vunpack.c.l.b16 %v2526
      %v2907 = vunpack.c.h.b16 %v2526
      %v2908 = vunpack.c.l.b16 %v2527
      %v2909 = vunpack.c.h.b16 %v2527
      %v2910 = vunpack.c.l.b16 %v2528
      %v2911 = vunpack.c.h.b16 %v2528
      %v2912 = vunpack.c.l.b16 %v2529
      %v2913 = vunpack.c.h.b16 %v2529
      %v2914 = vunpack.c.l.b16 %v2530
      %v2915 = vunpack.c.h.b16 %v2530
      %v2916 = vpack.c.b16 %v2668, %v2660
      %v2917 = vpack.c.b16 %v2669, %v2661
      %v2918 = vpack.c.b16 %v2670, %v2662
      %v2919 = vpack.c.b16 %v2671, %v2663
      %v2920 = vpack.c.b16 %v2672, %v2664
      %v2921 = vpack.c.b16 %v2673, %v2665
      %v2922 = vpack.c.b16 %v2674, %v2666
      %v2923 = vpack.c.b16 %v2675, %v2667
      %v2924 = vpack.c.b16 %v2684, %v2676
      %v2925 = vpack.c.b16 %v2685, %v2677
      %v2926 = vpack.c.b16 %v2686, %v2678
      %v2927 = vpack.c.b16 %v2687, %v2679
      %v2928 = vpack.c.b16 %v2688, %v2680
      %v2929 = vpack.c.b16 %v2689, %v2681
      %v2930 = vpack.c.b16 %v2690, %v2682
      %v2931 = vpack.c.b16 %v2691, %v2683
      %v2932 = vpack.c.b16 %v2700, %v2692
      %v2933 = vpack.c.b16 %v2701, %v2693
      %v2934 = vpack.c.b16 %v2702, %v2694
      %v2935 = vpack.c.b16 %v2703, %v2695
      %v2936 = vpack.c.b16 %v2704, %v2696
      %v2937 = vpack.c.b16 %v2705, %v2697
      %v2938 = vpack.c.b16 %v2706, %v2698
      %v2939 = vpack.c.b16 %v2707, %v2699
      %v2940 = vpack.c.b16 %v2716, %v2708
      %v2941 = vpack.c.b16 %v2717, %v2709
      %v2942 = vpack.c.b16 %v2718, %v2710
      %v2943 = vpack.c.b16 %v2719, %v2711
      %v2944 = vpack.c.b16 %v2720, %v2712
      %v2945 = vpack.c.b16 %v2721, %v2713
      %v2946 = vpack.c.b16 %v2722, %v2714
      %v2947 = vpack.c.b16 %v2723, %v2715
      %v2948 = vpack.c.b16 %v2732, %v2724
      %v2949 = vpack.c.b16 %v2733, %v2725
      %v2950 = vpack.c.b16 %v2734, %v2726
      %v2951 = vpack.c.b16 %v2735, %v2727
      %v2952 = vpack.c.b16 %v2736, %v2728
      %v2953 = vpack.c.b16 %v2737, %v2729
      %v2954 = vpack.c.b16 %v2738, %v2730
      %v2955 = vpack.c.b16 %v2739, %v2731
      %v2956 = vpack.c.b16 %v2748, %v2740
      %v2957 = vpack.c.b16 %v2749, %v2741
      %v2958 = vpack.c.b16 %v2750, %v2742
      %v2959 = vpack.c.b16 %v2751, %v2743
      %v2960 = vpack.c.b16 %v2752, %v2744
      %v2961 = vpack.c.b16 %v2753, %v2745
      %v2962 = vpack.c.b16 %v2754, %v2746
      %v2963 = vpack.c.b16 %v2755, %v2747
      %v2964 = vpack.c.b16 %v2764, %v2756
      %v2965 = vpack.c.b16 %v2765, %v2757
      %v2966 = vpack.c.b16 %v2766, %v2758
      %v2967 = vpack.c.b16 %v2767, %v2759
      %v2968 = vpack.c.b16 %v2768, %v2760
      %v2969 = vpack.c.b16 %v2769, %v2761
      %v2970 = vpack.c.b16 %v2770, %v2762
      %v2971 = vpack.c.b16 %v2771, %v2763
      %v2972 = vpack.c.b16 %v2780, %v2772
      %v2973 = vpack.c.b16 %v2781, %v2773
      %v2974 = vpack.c.b16 %v2782, %v2774
      %v2975 = vpack.c.b16 %v2783, %v2775
      %v2976 = vpack.c.b16 %v2784, %v2776
      %v2977 = vpack.c.b16 %v2785, %v2777
      %v2978 = vpack.c.b16 %v2786, %v2778
      %v2979 = vpack.c.b16 %v2787, %v2779
      %v2980 = vpack.c.b16 %v2796, %v2788
      %v2981 = vpack.c.b16 %v2797, %v2789
      %v2982 = vpack.c.b16 %v2798, %v2790
      %v2983 = vpack.c.b16 %v2799, %v2791
      %v2984 = vpack.c.b16 %v2800, %v2792
      %v2985 = vpack.c.b16 %v2801, %v2793
      %v2986 = vpack.c.b16 %v2802, %v2794
      %v2987 = vpack.c.b16 %v2803, %v2795
      %v2988 = vpack.c.b16 %v2812, %v2804
      %v2989 = vpack.c.b16 %v2813, %v2805
      %v2990 = vpack.c.b16 %v2814, %v2806
      %v2991 = vpack.c.b16 %v2815, %v2807
      %v2992 = vpack.c.b16 %v2816, %v2808
      %v2993 = vpack.c.b16 %v2817, %v2809
      %v2994 = vpack.c.b16 %v2818, %v2810
      %v2995 = vpack.c.b16 %v2819, %v2811
      %v2996 = vpack.c.b16 %v2828, %v2820
      %v2997 = vpack.c.b16 %v2829, %v2821
      %v2998 = vpack.c.b16 %v2830, %v2822
      %v2999 = vpack.c.b16 %v2831, %v2823
      %v3000 = vpack.c.b16 %v2832, %v2824
      %v3001 = vpack.c.b16 %v2833, %v2825
      %v3002 = vpack.c.b16 %v2834, %v2826
      %v3003 = vpack.c.b16 %v2835, %v2827
      %v3004 = vpack.c.b16 %v2844, %v2836
      %v3005 = vpack.c.b16 %v2845, %v2837
      %v3006 = vpack.c.b16 %v2846, %v2838
      %v3007 = vpack.c.b16 %v2847, %v2839
      %v3008 = vpack.c.b16 %v2848, %v2840
      %v3009 = vpack.c.b16 %v2849, %v2841
      %v3010 = vpack.c.b16 %v2850, %v2842
      %v3011 = vpack.c.b16 %v2851, %v2843
      %v3012 = vpack.c.b16 %v2860, %v2852
      %v3013 = vpack.c.b16 %v2861, %v2853
      %v3014 = vpack.c.b16 %v2862, %v2854
      %v3015 = vpack.c.b16 %v2863, %v2855
      %v3016 = vpack.c.b16 %v2864, %v2856
      %v3017 = vpack.c.b16 %v2865, %v2857
      %v3018 = vpack.c.b16 %v2866, %v2858
      %v3019 = vpack.c.b16 %v2867, %v2859
      %v3020 = vpack.c.b16 %v2876, %v2868
      %v3021 = vpack.c.b16 %v2877, %v2869
      %v3022 = vpack.c.b16 %v2878, %v2870
      %v3023 = vpack.c.b16 %v2879, %v2871
      %v3024 = vpack.c.b16 %v2880, %v2872
      %v3025 = vpack.c.b16 %v2881, %v2873
      %v3026 = vpack.c.b16 %v2882, %v2874
      %v3027 = vpack.c.b16 %v2883, %v2875
      %v3028 = vpack.c.b16 %v2892, %v2884
      %v3029 = vpack.c.b16 %v2893, %v2885
      %v3030 = vpack.c.b16 %v2894, %v2886
      %v3031 = vpack.c.b16 %v2895, %v2887
      %v3032 = vpack.c.b16 %v2896, %v2888
      %v3033 = vpack.c.b16 %v2897, %v2889
      %v3034 = vpack.c.b16 %v2898, %v2890
      %v3035 = vpack.c.b16 %v2899, %v2891
      %v3036 = vpack.c.b16 %v2908, %v2900
      %v3037 = vpack.c.b16 %v2909, %v2901
      %v3038 = vpack.c.b16 %v2910, %v2902
      %v3039 = vpack.c.b16 %v2911, %v2903
      %v3040 = vpack.c.b16 %v2912, %v2904
      %v3041 = vpack.c.b16 %v2913, %v2905
      %v3042 = vpack.c.b16 %v2914, %v2906
      %v3043 = vpack.c.b16 %v2915, %v2907
      %v3173 = vperm.slane %v2531, 0
      %v3174 = vperm.slane %v2531, 1
      %v3175 = vperm.slane %v2531, 2
      %v3176 = vperm.slane %v2531, 3
      %v3177 = vperm.slane %v2531, 4
      %v3178 = vperm.slane %v2531, 5
      %v3179 = vperm.slane %v2531, 6
      %v3180 = vperm.slane %v2531, 7
      %3189 = vmatpush.bf16.msra.mxu0 %v2972
      %3190 = vmatpush.bf16.msra.mxu0 %v2964
      %3191 = vmatpush.bf16.msra.mxu0 %v2956
      %3192 = vmatpush.bf16.msra.mxu0 %v2948
      %3193 = vmatpush.bf16.msra.mxu0 %v2940
      %3194 = vmatpush.bf16.msra.mxu0 %v2932
      %3195 = vmatpush.bf16.msra.mxu0 %v2924
      %3196 = vmatpush.bf16.msra.mxu0 %v2916
      %3197 = vmatmul.bf16.gmra.mxu0 %v2401
      %v3198 = vpop.f32.mrf.mxu0
      %v3199 = vadd.f32 %v3173, %v3198
      %v3200 = vpop.f32.mrf.mxu0
      %3201 = vdwg.mxu0
      %3202 = vmatpush.bf16.msra.mxu0 %v3036
      %3203 = vmatpush.bf16.msra.mxu0 %v3028
      %3204 = vmatpush.bf16.msra.mxu0 %v3020
      %3205 = vmatpush.bf16.msra.mxu0 %v3012
      %3206 = vmatpush.bf16.msra.mxu0 %v3004
      %3207 = vmatpush.bf16.msra.mxu0 %v2996
      %3208 = vmatpush.bf16.msra.mxu0 %v2988
      %3209 = vmatpush.bf16.msra.mxu0 %v2980
      %3210 = vmatmul.bf16.gmra.mxu0 %v2402
      %v3211 = vpop.f32.mrf.mxu0
      %v3212 = vadd.f32 %v3199, %v3211
      %v3213 = vpop.f32.mrf.mxu0
      %3214 = vdwg.mxu0
      %3215 = vmatpush.bf16.msra.mxu0 %v2973
      %3216 = vmatpush.bf16.msra.mxu0 %v2965
      %3217 = vmatpush.bf16.msra.mxu0 %v2957
      %3218 = vmatpush.bf16.msra.mxu0 %v2949
      %3219 = vmatpush.bf16.msra.mxu0 %v2941
      %3220 = vmatpush.bf16.msra.mxu0 %v2933
      %3221 = vmatpush.bf16.msra.mxu0 %v2925
      %3222 = vmatpush.bf16.msra.mxu0 %v2917
      %3223 = vmatmul.bf16.gmra.mxu0 %v2401
      %v3224 = vpop.f32.mrf.mxu0
      %v3225 = vadd.f32 %v3174, %v3224
      %v3226 = vpop.f32.mrf.mxu0
      %3227 = vdwg.mxu0
      %3228 = vmatpush.bf16.msra.mxu0 %v3037
      %3229 = vmatpush.bf16.msra.mxu0 %v3029
      %3230 = vmatpush.bf16.msra.mxu0 %v3021
      %3231 = vmatpush.bf16.msra.mxu0 %v3013
      %3232 = vmatpush.bf16.msra.mxu0 %v3005
      %3233 = vmatpush.bf16.msra.mxu0 %v2997
      %3234 = vmatpush.bf16.msra.mxu0 %v2989
      %3235 = vmatpush.bf16.msra.mxu0 %v2981
      %3236 = vmatmul.bf16.gmra.mxu0 %v2402
      %v3237 = vpop.f32.mrf.mxu0
      %v3238 = vadd.f32 %v3225, %v3237
      %v3239 = vpop.f32.mrf.mxu0
      %3240 = vdwg.mxu0
      %3241 = vmatpush.bf16.msra.mxu0 %v2974
      %3242 = vmatpush.bf16.msra.mxu0 %v2966
      %3243 = vmatpush.bf16.msra.mxu0 %v2958
      %3244 = vmatpush.bf16.msra.mxu0 %v2950
      %3245 = vmatpush.bf16.msra.mxu0 %v2942
      %3246 = vmatpush.bf16.msra.mxu0 %v2934
      %3247 = vmatpush.bf16.msra.mxu0 %v2926
      %3248 = vmatpush.bf16.msra.mxu0 %v2918
      %3249 = vmatmul.bf16.gmra.mxu0 %v2401
      %v3250 = vpop.f32.mrf.mxu0
      %v3251 = vadd.f32 %v3175, %v3250
      %v3252 = vpop.f32.mrf.mxu0
      %3253 = vdwg.mxu0
      %3254 = vmatpush.bf16.msra.mxu0 %v3038
      %3255 = vmatpush.bf16.msra.mxu0 %v3030
      %3256 = vmatpush.bf16.msra.mxu0 %v3022
      %3257 = vmatpush.bf16.msra.mxu0 %v3014
      %3258 = vmatpush.bf16.msra.mxu0 %v3006
      %3259 = vmatpush.bf16.msra.mxu0 %v2998
      %3260 = vmatpush.bf16.msra.mxu0 %v2990
      %3261 = vmatpush.bf16.msra.mxu0 %v2982
      %3262 = vmatmul.bf16.gmra.mxu0 %v2402
      %v3263 = vpop.f32.mrf.mxu0
      %v3264 = vadd.f32 %v3251, %v3263
      %v3265 = vpop.f32.mrf.mxu0
      %3266 = vdwg.mxu0
      %3267 = vmatpush.bf16.msra.mxu0 %v2975
      %3268 = vmatpush.bf16.msra.mxu0 %v2967
      %3269 = vmatpush.bf16.msra.mxu0 %v2959
      %3270 = vmatpush.bf16.msra.mxu0 %v2951
      %3271 = vmatpush.bf16.msra.mxu0 %v2943
      %3272 = vmatpush.bf16.msra.mxu0 %v2935
      %3273 = vmatpush.bf16.msra.mxu0 %v2927
      %3274 = vmatpush.bf16.msra.mxu0 %v2919
      %3275 = vmatmul.bf16.gmra.mxu0 %v2401
      %v3276 = vpop.f32.mrf.mxu0
      %v3277 = vadd.f32 %v3176, %v3276
      %v3278 = vpop.f32.mrf.mxu0
      %3279 = vdwg.mxu0
      %3280 = vmatpush.bf16.msra.mxu0 %v3039
      %3281 = vmatpush.bf16.msra.mxu0 %v3031
      %3282 = vmatpush.bf16.msra.mxu0 %v3023
      %3283 = vmatpush.bf16.msra.mxu0 %v3015
      %3284 = vmatpush.bf16.msra.mxu0 %v3007
      %3285 = vmatpush.bf16.msra.mxu0 %v2999
      %3286 = vmatpush.bf16.msra.mxu0 %v2991
      %3287 = vmatpush.bf16.msra.mxu0 %v2983
      %3288 = vmatmul.bf16.gmra.mxu0 %v2402
      %v3289 = vpop.f32.mrf.mxu0
      %v3290 = vadd.f32 %v3277, %v3289
      %v3291 = vpop.f32.mrf.mxu0
      %3292 = vdwg.mxu0
      %3293 = vmatpush.bf16.msra.mxu0 %v2976
      %3294 = vmatpush.bf16.msra.mxu0 %v2968
      %3295 = vmatpush.bf16.msra.mxu0 %v2960
      %3296 = vmatpush.bf16.msra.mxu0 %v2952
      %3297 = vmatpush.bf16.msra.mxu0 %v2944
      %3298 = vmatpush.bf16.msra.mxu0 %v2936
      %3299 = vmatpush.bf16.msra.mxu0 %v2928
      %3300 = vmatpush.bf16.msra.mxu0 %v2920
      %3301 = vmatmul.bf16.gmra.mxu0 %v2401
      %v3302 = vpop.f32.mrf.mxu0
      %v3303 = vadd.f32 %v3177, %v3302
      %v3304 = vpop.f32.mrf.mxu0
      %3305 = vdwg.mxu0
      %3306 = vmatpush.bf16.msra.mxu0 %v3040
      %3307 = vmatpush.bf16.msra.mxu0 %v3032
      %3308 = vmatpush.bf16.msra.mxu0 %v3024
      %3309 = vmatpush.bf16.msra.mxu0 %v3016
      %3310 = vmatpush.bf16.msra.mxu0 %v3008
      %3311 = vmatpush.bf16.msra.mxu0 %v3000
      %3312 = vmatpush.bf16.msra.mxu0 %v2992
      %3313 = vmatpush.bf16.msra.mxu0 %v2984
      %3314 = vmatmul.bf16.gmra.mxu0 %v2402
      %v3315 = vpop.f32.mrf.mxu0
      %v3316 = vadd.f32 %v3303, %v3315
      %v3317 = vpop.f32.mrf.mxu0
      %3318 = vdwg.mxu0
      %3319 = vmatpush.bf16.msra.mxu0 %v2977
      %3320 = vmatpush.bf16.msra.mxu0 %v2969
      %3321 = vmatpush.bf16.msra.mxu0 %v2961
      %3322 = vmatpush.bf16.msra.mxu0 %v2953
      %3323 = vmatpush.bf16.msra.mxu0 %v2945
      %3324 = vmatpush.bf16.msra.mxu0 %v2937
      %3325 = vmatpush.bf16.msra.mxu0 %v2929
      %3326 = vmatpush.bf16.msra.mxu0 %v2921
      %3327 = vmatmul.bf16.gmra.mxu0 %v2401
      %v3328 = vpop.f32.mrf.mxu0
      %v3329 = vadd.f32 %v3178, %v3328
      %v3330 = vpop.f32.mrf.mxu0
      %3331 = vdwg.mxu0
      %3332 = vmatpush.bf16.msra.mxu0 %v3041
      %3333 = vmatpush.bf16.msra.mxu0 %v3033
      %3334 = vmatpush.bf16.msra.mxu0 %v3025
      %3335 = vmatpush.bf16.msra.mxu0 %v3017
      %3336 = vmatpush.bf16.msra.mxu0 %v3009
      %3337 = vmatpush.bf16.msra.mxu0 %v3001
      %3338 = vmatpush.bf16.msra.mxu0 %v2993
      %3339 = vmatpush.bf16.msra.mxu0 %v2985
      %3340 = vmatmul.bf16.gmra.mxu0 %v2402
      %v3341 = vpop.f32.mrf.mxu0
      %v3342 = vadd.f32 %v3329, %v3341
      %v3343 = vpop.f32.mrf.mxu0
      %3344 = vdwg.mxu0
      %3345 = vmatpush.bf16.msra.mxu0 %v2978
      %3346 = vmatpush.bf16.msra.mxu0 %v2970
      %3347 = vmatpush.bf16.msra.mxu0 %v2962
      %3348 = vmatpush.bf16.msra.mxu0 %v2954
      %3349 = vmatpush.bf16.msra.mxu0 %v2946
      %3350 = vmatpush.bf16.msra.mxu0 %v2938
      %3351 = vmatpush.bf16.msra.mxu0 %v2930
      %3352 = vmatpush.bf16.msra.mxu0 %v2922
      %3353 = vmatmul.bf16.gmra.mxu0 %v2401
      %v3354 = vpop.f32.mrf.mxu0
      %v3355 = vadd.f32 %v3179, %v3354
      %v3356 = vpop.f32.mrf.mxu0
      %3357 = vdwg.mxu0
      %3358 = vmatpush.bf16.msra.mxu0 %v3042
      %3359 = vmatpush.bf16.msra.mxu0 %v3034
      %3360 = vmatpush.bf16.msra.mxu0 %v3026
      %3361 = vmatpush.bf16.msra.mxu0 %v3018
      %3362 = vmatpush.bf16.msra.mxu0 %v3010
      %3363 = vmatpush.bf16.msra.mxu0 %v3002
      %3364 = vmatpush.bf16.msra.mxu0 %v2994
      %3365 = vmatpush.bf16.msra.mxu0 %v2986
      %3366 = vmatmul.bf16.gmra.mxu0 %v2402
      %v3367 = vpop.f32.mrf.mxu0
      %v3368 = vadd.f32 %v3355, %v3367
      %v3369 = vpop.f32.mrf.mxu0
      %3370 = vdwg.mxu0
      %3371 = vmatpush.bf16.msra.mxu0 %v2979
      %3372 = vmatpush.bf16.msra.mxu0 %v2971
      %3373 = vmatpush.bf16.msra.mxu0 %v2963
      %3374 = vmatpush.bf16.msra.mxu0 %v2955
      %3375 = vmatpush.bf16.msra.mxu0 %v2947
      %3376 = vmatpush.bf16.msra.mxu0 %v2939
      %3377 = vmatpush.bf16.msra.mxu0 %v2931
      %3378 = vmatpush.bf16.msra.mxu0 %v2923
      %3379 = vmatmul.bf16.gmra.mxu0 %v2401
      %v3380 = vpop.f32.mrf.mxu0
      %v3381 = vadd.f32 %v3180, %v3380
      %v3382 = vpop.f32.mrf.mxu0
      %3383 = vdwg.mxu0
      %3384 = vmatpush.bf16.msra.mxu0 %v3043
      %3385 = vmatpush.bf16.msra.mxu0 %v3035
      %3386 = vmatpush.bf16.msra.mxu0 %v3027
      %3387 = vmatpush.bf16.msra.mxu0 %v3019
      %3388 = vmatpush.bf16.msra.mxu0 %v3011
      %3389 = vmatpush.bf16.msra.mxu0 %v3003
      %3390 = vmatpush.bf16.msra.mxu0 %v2995
      %3391 = vmatpush.bf16.msra.mxu0 %v2987
      %3392 = vmatmul.bf16.gmra.mxu0 %v2402
      %v3393 = vpop.f32.mrf.mxu0
      %v3394 = vadd.f32 %v3381, %v3393
      %v3395 = vpop.f32.mrf.mxu0
      %3396 = vdwg.mxu0
      %v3397 = vmax.f32 %v3212, 0.0
      %v3398 = vmax.f32 %v3238, 0.0
      %v3399 = vmax.f32 %v3264, 0.0
      %v3400 = vmax.f32 %v3290, 0.0
      %v3401 = vmax.f32 %v3316, 0.0
      %v3402 = vmax.f32 %v3342, 0.0
      %v3403 = vmax.f32 %v3368, 0.0
      %v3404 = vmax.f32 %v3394, 0.0
      %v3405 = vpack.c.bf16 %v3397, %v3397
      %v3406 = vpack.c.bf16 %v3398, %v3398
      %v3407 = vpack.c.bf16 %v3399, %v3399
      %v3408 = vpack.c.bf16 %v3400, %v3400
      %v3409 = vpack.c.bf16 %v3401, %v3401
      %v3410 = vpack.c.bf16 %v3402, %v3402
      %v3411 = vpack.c.bf16 %v3403, %v3403
      %v3412 = vpack.c.bf16 %v3404, %v3404
      %v3413 = vld [vmem:[%s9] sm:$0xff]
      %v3414 = vld [vmem:[%s9 + $0x8] sm:$0xff]
      %v3415 = vld [vmem:[%s9 + $0x10] sm:$0xff]
      %v3416 = vld [vmem:[%s9 + $0x18] sm:$0xff]
      %v3417 = vld [vmem:[%s9 + $0x20] sm:$0xff]
      %v3418 = vld [vmem:[%s9 + $0x28] sm:$0xff]
      %v3419 = vld [vmem:[%s9 + $0x30] sm:$0xff]
      %v3420 = vld [vmem:[%s9 + $0x38] sm:$0xff]
      %v3421 = vld [vmem:[%s9 + $0x40] sm:$0xff]
      %v3422 = vld [vmem:[%s9 + $0x48] sm:$0xff]
      %v3423 = vld [vmem:[%s9 + $0x50] sm:$0xff]
      %v3424 = vld [vmem:[%s9 + $0x58] sm:$0xff]
      %v3425 = vld [vmem:[%s9 + $0x60] sm:$0xff]
      %v3426 = vld [vmem:[%s9 + $0x68] sm:$0xff]
      %v3427 = vld [vmem:[%s9 + $0x70] sm:$0xff]
      %v3428 = vld [vmem:[%s9 + $0x78] sm:$0xff]
      %v3429 = vld [vmem:[%s9 + $0x80] sm:$0xff]
      %v3430 = vld [vmem:[%s9 + $0x88] sm:$0xff]
      %v3431 = vld [vmem:[%s9 + $0x90] sm:$0xff]
      %v3432 = vld [vmem:[%s9 + $0x98] sm:$0xff]
      %v3433 = vld [vmem:[%s9 + $0xa0] sm:$0xff]
      %v3434 = vld [vmem:[%s9 + $0xa8] sm:$0xff]
      %v3435 = vld [vmem:[%s9 + $0xb0] sm:$0xff]
      %v3436 = vld [vmem:[%s9 + $0xb8] sm:$0xff]
      %v3437 = vld [vmem:[%s9 + $0xc0] sm:$0xff]
      %v3438 = vld [vmem:[%s9 + $0xc8] sm:$0xff]
      %v3439 = vld [vmem:[%s9 + $0xd0] sm:$0xff]
      %v3440 = vld [vmem:[%s9 + $0xd8] sm:$0xff]
      %v3441 = vld [vmem:[%s9 + $0xe0] sm:$0xff]
      %v3442 = vld [vmem:[%s9 + $0xe8] sm:$0xff]
      %v3443 = vld [vmem:[%s9 + $0xf0] sm:$0xff]
      %v3444 = vld [vmem:[%s9 + $0xf8] sm:$0xff]
      %v3445 = vld [vmem:[%s9 + $0x100] sm:$0xff]
      %v3446 = vld [vmem:[%s9 + $0x108] sm:$0xff]
      %v3447 = vld [vmem:[%s9 + $0x110] sm:$0xff]
      %v3448 = vld [vmem:[%s9 + $0x118] sm:$0xff]
      %v3449 = vld [vmem:[%s9 + $0x120] sm:$0xff]
      %v3450 = vld [vmem:[%s9 + $0x128] sm:$0xff]
      %v3451 = vld [vmem:[%s9 + $0x130] sm:$0xff]
      %v3452 = vld [vmem:[%s9 + $0x138] sm:$0xff]
      %v3453 = vld [vmem:[%s9 + $0x140] sm:$0xff]
      %v3454 = vld [vmem:[%s9 + $0x148] sm:$0xff]
      %v3455 = vld [vmem:[%s9 + $0x150] sm:$0xff]
      %v3456 = vld [vmem:[%s9 + $0x158] sm:$0xff]
      %v3457 = vld [vmem:[%s9 + $0x160] sm:$0xff]
      %v3458 = vld [vmem:[%s9 + $0x168] sm:$0xff]
      %v3459 = vld [vmem:[%s9 + $0x170] sm:$0xff]
      %v3460 = vld [vmem:[%s9 + $0x178] sm:$0xff]
      %v3461 = vld [vmem:[%s9 + $0x180] sm:$0xff]
      %v3462 = vld [vmem:[%s9 + $0x188] sm:$0xff]
      %v3463 = vld [vmem:[%s9 + $0x190] sm:$0xff]
      %v3464 = vld [vmem:[%s9 + $0x198] sm:$0xff]
      %v3465 = vld [vmem:[%s9 + $0x1a0] sm:$0xff]
      %v3466 = vld [vmem:[%s9 + $0x1a8] sm:$0xff]
      %v3467 = vld [vmem:[%s9 + $0x1b0] sm:$0xff]
      %v3468 = vld [vmem:[%s9 + $0x1b8] sm:$0xff]
      %v3469 = vld [vmem:[%s9 + $0x1c0] sm:$0xff]
      %v3470 = vld [vmem:[%s9 + $0x1c8] sm:$0xff]
      %v3471 = vld [vmem:[%s9 + $0x1d0] sm:$0xff]
      %v3472 = vld [vmem:[%s9 + $0x1d8] sm:$0xff]
      %v3473 = vld [vmem:[%s9 + $0x1e0] sm:$0xff]
      %v3474 = vld [vmem:[%s9 + $0x1e8] sm:$0xff]
      %v3475 = vld [vmem:[%s9 + $0x1f0] sm:$0xff]
      %v3476 = vld [vmem:[%s9 + $0x1f8] sm:$0xff]
      %v3477 = vld [vmem:[%s9 + $0x200] sm:$0xff]
      %v3478 = vld [vmem:[%s9 + $0x208] sm:$0xff]
      %v3479 = vld [vmem:[%s9 + $0x210] sm:$0xff]
      %v3480 = vld [vmem:[%s9 + $0x218] sm:$0xff]
      %v3481 = vld [vmem:[%s9 + $0x220] sm:$0xff]
      %v3482 = vld [vmem:[%s9 + $0x228] sm:$0xff]
      %v3483 = vld [vmem:[%s9 + $0x230] sm:$0xff]
      %v3484 = vld [vmem:[%s9 + $0x238] sm:$0xff]
      %v3485 = vld [vmem:[%s9 + $0x240] sm:$0xff]
      %v3486 = vld [vmem:[%s9 + $0x248] sm:$0xff]
      %v3487 = vld [vmem:[%s9 + $0x250] sm:$0xff]
      %v3488 = vld [vmem:[%s9 + $0x258] sm:$0xff]
      %v3489 = vld [vmem:[%s9 + $0x260] sm:$0xff]
      %v3490 = vld [vmem:[%s9 + $0x268] sm:$0xff]
      %v3491 = vld [vmem:[%s9 + $0x270] sm:$0xff]
      %v3492 = vld [vmem:[%s9 + $0x278] sm:$0xff]
      %v3493 = vld [vmem:[%s9 + $0x280] sm:$0xff]
      %v3494 = vld [vmem:[%s9 + $0x288] sm:$0xff]
      %v3495 = vld [vmem:[%s9 + $0x290] sm:$0xff]
      %v3496 = vld [vmem:[%s9 + $0x298] sm:$0xff]
      %v3497 = vld [vmem:[%s9 + $0x2a0] sm:$0xff]
      %v3498 = vld [vmem:[%s9 + $0x2a8] sm:$0xff]
      %v3499 = vld [vmem:[%s9 + $0x2b0] sm:$0xff]
      %v3500 = vld [vmem:[%s9 + $0x2b8] sm:$0xff]
      %v3501 = vld [vmem:[%s9 + $0x2c0] sm:$0xff]
      %v3502 = vld [vmem:[%s9 + $0x2c8] sm:$0xff]
      %v3503 = vld [vmem:[%s9 + $0x2d0] sm:$0xff]
      %v3504 = vld [vmem:[%s9 + $0x2d8] sm:$0xff]
      %v3505 = vld [vmem:[%s9 + $0x2e0] sm:$0xff]
      %v3506 = vld [vmem:[%s9 + $0x2e8] sm:$0xff]
      %v3507 = vld [vmem:[%s9 + $0x2f0] sm:$0xff]
      %v3508 = vld [vmem:[%s9 + $0x2f8] sm:$0xff]
      %v3509 = vld [vmem:[%s9 + $0x300] sm:$0xff]
      %v3510 = vld [vmem:[%s9 + $0x308] sm:$0xff]
      %v3511 = vld [vmem:[%s9 + $0x310] sm:$0xff]
      %v3512 = vld [vmem:[%s9 + $0x318] sm:$0xff]
      %v3513 = vld [vmem:[%s9 + $0x320] sm:$0xff]
      %v3514 = vld [vmem:[%s9 + $0x328] sm:$0xff]
      %v3515 = vld [vmem:[%s9 + $0x330] sm:$0xff]
      %v3516 = vld [vmem:[%s9 + $0x338] sm:$0xff]
      %v3517 = vld [vmem:[%s9 + $0x340] sm:$0xff]
      %v3518 = vld [vmem:[%s9 + $0x348] sm:$0xff]
      %v3519 = vld [vmem:[%s9 + $0x350] sm:$0xff]
      %v3520 = vld [vmem:[%s9 + $0x358] sm:$0xff]
      %v3521 = vld [vmem:[%s9 + $0x360] sm:$0xff]
      %v3522 = vld [vmem:[%s9 + $0x368] sm:$0xff]
      %v3523 = vld [vmem:[%s9 + $0x370] sm:$0xff]
      %v3524 = vld [vmem:[%s9 + $0x378] sm:$0xff]
      %v3525 = vld [vmem:[%s9 + $0x380] sm:$0xff]
      %v3526 = vld [vmem:[%s9 + $0x388] sm:$0xff]
      %v3527 = vld [vmem:[%s9 + $0x390] sm:$0xff]
      %v3528 = vld [vmem:[%s9 + $0x398] sm:$0xff]
      %v3529 = vld [vmem:[%s9 + $0x3a0] sm:$0xff]
      %v3530 = vld [vmem:[%s9 + $0x3a8] sm:$0xff]
      %v3531 = vld [vmem:[%s9 + $0x3b0] sm:$0xff]
      %v3532 = vld [vmem:[%s9 + $0x3b8] sm:$0xff]
      %v3533 = vld [vmem:[%s9 + $0x3c0] sm:$0xff]
      %v3534 = vld [vmem:[%s9 + $0x3c8] sm:$0xff]
      %v3535 = vld [vmem:[%s9 + $0x3d0] sm:$0xff]
      %v3536 = vld [vmem:[%s9 + $0x3d8] sm:$0xff]
      %v3537 = vld [vmem:[%s9 + $0x3e0] sm:$0xff]
      %v3538 = vld [vmem:[%s9 + $0x3e8] sm:$0xff]
      %v3539 = vld [vmem:[%s9 + $0x3f0] sm:$0xff]
      %v3540 = vld [vmem:[%s9 + $0x3f8] sm:$0xff]
      %v3541 = vld [vmem:[%s10] sm:$0x3]
      %v3670 = vunpack.c.l.b16 %v3413
      %v3671 = vunpack.c.h.b16 %v3413
      %v3672 = vunpack.c.l.b16 %v3414
      %v3673 = vunpack.c.h.b16 %v3414
      %v3674 = vunpack.c.l.b16 %v3415
      %v3675 = vunpack.c.h.b16 %v3415
      %v3676 = vunpack.c.l.b16 %v3416
      %v3677 = vunpack.c.h.b16 %v3416
      %v3678 = vunpack.c.l.b16 %v3417
      %v3679 = vunpack.c.h.b16 %v3417
      %v3680 = vunpack.c.l.b16 %v3418
      %v3681 = vunpack.c.h.b16 %v3418
      %v3682 = vunpack.c.l.b16 %v3419
      %v3683 = vunpack.c.h.b16 %v3419
      %v3684 = vunpack.c.l.b16 %v3420
      %v3685 = vunpack.c.h.b16 %v3420
      %v3686 = vunpack.c.l.b16 %v3421
      %v3687 = vunpack.c.h.b16 %v3421
      %v3688 = vunpack.c.l.b16 %v3422
      %v3689 = vunpack.c.h.b16 %v3422
      %v3690 = vunpack.c.l.b16 %v3423
      %v3691 = vunpack.c.h.b16 %v3423
      %v3692 = vunpack.c.l.b16 %v3424
      %v3693 = vunpack.c.h.b16 %v3424
      %v3694 = vunpack.c.l.b16 %v3425
      %v3695 = vunpack.c.h.b16 %v3425
      %v3696 = vunpack.c.l.b16 %v3426
      %v3697 = vunpack.c.h.b16 %v3426
      %v3698 = vunpack.c.l.b16 %v3427
      %v3699 = vunpack.c.h.b16 %v3427
      %v3700 = vunpack.c.l.b16 %v3428
      %v3701 = vunpack.c.h.b16 %v3428
      %v3702 = vunpack.c.l.b16 %v3429
      %v3703 = vunpack.c.h.b16 %v3429
      %v3704 = vunpack.c.l.b16 %v3430
      %v3705 = vunpack.c.h.b16 %v3430
      %v3706 = vunpack.c.l.b16 %v3431
      %v3707 = vunpack.c.h.b16 %v3431
      %v3708 = vunpack.c.l.b16 %v3432
      %v3709 = vunpack.c.h.b16 %v3432
      %v3710 = vunpack.c.l.b16 %v3433
      %v3711 = vunpack.c.h.b16 %v3433
      %v3712 = vunpack.c.l.b16 %v3434
      %v3713 = vunpack.c.h.b16 %v3434
      %v3714 = vunpack.c.l.b16 %v3435
      %v3715 = vunpack.c.h.b16 %v3435
      %v3716 = vunpack.c.l.b16 %v3436
      %v3717 = vunpack.c.h.b16 %v3436
      %v3718 = vunpack.c.l.b16 %v3437
      %v3719 = vunpack.c.h.b16 %v3437
      %v3720 = vunpack.c.l.b16 %v3438
      %v3721 = vunpack.c.h.b16 %v3438
      %v3722 = vunpack.c.l.b16 %v3439
      %v3723 = vunpack.c.h.b16 %v3439
      %v3724 = vunpack.c.l.b16 %v3440
      %v3725 = vunpack.c.h.b16 %v3440
      %v3726 = vunpack.c.l.b16 %v3441
      %v3727 = vunpack.c.h.b16 %v3441
      %v3728 = vunpack.c.l.b16 %v3442
      %v3729 = vunpack.c.h.b16 %v3442
      %v3730 = vunpack.c.l.b16 %v3443
      %v3731 = vunpack.c.h.b16 %v3443
      %v3732 = vunpack.c.l.b16 %v3444
      %v3733 = vunpack.c.h.b16 %v3444
      %v3734 = vunpack.c.l.b16 %v3445
      %v3735 = vunpack.c.h.b16 %v3445
      %v3736 = vunpack.c.l.b16 %v3446
      %v3737 = vunpack.c.h.b16 %v3446
      %v3738 = vunpack.c.l.b16 %v3447
      %v3739 = vunpack.c.h.b16 %v3447
      %v3740 = vunpack.c.l.b16 %v3448
      %v3741 = vunpack.c.h.b16 %v3448
      %v3742 = vunpack.c.l.b16 %v3449
      %v3743 = vunpack.c.h.b16 %v3449
      %v3744 = vunpack.c.l.b16 %v3450
      %v3745 = vunpack.c.h.b16 %v3450
      %v3746 = vunpack.c.l.b16 %v3451
      %v3747 = vunpack.c.h.b16 %v3451
      %v3748 = vunpack.c.l.b16 %v3452
      %v3749 = vunpack.c.h.b16 %v3452
      %v3750 = vunpack.c.l.b16 %v3453
      %v3751 = vunpack.c.h.b16 %v3453
      %v3752 = vunpack.c.l.b16 %v3454
      %v3753 = vunpack.c.h.b16 %v3454
      %v3754 = vunpack.c.l.b16 %v3455
      %v3755 = vunpack.c.h.b16 %v3455
      %v3756 = vunpack.c.l.b16 %v3456
      %v3757 = vunpack.c.h.b16 %v3456
      %v3758 = vunpack.c.l.b16 %v3457
      %v3759 = vunpack.c.h.b16 %v3457
      %v3760 = vunpack.c.l.b16 %v3458
      %v3761 = vunpack.c.h.b16 %v3458
      %v3762 = vunpack.c.l.b16 %v3459
      %v3763 = vunpack.c.h.b16 %v3459
      %v3764 = vunpack.c.l.b16 %v3460
      %v3765 = vunpack.c.h.b16 %v3460
      %v3766 = vunpack.c.l.b16 %v3461
      %v3767 = vunpack.c.h.b16 %v3461
      %v3768 = vunpack.c.l.b16 %v3462
      %v3769 = vunpack.c.h.b16 %v3462
      %v3770 = vunpack.c.l.b16 %v3463
      %v3771 = vunpack.c.h.b16 %v3463
      %v3772 = vunpack.c.l.b16 %v3464
      %v3773 = vunpack.c.h.b16 %v3464
      %v3774 = vunpack.c.l.b16 %v3465
      %v3775 = vunpack.c.h.b16 %v3465
      %v3776 = vunpack.c.l.b16 %v3466
      %v3777 = vunpack.c.h.b16 %v3466
      %v3778 = vunpack.c.l.b16 %v3467
      %v3779 = vunpack.c.h.b16 %v3467
      %v3780 = vunpack.c.l.b16 %v3468
      %v3781 = vunpack.c.h.b16 %v3468
      %v3782 = vunpack.c.l.b16 %v3469
      %v3783 = vunpack.c.h.b16 %v3469
      %v3784 = vunpack.c.l.b16 %v3470
      %v3785 = vunpack.c.h.b16 %v3470
      %v3786 = vunpack.c.l.b16 %v3471
      %v3787 = vunpack.c.h.b16 %v3471
      %v3788 = vunpack.c.l.b16 %v3472
      %v3789 = vunpack.c.h.b16 %v3472
      %v3790 = vunpack.c.l.b16 %v3473
      %v3791 = vunpack.c.h.b16 %v3473
      %v3792 = vunpack.c.l.b16 %v3474
      %v3793 = vunpack.c.h.b16 %v3474
      %v3794 = vunpack.c.l.b16 %v3475
      %v3795 = vunpack.c.h.b16 %v3475
      %v3796 = vunpack.c.l.b16 %v3476
      %v3797 = vunpack.c.h.b16 %v3476
      %v3798 = vunpack.c.l.b16 %v3477
      %v3799 = vunpack.c.h.b16 %v3477
      %v3800 = vunpack.c.l.b16 %v3478
      %v3801 = vunpack.c.h.b16 %v3478
      %v3802 = vunpack.c.l.b16 %v3479
      %v3803 = vunpack.c.h.b16 %v3479
      %v3804 = vunpack.c.l.b16 %v3480
      %v3805 = vunpack.c.h.b16 %v3480
      %v3806 = vunpack.c.l.b16 %v3481
      %v3807 = vunpack.c.h.b16 %v3481
      %v3808 = vunpack.c.l.b16 %v3482
      %v3809 = vunpack.c.h.b16 %v3482
      %v3810 = vunpack.c.l.b16 %v3483
      %v3811 = vunpack.c.h.b16 %v3483
      %v3812 = vunpack.c.l.b16 %v3484
      %v3813 = vunpack.c.h.b16 %v3484
      %v3814 = vunpack.c.l.b16 %v3485
      %v3815 = vunpack.c.h.b16 %v3485
      %v3816 = vunpack.c.l.b16 %v3486
      %v3817 = vunpack.c.h.b16 %v3486
      %v3818 = vunpack.c.l.b16 %v3487
      %v3819 = vunpack.c.h.b16 %v3487
      %v3820 = vunpack.c.l.b16 %v3488
      %v3821 = vunpack.c.h.b16 %v3488
      %v3822 = vunpack.c.l.b16 %v3489
      %v3823 = vunpack.c.h.b16 %v3489
      %v3824 = vunpack.c.l.b16 %v3490
      %v3825 = vunpack.c.h.b16 %v3490
      %v3826 = vunpack.c.l.b16 %v3491
      %v3827 = vunpack.c.h.b16 %v3491
      %v3828 = vunpack.c.l.b16 %v3492
      %v3829 = vunpack.c.h.b16 %v3492
      %v3830 = vunpack.c.l.b16 %v3493
      %v3831 = vunpack.c.h.b16 %v3493
      %v3832 = vunpack.c.l.b16 %v3494
      %v3833 = vunpack.c.h.b16 %v3494
      %v3834 = vunpack.c.l.b16 %v3495
      %v3835 = vunpack.c.h.b16 %v3495
      %v3836 = vunpack.c.l.b16 %v3496
      %v3837 = vunpack.c.h.b16 %v3496
      %v3838 = vunpack.c.l.b16 %v3497
      %v3839 = vunpack.c.h.b16 %v3497
      %v3840 = vunpack.c.l.b16 %v3498
      %v3841 = vunpack.c.h.b16 %v3498
      %v3842 = vunpack.c.l.b16 %v3499
      %v3843 = vunpack.c.h.b16 %v3499
      %v3844 = vunpack.c.l.b16 %v3500
      %v3845 = vunpack.c.h.b16 %v3500
      %v3846 = vunpack.c.l.b16 %v3501
      %v3847 = vunpack.c.h.b16 %v3501
      %v3848 = vunpack.c.l.b16 %v3502
      %v3849 = vunpack.c.h.b16 %v3502
      %v3850 = vunpack.c.l.b16 %v3503
      %v3851 = vunpack.c.h.b16 %v3503
      %v3852 = vunpack.c.l.b16 %v3504
      %v3853 = vunpack.c.h.b16 %v3504
      %v3854 = vunpack.c.l.b16 %v3505
      %v3855 = vunpack.c.h.b16 %v3505
      %v3856 = vunpack.c.l.b16 %v3506
      %v3857 = vunpack.c.h.b16 %v3506
      %v3858 = vunpack.c.l.b16 %v3507
      %v3859 = vunpack.c.h.b16 %v3507
      %v3860 = vunpack.c.l.b16 %v3508
      %v3861 = vunpack.c.h.b16 %v3508
      %v3862 = vunpack.c.l.b16 %v3509
      %v3863 = vunpack.c.h.b16 %v3509
      %v3864 = vunpack.c.l.b16 %v3510
      %v3865 = vunpack.c.h.b16 %v3510
      %v3866 = vunpack.c.l.b16 %v3511
      %v3867 = vunpack.c.h.b16 %v3511
      %v3868 = vunpack.c.l.b16 %v3512
      %v3869 = vunpack.c.h.b16 %v3512
      %v3870 = vunpack.c.l.b16 %v3513
      %v3871 = vunpack.c.h.b16 %v3513
      %v3872 = vunpack.c.l.b16 %v3514
      %v3873 = vunpack.c.h.b16 %v3514
      %v3874 = vunpack.c.l.b16 %v3515
      %v3875 = vunpack.c.h.b16 %v3515
      %v3876 = vunpack.c.l.b16 %v3516
      %v3877 = vunpack.c.h.b16 %v3516
      %v3878 = vunpack.c.l.b16 %v3517
      %v3879 = vunpack.c.h.b16 %v3517
      %v3880 = vunpack.c.l.b16 %v3518
      %v3881 = vunpack.c.h.b16 %v3518
      %v3882 = vunpack.c.l.b16 %v3519
      %v3883 = vunpack.c.h.b16 %v3519
      %v3884 = vunpack.c.l.b16 %v3520
      %v3885 = vunpack.c.h.b16 %v3520
      %v3886 = vunpack.c.l.b16 %v3521
      %v3887 = vunpack.c.h.b16 %v3521
      %v3888 = vunpack.c.l.b16 %v3522
      %v3889 = vunpack.c.h.b16 %v3522
      %v3890 = vunpack.c.l.b16 %v3523
      %v3891 = vunpack.c.h.b16 %v3523
      %v3892 = vunpack.c.l.b16 %v3524
      %v3893 = vunpack.c.h.b16 %v3524
      %v3894 = vunpack.c.l.b16 %v3525
      %v3895 = vunpack.c.h.b16 %v3525
      %v3896 = vunpack.c.l.b16 %v3526
      %v3897 = vunpack.c.h.b16 %v3526
      %v3898 = vunpack.c.l.b16 %v3527
      %v3899 = vunpack.c.h.b16 %v3527
      %v3900 = vunpack.c.l.b16 %v3528
      %v3901 = vunpack.c.h.b16 %v3528
      %v3902 = vunpack.c.l.b16 %v3529
      %v3903 = vunpack.c.h.b16 %v3529
      %v3904 = vunpack.c.l.b16 %v3530
      %v3905 = vunpack.c.h.b16 %v3530
      %v3906 = vunpack.c.l.b16 %v3531
      %v3907 = vunpack.c.h.b16 %v3531
      %v3908 = vunpack.c.l.b16 %v3532
      %v3909 = vunpack.c.h.b16 %v3532
      %v3910 = vunpack.c.l.b16 %v3533
      %v3911 = vunpack.c.h.b16 %v3533
      %v3912 = vunpack.c.l.b16 %v3534
      %v3913 = vunpack.c.h.b16 %v3534
      %v3914 = vunpack.c.l.b16 %v3535
      %v3915 = vunpack.c.h.b16 %v3535
      %v3916 = vunpack.c.l.b16 %v3536
      %v3917 = vunpack.c.h.b16 %v3536
      %v3918 = vunpack.c.l.b16 %v3537
      %v3919 = vunpack.c.h.b16 %v3537
      %v3920 = vunpack.c.l.b16 %v3538
      %v3921 = vunpack.c.h.b16 %v3538
      %v3922 = vunpack.c.l.b16 %v3539
      %v3923 = vunpack.c.h.b16 %v3539
      %v3924 = vunpack.c.l.b16 %v3540
      %v3925 = vunpack.c.h.b16 %v3540
      %v3926 = vpack.c.b16 %v3672, %v3670
      %v3927 = vpack.c.b16 %v3673, %v3671
      %v3928 = vpack.c.b16 %v3676, %v3674
      %v3929 = vpack.c.b16 %v3677, %v3675
      %v3930 = vpack.c.b16 %v3680, %v3678
      %v3931 = vpack.c.b16 %v3681, %v3679
      %v3932 = vpack.c.b16 %v3684, %v3682
      %v3933 = vpack.c.b16 %v3685, %v3683
      %v3934 = vpack.c.b16 %v3688, %v3686
      %v3935 = vpack.c.b16 %v3689, %v3687
      %v3936 = vpack.c.b16 %v3692, %v3690
      %v3937 = vpack.c.b16 %v3693, %v3691
      %v3938 = vpack.c.b16 %v3696, %v3694
      %v3939 = vpack.c.b16 %v3697, %v3695
      %v3940 = vpack.c.b16 %v3700, %v3698
      %v3941 = vpack.c.b16 %v3701, %v3699
      %v3942 = vpack.c.b16 %v3704, %v3702
      %v3943 = vpack.c.b16 %v3705, %v3703
      %v3944 = vpack.c.b16 %v3708, %v3706
      %v3945 = vpack.c.b16 %v3709, %v3707
      %v3946 = vpack.c.b16 %v3712, %v3710
      %v3947 = vpack.c.b16 %v3713, %v3711
      %v3948 = vpack.c.b16 %v3716, %v3714
      %v3949 = vpack.c.b16 %v3717, %v3715
      %v3950 = vpack.c.b16 %v3720, %v3718
      %v3951 = vpack.c.b16 %v3721, %v3719
      %v3952 = vpack.c.b16 %v3724, %v3722
      %v3953 = vpack.c.b16 %v3725, %v3723
      %v3954 = vpack.c.b16 %v3728, %v3726
      %v3955 = vpack.c.b16 %v3729, %v3727
      %v3956 = vpack.c.b16 %v3732, %v3730
      %v3957 = vpack.c.b16 %v3733, %v3731
      %v3958 = vpack.c.b16 %v3736, %v3734
      %v3959 = vpack.c.b16 %v3737, %v3735
      %v3960 = vpack.c.b16 %v3740, %v3738
      %v3961 = vpack.c.b16 %v3741, %v3739
      %v3962 = vpack.c.b16 %v3744, %v3742
      %v3963 = vpack.c.b16 %v3745, %v3743
      %v3964 = vpack.c.b16 %v3748, %v3746
      %v3965 = vpack.c.b16 %v3749, %v3747
      %v3966 = vpack.c.b16 %v3752, %v3750
      %v3967 = vpack.c.b16 %v3753, %v3751
      %v3968 = vpack.c.b16 %v3756, %v3754
      %v3969 = vpack.c.b16 %v3757, %v3755
      %v3970 = vpack.c.b16 %v3760, %v3758
      %v3971 = vpack.c.b16 %v3761, %v3759
      %v3972 = vpack.c.b16 %v3764, %v3762
      %v3973 = vpack.c.b16 %v3765, %v3763
      %v3974 = vpack.c.b16 %v3768, %v3766
      %v3975 = vpack.c.b16 %v3769, %v3767
      %v3976 = vpack.c.b16 %v3772, %v3770
      %v3977 = vpack.c.b16 %v3773, %v3771
      %v3978 = vpack.c.b16 %v3776, %v3774
      %v3979 = vpack.c.b16 %v3777, %v3775
      %v3980 = vpack.c.b16 %v3780, %v3778
      %v3981 = vpack.c.b16 %v3781, %v3779
      %v3982 = vpack.c.b16 %v3784, %v3782
      %v3983 = vpack.c.b16 %v3785, %v3783
      %v3984 = vpack.c.b16 %v3788, %v3786
      %v3985 = vpack.c.b16 %v3789, %v3787
      %v3986 = vpack.c.b16 %v3792, %v3790
      %v3987 = vpack.c.b16 %v3793, %v3791
      %v3988 = vpack.c.b16 %v3796, %v3794
      %v3989 = vpack.c.b16 %v3797, %v3795
      %v3990 = vpack.c.b16 %v3800, %v3798
      %v3991 = vpack.c.b16 %v3801, %v3799
      %v3992 = vpack.c.b16 %v3804, %v3802
      %v3993 = vpack.c.b16 %v3805, %v3803
      %v3994 = vpack.c.b16 %v3808, %v3806
      %v3995 = vpack.c.b16 %v3809, %v3807
      %v3996 = vpack.c.b16 %v3812, %v3810
      %v3997 = vpack.c.b16 %v3813, %v3811
      %v3998 = vpack.c.b16 %v3816, %v3814
      %v3999 = vpack.c.b16 %v3817, %v3815
      %v4000 = vpack.c.b16 %v3820, %v3818
      %v4001 = vpack.c.b16 %v3821, %v3819
      %v4002 = vpack.c.b16 %v3824, %v3822
      %v4003 = vpack.c.b16 %v3825, %v3823
      %v4004 = vpack.c.b16 %v3828, %v3826
      %v4005 = vpack.c.b16 %v3829, %v3827
      %v4006 = vpack.c.b16 %v3832, %v3830
      %v4007 = vpack.c.b16 %v3833, %v3831
      %v4008 = vpack.c.b16 %v3836, %v3834
      %v4009 = vpack.c.b16 %v3837, %v3835
      %v4010 = vpack.c.b16 %v3840, %v3838
      %v4011 = vpack.c.b16 %v3841, %v3839
      %v4012 = vpack.c.b16 %v3844, %v3842
      %v4013 = vpack.c.b16 %v3845, %v3843
      %v4014 = vpack.c.b16 %v3848, %v3846
      %v4015 = vpack.c.b16 %v3849, %v3847
      %v4016 = vpack.c.b16 %v3852, %v3850
      %v4017 = vpack.c.b16 %v3853, %v3851
      %v4018 = vpack.c.b16 %v3856, %v3854
      %v4019 = vpack.c.b16 %v3857, %v3855
      %v4020 = vpack.c.b16 %v3860, %v3858
      %v4021 = vpack.c.b16 %v3861, %v3859
      %v4022 = vpack.c.b16 %v3864, %v3862
      %v4023 = vpack.c.b16 %v3865, %v3863
      %v4024 = vpack.c.b16 %v3868, %v3866
      %v4025 = vpack.c.b16 %v3869, %v3867
      %v4026 = vpack.c.b16 %v3872, %v3870
      %v4027 = vpack.c.b16 %v3873, %v3871
      %v4028 = vpack.c.b16 %v3876, %v3874
      %v4029 = vpack.c.b16 %v3877, %v3875
      %v4030 = vpack.c.b16 %v3880, %v3878
      %v4031 = vpack.c.b16 %v3881, %v3879
      %v4032 = vpack.c.b16 %v3884, %v3882
      %v4033 = vpack.c.b16 %v3885, %v3883
      %v4034 = vpack.c.b16 %v3888, %v3886
      %v4035 = vpack.c.b16 %v3889, %v3887
      %v4036 = vpack.c.b16 %v3892, %v3890
      %v4037 = vpack.c.b16 %v3893, %v3891
      %v4038 = vpack.c.b16 %v3896, %v3894
      %v4039 = vpack.c.b16 %v3897, %v3895
      %v4040 = vpack.c.b16 %v3900, %v3898
      %v4041 = vpack.c.b16 %v3901, %v3899
      %v4042 = vpack.c.b16 %v3904, %v3902
      %v4043 = vpack.c.b16 %v3905, %v3903
      %v4044 = vpack.c.b16 %v3908, %v3906
      %v4045 = vpack.c.b16 %v3909, %v3907
      %v4046 = vpack.c.b16 %v3912, %v3910
      %v4047 = vpack.c.b16 %v3913, %v3911
      %v4048 = vpack.c.b16 %v3916, %v3914
      %v4049 = vpack.c.b16 %v3917, %v3915
      %v4050 = vpack.c.b16 %v3920, %v3918
      %v4051 = vpack.c.b16 %v3921, %v3919
      %v4052 = vpack.c.b16 %v3924, %v3922
      %v4053 = vpack.c.b16 %v3925, %v3923
      %v4183 = vperm.slane %v3541, 0
      %v4184 = vperm.slane %v3541, 1
      %4187 = vmatpush.bf16.msra.mxu0 %v3940
      %4188 = vmatpush.bf16.msra.mxu0 %v3938
      %4189 = vmatpush.bf16.msra.mxu0 %v3936
      %4190 = vmatpush.bf16.msra.mxu0 %v3934
      %4191 = vmatpush.bf16.msra.mxu0 %v3932
      %4192 = vmatpush.bf16.msra.mxu0 %v3930
      %4193 = vmatpush.bf16.msra.mxu0 %v3928
      %4194 = vmatpush.bf16.msra.mxu0 %v3926
      %4195 = vmatmul.bf16.gmra.mxu0 %v3405
      %v4196 = vpop.f32.mrf.mxu0
      %v4197 = vadd.f32 %v4183, %v4196
      %v4198 = vpop.f32.mrf.mxu0
      %4199 = vdwg.mxu0
      %4200 = vmatpush.bf16.msra.mxu0 %v3956
      %4201 = vmatpush.bf16.msra.mxu0 %v3954
      %4202 = vmatpush.bf16.msra.mxu0 %v3952
      %4203 = vmatpush.bf16.msra.mxu0 %v3950
      %4204 = vmatpush.bf16.msra.mxu0 %v3948
      %4205 = vmatpush.bf16.msra.mxu0 %v3946
      %4206 = vmatpush.bf16.msra.mxu0 %v3944
      %4207 = vmatpush.bf16.msra.mxu0 %v3942
      %4208 = vmatmul.bf16.gmra.mxu0 %v3406
      %v4209 = vpop.f32.mrf.mxu0
      %v4210 = vadd.f32 %v4197, %v4209
      %v4211 = vpop.f32.mrf.mxu0
      %4212 = vdwg.mxu0
      %4213 = vmatpush.bf16.msra.mxu0 %v3972
      %4214 = vmatpush.bf16.msra.mxu0 %v3970
      %4215 = vmatpush.bf16.msra.mxu0 %v3968
      %4216 = vmatpush.bf16.msra.mxu0 %v3966
      %4217 = vmatpush.bf16.msra.mxu0 %v3964
      %4218 = vmatpush.bf16.msra.mxu0 %v3962
      %4219 = vmatpush.bf16.msra.mxu0 %v3960
      %4220 = vmatpush.bf16.msra.mxu0 %v3958
      %4221 = vmatmul.bf16.gmra.mxu0 %v3407
      %v4222 = vpop.f32.mrf.mxu0
      %v4223 = vadd.f32 %v4210, %v4222
      %v4224 = vpop.f32.mrf.mxu0
      %4225 = vdwg.mxu0
      %4226 = vmatpush.bf16.msra.mxu0 %v3988
      %4227 = vmatpush.bf16.msra.mxu0 %v3986
      %4228 = vmatpush.bf16.msra.mxu0 %v3984
      %4229 = vmatpush.bf16.msra.mxu0 %v3982
      %4230 = vmatpush.bf16.msra.mxu0 %v3980
      %4231 = vmatpush.bf16.msra.mxu0 %v3978
      %4232 = vmatpush.bf16.msra.mxu0 %v3976
      %4233 = vmatpush.bf16.msra.mxu0 %v3974
      %4234 = vmatmul.bf16.gmra.mxu0 %v3408
      %v4235 = vpop.f32.mrf.mxu0
      %v4236 = vadd.f32 %v4223, %v4235
      %v4237 = vpop.f32.mrf.mxu0
      %4238 = vdwg.mxu0
      %4239 = vmatpush.bf16.msra.mxu0 %v4004
      %4240 = vmatpush.bf16.msra.mxu0 %v4002
      %4241 = vmatpush.bf16.msra.mxu0 %v4000
      %4242 = vmatpush.bf16.msra.mxu0 %v3998
      %4243 = vmatpush.bf16.msra.mxu0 %v3996
      %4244 = vmatpush.bf16.msra.mxu0 %v3994
      %4245 = vmatpush.bf16.msra.mxu0 %v3992
      %4246 = vmatpush.bf16.msra.mxu0 %v3990
      %4247 = vmatmul.bf16.gmra.mxu0 %v3409
      %v4248 = vpop.f32.mrf.mxu0
      %v4249 = vadd.f32 %v4236, %v4248
      %v4250 = vpop.f32.mrf.mxu0
      %4251 = vdwg.mxu0
      %4252 = vmatpush.bf16.msra.mxu0 %v4020
      %4253 = vmatpush.bf16.msra.mxu0 %v4018
      %4254 = vmatpush.bf16.msra.mxu0 %v4016
      %4255 = vmatpush.bf16.msra.mxu0 %v4014
      %4256 = vmatpush.bf16.msra.mxu0 %v4012
      %4257 = vmatpush.bf16.msra.mxu0 %v4010
      %4258 = vmatpush.bf16.msra.mxu0 %v4008
      %4259 = vmatpush.bf16.msra.mxu0 %v4006
      %4260 = vmatmul.bf16.gmra.mxu0 %v3410
      %v4261 = vpop.f32.mrf.mxu0
      %v4262 = vadd.f32 %v4249, %v4261
      %v4263 = vpop.f32.mrf.mxu0
      %4264 = vdwg.mxu0
      %4265 = vmatpush.bf16.msra.mxu0 %v4036
      %4266 = vmatpush.bf16.msra.mxu0 %v4034
      %4267 = vmatpush.bf16.msra.mxu0 %v4032
      %4268 = vmatpush.bf16.msra.mxu0 %v4030
      %4269 = vmatpush.bf16.msra.mxu0 %v4028
      %4270 = vmatpush.bf16.msra.mxu0 %v4026
      %4271 = vmatpush.bf16.msra.mxu0 %v4024
      %4272 = vmatpush.bf16.msra.mxu0 %v4022
      %4273 = vmatmul.bf16.gmra.mxu0 %v3411
      %v4274 = vpop.f32.mrf.mxu0
      %v4275 = vadd.f32 %v4262, %v4274
      %v4276 = vpop.f32.mrf.mxu0
      %4277 = vdwg.mxu0
      %4278 = vmatpush.bf16.msra.mxu0 %v4052
      %4279 = vmatpush.bf16.msra.mxu0 %v4050
      %4280 = vmatpush.bf16.msra.mxu0 %v4048
      %4281 = vmatpush.bf16.msra.mxu0 %v4046
      %4282 = vmatpush.bf16.msra.mxu0 %v4044
      %4283 = vmatpush.bf16.msra.mxu0 %v4042
      %4284 = vmatpush.bf16.msra.mxu0 %v4040
      %4285 = vmatpush.bf16.msra.mxu0 %v4038
      %4286 = vmatmul.bf16.gmra.mxu0 %v3412
      %v4287 = vpop.f32.mrf.mxu0
      %v4288 = vadd.f32 %v4275, %v4287
      %v4289 = vpop.f32.mrf.mxu0
      %4290 = vdwg.mxu0
      %4291 = vmatpush.bf16.msra.mxu0 %v3941
      %4292 = vmatpush.bf16.msra.mxu0 %v3939
      %4293 = vmatpush.bf16.msra.mxu0 %v3937
      %4294 = vmatpush.bf16.msra.mxu0 %v3935
      %4295 = vmatpush.bf16.msra.mxu0 %v3933
      %4296 = vmatpush.bf16.msra.mxu0 %v3931
      %4297 = vmatpush.bf16.msra.mxu0 %v3929
      %4298 = vmatpush.bf16.msra.mxu0 %v3927
      %4299 = vmatmul.bf16.gmra.mxu0 %v3405
      %v4300 = vpop.f32.mrf.mxu0
      %v4301 = vadd.f32 %v4184, %v4300
      %v4302 = vpop.f32.mrf.mxu0
      %4303 = vdwg.mxu0
      %4304 = vmatpush.bf16.msra.mxu0 %v3957
      %4305 = vmatpush.bf16.msra.mxu0 %v3955
      %4306 = vmatpush.bf16.msra.mxu0 %v3953
      %4307 = vmatpush.bf16.msra.mxu0 %v3951
      %4308 = vmatpush.bf16.msra.mxu0 %v3949
      %4309 = vmatpush.bf16.msra.mxu0 %v3947
      %4310 = vmatpush.bf16.msra.mxu0 %v3945
      %4311 = vmatpush.bf16.msra.mxu0 %v3943
      %4312 = vmatmul.bf16.gmra.mxu0 %v3406
      %v4313 = vpop.f32.mrf.mxu0
      %v4314 = vadd.f32 %v4301, %v4313
      %v4315 = vpop.f32.mrf.mxu0
      %4316 = vdwg.mxu0
      %4317 = vmatpush.bf16.msra.mxu0 %v3973
      %4318 = vmatpush.bf16.msra.mxu0 %v3971
      %4319 = vmatpush.bf16.msra.mxu0 %v3969
      %4320 = vmatpush.bf16.msra.mxu0 %v3967
      %4321 = vmatpush.bf16.msra.mxu0 %v3965
      %4322 = vmatpush.bf16.msra.mxu0 %v3963
      %4323 = vmatpush.bf16.msra.mxu0 %v3961
      %4324 = vmatpush.bf16.msra.mxu0 %v3959
      %4325 = vmatmul.bf16.gmra.mxu0 %v3407
      %v4326 = vpop.f32.mrf.mxu0
      %v4327 = vadd.f32 %v4314, %v4326
      %v4328 = vpop.f32.mrf.mxu0
      %4329 = vdwg.mxu0
      %4330 = vmatpush.bf16.msra.mxu0 %v3989
      %4331 = vmatpush.bf16.msra.mxu0 %v3987
      %4332 = vmatpush.bf16.msra.mxu0 %v3985
      %4333 = vmatpush.bf16.msra.mxu0 %v3983
      %4334 = vmatpush.bf16.msra.mxu0 %v3981
      %4335 = vmatpush.bf16.msra.mxu0 %v3979
      %4336 = vmatpush.bf16.msra.mxu0 %v3977
      %4337 = vmatpush.bf16.msra.mxu0 %v3975
      %4338 = vmatmul.bf16.gmra.mxu0 %v3408
      %v4339 = vpop.f32.mrf.mxu0
      %v4340 = vadd.f32 %v4327, %v4339
      %v4341 = vpop.f32.mrf.mxu0
      %4342 = vdwg.mxu0
      %4343 = vmatpush.bf16.msra.mxu0 %v4005
      %4344 = vmatpush.bf16.msra.mxu0 %v4003
      %4345 = vmatpush.bf16.msra.mxu0 %v4001
      %4346 = vmatpush.bf16.msra.mxu0 %v3999
      %4347 = vmatpush.bf16.msra.mxu0 %v3997
      %4348 = vmatpush.bf16.msra.mxu0 %v3995
      %4349 = vmatpush.bf16.msra.mxu0 %v3993
      %4350 = vmatpush.bf16.msra.mxu0 %v3991
      %4351 = vmatmul.bf16.gmra.mxu0 %v3409
      %v4352 = vpop.f32.mrf.mxu0
      %v4353 = vadd.f32 %v4340, %v4352
      %v4354 = vpop.f32.mrf.mxu0
      %4355 = vdwg.mxu0
      %4356 = vmatpush.bf16.msra.mxu0 %v4021
      %4357 = vmatpush.bf16.msra.mxu0 %v4019
      %4358 = vmatpush.bf16.msra.mxu0 %v4017
      %4359 = vmatpush.bf16.msra.mxu0 %v4015
      %4360 = vmatpush.bf16.msra.mxu0 %v4013
      %4361 = vmatpush.bf16.msra.mxu0 %v4011
      %4362 = vmatpush.bf16.msra.mxu0 %v4009
      %4363 = vmatpush.bf16.msra.mxu0 %v4007
      %4364 = vmatmul.bf16.gmra.mxu0 %v3410
      %v4365 = vpop.f32.mrf.mxu0
      %v4366 = vadd.f32 %v4353, %v4365
      %v4367 = vpop.f32.mrf.mxu0
      %4368 = vdwg.mxu0
      %4369 = vmatpush.bf16.msra.mxu0 %v4037
      %4370 = vmatpush.bf16.msra.mxu0 %v4035
      %4371 = vmatpush.bf16.msra.mxu0 %v4033
      %4372 = vmatpush.bf16.msra.mxu0 %v4031
      %4373 = vmatpush.bf16.msra.mxu0 %v4029
      %4374 = vmatpush.bf16.msra.mxu0 %v4027
      %4375 = vmatpush.bf16.msra.mxu0 %v4025
      %4376 = vmatpush.bf16.msra.mxu0 %v4023
      %4377 = vmatmul.bf16.gmra.mxu0 %v3411
      %v4378 = vpop.f32.mrf.mxu0
      %v4379 = vadd.f32 %v4366, %v4378
      %v4380 = vpop.f32.mrf.mxu0
      %4381 = vdwg.mxu0
      %4382 = vmatpush.bf16.msra.mxu0 %v4053
      %4383 = vmatpush.bf16.msra.mxu0 %v4051
      %4384 = vmatpush.bf16.msra.mxu0 %v4049
      %4385 = vmatpush.bf16.msra.mxu0 %v4047
      %4386 = vmatpush.bf16.msra.mxu0 %v4045
      %4387 = vmatpush.bf16.msra.mxu0 %v4043
      %4388 = vmatpush.bf16.msra.mxu0 %v4041
      %4389 = vmatpush.bf16.msra.mxu0 %v4039
      %4390 = vmatmul.bf16.gmra.mxu0 %v3412
      %v4391 = vpop.f32.mrf.mxu0
      %v4392 = vadd.f32 %v4379, %v4391
      %v4393 = vpop.f32.mrf.mxu0
      %4394 = vdwg.mxu0
      %v4397 = vrot.slane %v4392, 7
      %vm4398 = vcmask 1040384
      %v4399 = vsel %vm4398, %v4288, %v4397
      %v4401 = vlaneseq
      %vm4402 = vcmp.ge.s32.totalorder %v4401, 0
      %vm4403 = vcmp.lt.s32.totalorder %v4401, 256
      %vm4404 = vmand %vm4402, %vm4403
      %4405 = vst.msk [vmem:[%s384] sm:$0x3] %vm4404, %v4399
      %p4406 = scmp.lt.s32.totalorder %s22, 1
      %s4407 = scalar_select %p4406, %s22, 1
      %s4408 = smul.addr %s4407, 2
      %s4409 = scalar_lea.vmem %s11, %s4408
      // Predicated region
      $region65: #{cnn_forward.1} parent=63 // pred_check
        %p4410 = pneg %p276
      $region66: #{cnn_forward.1} parent=63 // pred_check_branch
        %4412 = sbr.rel (%p4410) target = $region68
      $region67: #{cnn_forward.1} parent=63 // pred_region
        _
      $region68: #{cnn_forward.1} parent=63 // pred_fallthru
        _
    $region64: #{cnn_forward.1} parent=5 // pred_fallthru
      _
    %p4413 = scmp.le.s32.totalorder 2, %s17
    // Predicated region
    $region69: #{cnn_forward.1} parent=5 // pred_check
      %p4414 = pneg %p4413
    $region70: #{cnn_forward.1} parent=5 // pred_check_branch
      %4416 = sbr.rel (%p4414) target = $region72
    $region71: #{cnn_forward.1} parent=5 // pred_region
      %s4417 = ssub.s32 %s17, 2
      // Predicated region
      $region73: #{cnn_forward.1} parent=71 // pred_check
        %p4418 = pneg %p282
      $region74: #{cnn_forward.1} parent=71 // pred_check_branch
        %4420 = sbr.rel (%p4418) target = $region76
      $region75: #{cnn_forward.1} parent=71 // pred_region
        %p4421 = scmp.lt.s32.totalorder %s23, 1
        %s4422 = scalar_select %p4421, %s23, 1
        %s4423 = smul.addr %s4422, 2
        %s4424 = scalar_lea.vmem %s11, %s4423
      $region76: #{cnn_forward.1} parent=71 // pred_fallthru
        _
    $region72: #{cnn_forward.1} parent=5 // pred_fallthru
      _
  $region6: #{cnn_forward.1} parent=0 // loop_footer
    %s21 = sadd.s32 1, %s17
  $region7: #{cnn_forward.1} parent=0 // loop_footer_branch
    %16 = sbr.rel target = $region3
  $region8: #{cnn_forward.1} parent=0 // loop_exit
    _

</llo_original>
